<compile_context>
chip_gen: v6e
topology: v6e:2x2x1
jax: 0.10.0
libtpu: 0.0.40
codegen_flags: <defaults>
</compile_context>

<pallas_src>
import functools
import math

import jax
import jax.numpy as jnp
from jax.experimental import pallas as pl
from jax.experimental.pallas import tpu as pltpu

LATENT_DIM = 2          # LevelTrendSSM.latent_dim()
_VMEM = pl.BlockSpec(memory_space=pltpu.MemorySpace.VMEM)  # whole array in VMEM


# ----------------------------------------------------------------------------
# Single fused kernel: encoder LSTM + projectors + Kalman filter +
#                      decoder LSTM + projectors + LDS sampling + sample-mean
# ----------------------------------------------------------------------------
def make_fused_kernel(num_layers, input_size, T_enc, T_dec, H, B):
    C = 4 * H  # == 3*H + 2 for H == 2, shared column width of every param block

    def kernel(seq_ref, prm_ref, eps_ref, forecast_ref):
        # ---- unpack params (8-row aligned blocks) & hoist row broadcasts ------
        blk = {'i': 0}

        def next_block(nrows):
            off = blk['i'] * 8
            blk['i'] += 1
            return prm_ref[off:off + nrows, :]

        def bcast_rows(w, nrows):
            # loop-invariant (B, C) broadcasts, materialized ONCE (not per step)
            return [jnp.broadcast_to(w[k:k + 1, :], (B, C)) for k in range(nrows)]

        weights = []
        for l in range(num_layers):
            in_l = input_size if l == 0 else H
            wih_rows = bcast_rows(next_block(in_l), in_l)
            whh_rows = bcast_rows(next_block(H), H)
            b_bc = jnp.broadcast_to(next_block(1), (B, C))
            weights.append((wih_rows, whh_rows, b_bc))
        wproj_rows = bcast_rows(next_block(H), H)
        bproj_bc = jnp.broadcast_to(next_block(1), (B, C))

        # tiny contraction (K in {2,4}) -> unrolled VPU broadcast-sum, no MXU
        def _mm(x, w_rows):
            acc = x[:, 0:1] * w_rows[0]
            for k in range(1, len(w_rows)):
                acc = acc + x[:, k:k + 1] * w_rows[k]
            return acc

        def _softplus(v):
            # matches torch.nn.Softplus(beta=1, threshold=20)
            return jnp.where(v > 20.0, v, jnp.log1p(jnp.exp(jnp.minimum(v, 20.0))))

        # PyTorch LSTM cell; gate columns were reordered at init to [i, f, o | g]
        # so one vreg-wide sigmoid covers i/f/o and one tanh covers g.
        def lstm_cell(x_t, h, c, wih_rows, whh_rows, b_bc):
            gates = _mm(x_t, wih_rows) + _mm(h, whh_rows) + b_bc
            sig = jax.nn.sigmoid(gates[:, 0:3 * H])
            g = jnp.tanh(gates[:, 3 * H:4 * H])
            i = sig[:, 0:H]
            f = sig[:, H:2 * H]
            o = sig[:, 2 * H:3 * H]
            c_new = f * c + i * g
            h_new = o * jnp.tanh(c_new)
            return h_new, c_new

        zeros_bh = jnp.zeros((B, H), jnp.float32)
        h = [zeros_bh for _ in range(num_layers)]
        c = [zeros_bh for _ in range(num_layers)]

        # Kalman carry: mean (m0, m1); symmetric cov tracked as (p00, p01, p11)
        m0 = m1 = p00 = p01 = p11 = None

        # ---- encoder: LSTM + fused projector + Kalman filter (fully unrolled)
        # LevelTrendSSM constants hardcoded: emission e = [1, 1],
        # transition F = [[1, 1], [0, 1]].
        for t in range(T_enc):
            row = seq_ref[t]                                     # (B, I+1)
            x = row[:, 0:input_size]
            z = row[:, input_size:input_size + 1]                # (B, 1)
            for l in range(num_layers):
                wih_rows, whh_rows, b_bc = weights[l]
                h[l], c[l] = lstm_cell(x, h[l], c[l], wih_rows, whh_rows, b_bc)
                x = h[l]
            # fused projector: cols = [mean(H), std(H), innov(H), noise(1), off(1)]
            proj = _mm(x, wproj_rows) + bproj_bc                 # (B, 3H+2)
            sp = _softplus(proj)
            if t == 0:
                m0 = proj[:, 0:1]
                m1 = proj[:, 1:2]
                s0 = sp[:, H:H + 1]
                s1 = sp[:, H + 1:H + 2]
                p00 = s0 * s0                                    # diag_embed(std^2)
                p01 = jnp.zeros_like(s0)
                p11 = s1 * s1
            g0 = sp[:, 2 * H:2 * H + 1]                          # innovation
            g1 = sp[:, 2 * H + 1:2 * H + 2]
            ns = sp[:, 3 * H:3 * H + 1]                          # noise_std
            off = proj[:, 3 * H + 1:3 * H + 2]                   # offset

            # Kalman step (log-likelihood path dropped: discarded by forward()).
            r = z - (m0 + m1 + off)
            pe0 = p00 + p01
            pe1 = p01 + p11
            s = pe0 + pe1 + ns * ns
            inv_s = pl.reciprocal(s, approx=True)                # EUP, off the VALU
            k0 = pe0 * inv_s
            k1 = pe1 * inv_s
            fm0 = m0 + k0 * r
            fm1 = m1 + k1 * r
            # filtered cov = P - (Pe)(Pe)^T / s  (symmetric)
            fp00 = p00 - k0 * pe0
            fp01 = p01 - k0 * pe1
            fp11 = p11 - k1 * pe1
            # next prior: mean = F fm ; cov = F fP F^T + g g^T, F = [[1,1],[0,1]]
            a = fp01 + fp11
            m0 = fm0 + fm1
            m1 = fm1
            p00 = fp00 + fp01 + a + g0 * g0
            p01 = a + g0 * g1
            p11 = fp11 + g1 * g1

        # ---- initial latent draw: N(mean, full 2x2 cov) via guarded Cholesky --
        l11 = jnp.sqrt(jnp.maximum(p00, 1e-12))
        l21 = p01 / l11
        l22 = jnp.sqrt(jnp.maximum(p11 - l21 * l21, 0.0))
        e0 = eps_ref[0]                                          # (B, S) samples on lanes
        e1 = eps_ref[1]
        lat0 = m0 + l11 * e0                                     # (B, S)
        lat1 = m1 + l21 * e0 + l22 * e1
        S = e0.shape[1]

        # ---- decoder: LSTM (state carried from encoder) + projectors +
        #      LDS sampling, unrolled; sample-sum accumulated, scaled once -----
        sums = []
        for t in range(T_dec):
            x = seq_ref[T_enc + t][:, 0:input_size]              # (B, I)
            for l in range(num_layers):
                wih_rows, whh_rows, b_bc = weights[l]
                h[l], c[l] = lstm_cell(x, h[l], c[l], wih_rows, whh_rows, b_bc)
                x = h[l]
            proj = _mm(x, wproj_rows) + bproj_bc
            sp = _softplus(proj)
            g0 = sp[:, 2 * H:2 * H + 1]
            g1 = sp[:, 2 * H + 1:2 * H + 2]
            ns = sp[:, 3 * H:3 * H + 1]
            off = proj[:, 3 * H + 1:3 * H + 2]

            # z_t = e . l_t + off + noise * eps   (e = [1,1]); per-batch (B,1)
            # coefficients broadcast across the lane/sample axis for free.
            zt = lat0 + lat1 + off + ns * eps_ref[2 + t]         # (B, S)
            sums.append(jnp.sum(zt, axis=1, keepdims=True))
            eps = eps_ref[2 + T_dec + t]                         # (B, S)
            lat0, lat1 = lat0 + lat1 + g0 * eps, lat1 + g1 * eps  # l <- F l + g*eps

        # single lane-dense store of the whole forecast; mean over samples
        forecast_ref[...] = jnp.concatenate(sums, axis=1) * (1.0 / S)

    return kernel


# ----------------------------------------------------------------------------
# Parameter init (deterministic, PyTorch default U(-1/sqrt(fan_in), 1/sqrt(fan_in)))
# ----------------------------------------------------------------------------
def init_params(key, input_size, hidden, num_layers):
    H = hidden
    assert H == LATENT_DIM == 2, "fused projector packing assumes latent_dim == 2"
    params = {'lstm': []}
    k_lstm = 1.0 / math.sqrt(H)
    # gate reorder: PyTorch row blocks [i, f, g, o] -> [i, f, o, g] so the kernel
    # applies one vreg-wide sigmoid to the first 3H gate columns.
    perm = jnp.array(list(range(0, H)) + list(range(H, 2 * H)) +
                     list(range(3 * H, 4 * H)) + list(range(2 * H, 3 * H)))
    for l in range(num_layers):
        in_l = input_size if l == 0 else H
        key, k1, k2, k3, k4 = jax.random.split(key, 5)
        wih = jax.random.uniform(k1, (4 * H, in_l), jnp.float32, -k_lstm, k_lstm)[perm]
        whh = jax.random.uniform(k2, (4 * H, H), jnp.float32, -k_lstm, k_lstm)[perm]
        bih = jax.random.uniform(k3, (4 * H,), jnp.float32, -k_lstm, k_lstm)[perm]
        bhh = jax.random.uniform(k4, (4 * H,), jnp.float32, -k_lstm, k_lstm)[perm]
        params['lstm'].append({'wih_t': wih.T, 'whh_t': whh.T,
                               'b': (bih + bhh).reshape(1, 4 * H)})

    def linear(k, fin, fout):
        k1, k2 = jax.random.split(k)
        bound = 1.0 / math.sqrt(fin)
        w = jax.random.uniform(k1, (fout, fin), jnp.float32, -bound, bound)
        b = jax.random.uniform(k2, (fout,), jnp.float32, -bound, bound)
        return w.T, b.reshape(1, fout)

    key, km, ks, ki, kn, ko = jax.random.split(key, 6)
    wm, bm = linear(km, H, H)     # prior_mean
    ws, bs = linear(ks, H, H)     # prior_std   (softplus in-kernel)
    wi, bi = linear(ki, H, H)     # innovation  (softplus in-kernel)
    wn, bn = linear(kn, H, 1)     # noise_std   (softplus in-kernel)
    wo, bo = linear(ko, H, 1)     # offset
    # fused projector: one (H, 3H+2) contraction instead of five tiny heads
    params['w_proj'] = jnp.concatenate([wm, ws, wi, wn, wo], axis=1)
    params['b_proj'] = jnp.concatenate([bm, bs, bi, bn, bo], axis=1)
    return params


def _pack_params(params):
    """Stack every param tensor into one (8*(3L+2), 8) slab, each tensor padded
    to an 8-row (sublane-aligned) block. Unpack order must match the kernel."""
    blocks = []
    for lp in params['lstm']:
        for t in (lp['wih_t'], lp['whh_t'], lp['b']):
            blocks.append(jnp.pad(t, ((0, (-t.shape[0]) % 8), (0, 0))))
    for t in (params['w_proj'], params['b_proj']):
        blocks.append(jnp.pad(t, ((0, (-t.shape[0]) % 8), (0, 0))))
    return jnp.concatenate(blocks, axis=0)


# ----------------------------------------------------------------------------
# Full forward pass (mirrors DeepStateNet.forward with LevelTrendSSM)
# ----------------------------------------------------------------------------
@functools.partial(jax.jit, static_argnames=('n_samples',))
def deepstate_forward(params, batch, n_samples, key):
    enc_real = batch['encoder_real'].astype(jnp.float32)        # (B, T_enc, I)
    dec_real = batch['decoder_real'].astype(jnp.float32)        # (B, T_dec, I)
    B, T_enc, I = enc_real.shape
    T_dec = dec_real.shape[1]
    targets = batch['encoder_target'][:, :T_enc].astype(jnp.float32)  # (B, T_enc, 1)
    H = LATENT_DIM
    L = len(params['lstm'])
    S = n_samples

    # packed slabs (tiny relayouts, fused by XLA under jit) -> 3 input DMAs total
    enc_tm = jnp.transpose(enc_real, (1, 0, 2))                 # (T_enc, B, I)
    tgt_tm = jnp.transpose(targets, (1, 0, 2))                  # (T_enc, B, 1)
    dec_tm = jnp.transpose(dec_real, (1, 0, 2))                 # (T_dec, B, I)
    seq = jnp.concatenate(
        [jnp.concatenate([enc_tm, tgt_tm], axis=2),             # [enc | target]
         jnp.pad(dec_tm, ((0, 0), (0, 0), (0, 1)))], axis=0)    # [dec | 0]
    prm = _pack_params(params)                                  # (8*(3L+2), 8)

    # TODO(synk): torch RNG / MultivariateNormal draws cannot be matched bit-exactly;
    # one iid N(0,1) slab is drawn with jax.random: rows [0:2] initial-latent eps,
    # [2:2+T_dec] observation eps, [2+T_dec:] latent-innovation eps; samples on lanes.
    eps = jax.random.normal(key, (2 + 2 * T_dec, B, S), jnp.float32)

    # TODO(synk): reference passes prior_mean (B, latent) into ssm.emission_coeff /
    # innovation_coeff, whose shape would not match LDS over seq_length; we use the
    # LDS-required all-ones LevelTrendSSM coefficients (original ETNA semantics),
    # hardcoded inside the kernel together with transition [[1,1],[0,1]].
    kernel = make_fused_kernel(L, I, T_enc, T_dec, H, B)
    forecast = pl.pallas_call(
        kernel,
        out_shape=jax.ShapeDtypeStruct((B, T_dec), jnp.float32),
        in_specs=[_VMEM, _VMEM, _VMEM],
        out_specs=_VMEM,
    )(seq, prm, eps)

    return forecast[..., None]                                  # (B, T_dec, 1)


if __name__ == "__main__":
    key = jax.random.PRNGKey(0)
    B, T_ENC, T_DEC, INPUT_SIZE, NUM_LAYERS, N_SAMPLES = 2, 8, 4, 4, 2, 8

    pkey, dkey, skey = jax.random.split(key, 3)
    params = init_params(pkey, INPUT_SIZE, LATENT_DIM, NUM_LAYERS)

    k1, k2, k3 = jax.random.split(dkey, 3)
    batch = {
        'encoder_real': jax.random.normal(k1, (B, T_ENC, INPUT_SIZE), jnp.float32),
        'decoder_real': jax.random.normal(k2, (B, T_DEC, INPUT_SIZE), jnp.float32),
        'encoder_target': jax.random.normal(k3, (B, T_ENC, 1), jnp.float32),
    }

    forecast = deepstate_forward(params, batch, N_SAMPLES, skey)
    forecast = jax.block_until_ready(forecast)
    assert forecast.shape == (B, T_DEC, 1), forecast.shape
    assert bool(jnp.all(jnp.isfinite(forecast)))
    print("KERNEL_OK")
</pallas_src>

<mosaic_0001>
module attributes {stable_mosaic.version = 11 : i64} {
  func.func @kernel(%arg0: memref<12x2x5xf32, #tpu.memory_space<vmem>>, %arg1: memref<64x8xf32, #tpu.memory_space<vmem>>, %arg2: memref<10x2x8xf32, #tpu.memory_space<vmem>>, %arg3: memref<2x4xf32, #tpu.memory_space<vmem>>) attributes {dimension_semantics = [], scalar_prefetch = 0 : i64, scratch_operands = 0 : i64, tpu.core_type = #tpu.core_type<tc>} {
    %c0 = arith.constant 0 : index
    %c0_0 = arith.constant 0 : index
    %0 = vector.load %arg1[%c0, %c0_0] : memref<64x8xf32, #tpu.memory_space<vmem>>, vector<4x8xf32>
    %1 = vector.extract_strided_slice %0 {offsets = [0, 0], sizes = [1, 8], strides = [1, 1]} : vector<4x8xf32> to vector<1x8xf32>
    %2 = vector.shape_cast %1 : vector<1x8xf32> to vector<1x8xf32>
    %3 = vector.broadcast %2 : vector<1x8xf32> to vector<2x8xf32>
    %4 = vector.extract_strided_slice %0 {offsets = [1, 0], sizes = [1, 8], strides = [1, 1]} : vector<4x8xf32> to vector<1x8xf32>
    %5 = vector.shape_cast %4 : vector<1x8xf32> to vector<1x8xf32>
    %6 = vector.broadcast %5 : vector<1x8xf32> to vector<2x8xf32>
    %7 = vector.extract_strided_slice %0 {offsets = [2, 0], sizes = [1, 8], strides = [1, 1]} : vector<4x8xf32> to vector<1x8xf32>
    %8 = vector.shape_cast %7 : vector<1x8xf32> to vector<1x8xf32>
    %9 = vector.broadcast %8 : vector<1x8xf32> to vector<2x8xf32>
    %10 = vector.extract_strided_slice %0 {offsets = [3, 0], sizes = [1, 8], strides = [1, 1]} : vector<4x8xf32> to vector<1x8xf32>
    %11 = vector.shape_cast %10 : vector<1x8xf32> to vector<1x8xf32>
    %12 = vector.broadcast %11 : vector<1x8xf32> to vector<2x8xf32>
    %c8 = arith.constant 8 : index
    %c0_1 = arith.constant 0 : index
    %13 = vector.load %arg1[%c8, %c0_1] : memref<64x8xf32, #tpu.memory_space<vmem>>, vector<2x8xf32>
    %14 = vector.extract_strided_slice %13 {offsets = [0, 0], sizes = [1, 8], strides = [1, 1]} : vector<2x8xf32> to vector<1x8xf32>
    %15 = vector.shape_cast %14 : vector<1x8xf32> to vector<1x8xf32>
    %16 = vector.broadcast %15 : vector<1x8xf32> to vector<2x8xf32>
    %17 = vector.extract_strided_slice %13 {offsets = [1, 0], sizes = [1, 8], strides = [1, 1]} : vector<2x8xf32> to vector<1x8xf32>
    %18 = vector.shape_cast %17 : vector<1x8xf32> to vector<1x8xf32>
    %19 = vector.broadcast %18 : vector<1x8xf32> to vector<2x8xf32>
    %c16 = arith.constant 16 : index
    %c0_2 = arith.constant 0 : index
    %20 = vector.load %arg1[%c16, %c0_2] : memref<64x8xf32, #tpu.memory_space<vmem>>, vector<1x8xf32>
    %21 = vector.shape_cast %20 : vector<1x8xf32> to vector<1x8xf32>
    %22 = vector.broadcast %21 : vector<1x8xf32> to vector<2x8xf32>
    %c24 = arith.constant 24 : index
    %c0_3 = arith.constant 0 : index
    %23 = vector.load %arg1[%c24, %c0_3] : memref<64x8xf32, #tpu.memory_space<vmem>>, vector<2x8xf32>
    %24 = vector.extract_strided_slice %23 {offsets = [0, 0], sizes = [1, 8], strides = [1, 1]} : vector<2x8xf32> to vector<1x8xf32>
    %25 = vector.shape_cast %24 : vector<1x8xf32> to vector<1x8xf32>
    %26 = vector.broadcast %25 : vector<1x8xf32> to vector<2x8xf32>
    %27 = vector.extract_strided_slice %23 {offsets = [1, 0], sizes = [1, 8], strides = [1, 1]} : vector<2x8xf32> to vector<1x8xf32>
    %28 = vector.shape_cast %27 : vector<1x8xf32> to vector<1x8xf32>
    %29 = vector.broadcast %28 : vector<1x8xf32> to vector<2x8xf32>
    %c32 = arith.constant 32 : index
    %c0_4 = arith.constant 0 : index
    %30 = vector.load %arg1[%c32, %c0_4] : memref<64x8xf32, #tpu.memory_space<vmem>>, vector<2x8xf32>
    %31 = vector.extract_strided_slice %30 {offsets = [0, 0], sizes = [1, 8], strides = [1, 1]} : vector<2x8xf32> to vector<1x8xf32>
    %32 = vector.shape_cast %31 : vector<1x8xf32> to vector<1x8xf32>
    %33 = vector.broadcast %32 : vector<1x8xf32> to vector<2x8xf32>
    %34 = vector.extract_strided_slice %30 {offsets = [1, 0], sizes = [1, 8], strides = [1, 1]} : vector<2x8xf32> to vector<1x8xf32>
    %35 = vector.shape_cast %34 : vector<1x8xf32> to vector<1x8xf32>
    %36 = vector.broadcast %35 : vector<1x8xf32> to vector<2x8xf32>
    %c40 = arith.constant 40 : index
    %c0_5 = arith.constant 0 : index
    %37 = vector.load %arg1[%c40, %c0_5] : memref<64x8xf32, #tpu.memory_space<vmem>>, vector<1x8xf32>
    %38 = vector.shape_cast %37 : vector<1x8xf32> to vector<1x8xf32>
    %39 = vector.broadcast %38 : vector<1x8xf32> to vector<2x8xf32>
    %c48 = arith.constant 48 : index
    %c0_6 = arith.constant 0 : index
    %40 = vector.load %arg1[%c48, %c0_6] : memref<64x8xf32, #tpu.memory_space<vmem>>, vector<2x8xf32>
    %41 = vector.extract_strided_slice %40 {offsets = [0, 0], sizes = [1, 8], strides = [1, 1]} : vector<2x8xf32> to vector<1x8xf32>
    %42 = vector.shape_cast %41 : vector<1x8xf32> to vector<1x8xf32>
    %43 = vector.broadcast %42 : vector<1x8xf32> to vector<2x8xf32>
    %44 = vector.extract_strided_slice %40 {offsets = [1, 0], sizes = [1, 8], strides = [1, 1]} : vector<2x8xf32> to vector<1x8xf32>
    %45 = vector.shape_cast %44 : vector<1x8xf32> to vector<1x8xf32>
    %46 = vector.broadcast %45 : vector<1x8xf32> to vector<2x8xf32>
    %c56 = arith.constant 56 : index
    %c0_7 = arith.constant 0 : index
    %47 = vector.load %arg1[%c56, %c0_7] : memref<64x8xf32, #tpu.memory_space<vmem>>, vector<1x8xf32>
    %48 = vector.shape_cast %47 : vector<1x8xf32> to vector<1x8xf32>
    %49 = vector.broadcast %48 : vector<1x8xf32> to vector<2x8xf32>
    %cst = arith.constant 0.000000e+00 : f32
    %50 = vector.broadcast %cst : f32 to vector<2x2xf32>
    %c0_8 = arith.constant 0 : index
    %c0_9 = arith.constant 0 : index
    %c0_10 = arith.constant 0 : index
    %51 = vector.load %arg0[%c0_8, %c0_9, %c0_10] : memref<12x2x5xf32, #tpu.memory_space<vmem>>, vector<1x2x5xf32>
    %52 = vector.shape_cast %51 : vector<1x2x5xf32> to vector<2x5xf32>
    %53 = vector.extract_strided_slice %52 {offsets = [0, 0], sizes = [2, 4], strides = [1, 1]} : vector<2x5xf32> to vector<2x4xf32>
    %54 = vector.extract_strided_slice %52 {offsets = [0, 4], sizes = [2, 1], strides = [1, 1]} : vector<2x5xf32> to vector<2x1xf32>
    %55 = vector.extract_strided_slice %53 {offsets = [0, 0], sizes = [2, 1], strides = [1, 1]} : vector<2x4xf32> to vector<2x1xf32>
    %56 = vector.broadcast %55 : vector<2x1xf32> to vector<2x8xf32>
    %57 = arith.mulf %56, %3 : vector<2x8xf32>
    %58 = vector.extract_strided_slice %53 {offsets = [0, 1], sizes = [2, 1], strides = [1, 1]} : vector<2x4xf32> to vector<2x1xf32>
    %59 = vector.broadcast %58 : vector<2x1xf32> to vector<2x8xf32>
    %60 = arith.mulf %59, %6 : vector<2x8xf32>
    %61 = arith.addf %57, %60 : vector<2x8xf32>
    %62 = vector.extract_strided_slice %53 {offsets = [0, 2], sizes = [2, 1], strides = [1, 1]} : vector<2x4xf32> to vector<2x1xf32>
    %63 = vector.broadcast %62 : vector<2x1xf32> to vector<2x8xf32>
    %64 = arith.mulf %63, %9 : vector<2x8xf32>
    %65 = arith.addf %61, %64 : vector<2x8xf32>
    %66 = vector.extract_strided_slice %53 {offsets = [0, 3], sizes = [2, 1], strides = [1, 1]} : vector<2x4xf32> to vector<2x1xf32>
    %67 = vector.broadcast %66 : vector<2x1xf32> to vector<2x8xf32>
    %68 = arith.mulf %67, %12 : vector<2x8xf32>
    %69 = arith.addf %65, %68 : vector<2x8xf32>
    %70 = vector.extract_strided_slice %50 {offsets = [0, 0], sizes = [2, 1], strides = [1, 1]} : vector<2x2xf32> to vector<2x1xf32>
    %71 = vector.broadcast %70 : vector<2x1xf32> to vector<2x8xf32>
    %72 = arith.mulf %71, %16 : vector<2x8xf32>
    %73 = vector.extract_strided_slice %50 {offsets = [0, 1], sizes = [2, 1], strides = [1, 1]} : vector<2x2xf32> to vector<2x1xf32>
    %74 = vector.broadcast %73 : vector<2x1xf32> to vector<2x8xf32>
    %75 = arith.mulf %74, %19 : vector<2x8xf32>
    %76 = arith.addf %72, %75 : vector<2x8xf32>
    %77 = arith.addf %69, %76 : vector<2x8xf32>
    %78 = arith.addf %77, %22 : vector<2x8xf32>
    %79 = vector.extract_strided_slice %78 {offsets = [0, 0], sizes = [2, 6], strides = [1, 1]} : vector<2x8xf32> to vector<2x6xf32>
    %80 = arith.negf %79 : vector<2x6xf32>
    %81 = math.exp %80 : vector<2x6xf32>
    %cst_11 = arith.constant 1.000000e+00 : f32
    %82 = vector.broadcast %cst_11 : f32 to vector<2x6xf32>
    %83 = arith.addf %82, %81 : vector<2x6xf32>
    %84 = arith.divf %82, %83 : vector<2x6xf32>
    %85 = vector.extract_strided_slice %78 {offsets = [0, 6], sizes = [2, 2], strides = [1, 1]} : vector<2x8xf32> to vector<2x2xf32>
    %86 = math.tanh %85 : vector<2x2xf32>
    %87 = vector.extract_strided_slice %84 {offsets = [0, 0], sizes = [2, 2], strides = [1, 1]} : vector<2x6xf32> to vector<2x2xf32>
    %88 = vector.extract_strided_slice %84 {offsets = [0, 2], sizes = [2, 2], strides = [1, 1]} : vector<2x6xf32> to vector<2x2xf32>
    %89 = vector.extract_strided_slice %84 {offsets = [0, 4], sizes = [2, 2], strides = [1, 1]} : vector<2x6xf32> to vector<2x2xf32>
    %90 = arith.mulf %88, %50 : vector<2x2xf32>
    %91 = arith.mulf %87, %86 : vector<2x2xf32>
    %92 = arith.addf %90, %91 : vector<2x2xf32>
    %93 = math.tanh %92 : vector<2x2xf32>
    %94 = arith.mulf %89, %93 : vector<2x2xf32>
    %95 = vector.extract_strided_slice %94 {offsets = [0, 0], sizes = [2, 1], strides = [1, 1]} : vector<2x2xf32> to vector<2x1xf32>
    %96 = vector.broadcast %95 : vector<2x1xf32> to vector<2x8xf32>
    %97 = arith.mulf %96, %26 : vector<2x8xf32>
    %98 = vector.extract_strided_slice %94 {offsets = [0, 1], sizes = [2, 1], strides = [1, 1]} : vector<2x2xf32> to vector<2x1xf32>
    %99 = vector.broadcast %98 : vector<2x1xf32> to vector<2x8xf32>
    %100 = arith.mulf %99, %29 : vector<2x8xf32>
    %101 = arith.addf %97, %100 : vector<2x8xf32>
    %102 = vector.extract_strided_slice %50 {offsets = [0, 0], sizes = [2, 1], strides = [1, 1]} : vector<2x2xf32> to vector<2x1xf32>
    %103 = vector.broadcast %102 : vector<2x1xf32> to vector<2x8xf32>
    %104 = arith.mulf %103, %33 : vector<2x8xf32>
    %105 = vector.extract_strided_slice %50 {offsets = [0, 1], sizes = [2, 1], strides = [1, 1]} : vector<2x2xf32> to vector<2x1xf32>
    %106 = vector.broadcast %105 : vector<2x1xf32> to vector<2x8xf32>
    %107 = arith.mulf %106, %36 : vector<2x8xf32>
    %108 = arith.addf %104, %107 : vector<2x8xf32>
    %109 = arith.addf %101, %108 : vector<2x8xf32>
    %110 = arith.addf %109, %39 : vector<2x8xf32>
    %111 = vector.extract_strided_slice %110 {offsets = [0, 0], sizes = [2, 6], strides = [1, 1]} : vector<2x8xf32> to vector<2x6xf32>
    %112 = arith.negf %111 : vector<2x6xf32>
    %113 = math.exp %112 : vector<2x6xf32>
    %cst_12 = arith.constant 1.000000e+00 : f32
    %114 = vector.broadcast %cst_12 : f32 to vector<2x6xf32>
    %115 = arith.addf %114, %113 : vector<2x6xf32>
    %116 = arith.divf %114, %115 : vector<2x6xf32>
    %117 = vector.extract_strided_slice %110 {offsets = [0, 6], sizes = [2, 2], strides = [1, 1]} : vector<2x8xf32> to vector<2x2xf32>
    %118 = math.tanh %117 : vector<2x2xf32>
    %119 = vector.extract_strided_slice %116 {offsets = [0, 0], sizes = [2, 2], strides = [1, 1]} : vector<2x6xf32> to vector<2x2xf32>
    %120 = vector.extract_strided_slice %116 {offsets = [0, 2], sizes = [2, 2], strides = [1, 1]} : vector<2x6xf32> to vector<2x2xf32>
    %121 = vector.extract_strided_slice %116 {offsets = [0, 4], sizes = [2, 2], strides = [1, 1]} : vector<2x6xf32> to vector<2x2xf32>
    %122 = arith.mulf %120, %50 : vector<2x2xf32>
    %123 = arith.mulf %119, %118 : vector<2x2xf32>
    %124 = arith.addf %122, %123 : vector<2x2xf32>
    %125 = math.tanh %124 : vector<2x2xf32>
    %126 = arith.mulf %121, %125 : vector<2x2xf32>
    %127 = vector.extract_strided_slice %126 {offsets = [0, 0], sizes = [2, 1], strides = [1, 1]} : vector<2x2xf32> to vector<2x1xf32>
    %128 = vector.broadcast %127 : vector<2x1xf32> to vector<2x8xf32>
    %129 = arith.mulf %128, %43 : vector<2x8xf32>
    %130 = vector.extract_strided_slice %126 {offsets = [0, 1], sizes = [2, 1], strides = [1, 1]} : vector<2x2xf32> to vector<2x1xf32>
    %131 = vector.broadcast %130 : vector<2x1xf32> to vector<2x8xf32>
    %132 = arith.mulf %131, %46 : vector<2x8xf32>
    %133 = arith.addf %129, %132 : vector<2x8xf32>
    %134 = arith.addf %133, %49 : vector<2x8xf32>
    %cst_13 = arith.constant 2.000000e+01 : f32
    %135 = vector.broadcast %cst_13 : f32 to vector<2x8xf32>
    %136 = arith.cmpf ogt, %134, %135 : vector<2x8xf32>
    %cst_14 = arith.constant 2.000000e+01 : f32
    %137 = vector.broadcast %cst_14 : f32 to vector<2x8xf32>
    %138 = arith.minimumf %134, %137 : vector<2x8xf32>
    %139 = math.exp %138 : vector<2x8xf32>
    %140 = math.log1p %139 : vector<2x8xf32>
    %141 = arith.select %136, %134, %140 : vector<2x8xi1>, vector<2x8xf32>
    %142 = vector.extract_strided_slice %134 {offsets = [0, 0], sizes = [2, 1], strides = [1, 1]} : vector<2x8xf32> to vector<2x1xf32>
    %143 = vector.extract_strided_slice %134 {offsets = [0, 1], sizes = [2, 1], strides = [1, 1]} : vector<2x8xf32> to vector<2x1xf32>
    %144 = vector.extract_strided_slice %141 {offsets = [0, 2], sizes = [2, 1], strides = [1, 1]} : vector<2x8xf32> to vector<2x1xf32>
    %145 = vector.extract_strided_slice %141 {offsets = [0, 3], sizes = [2, 1], strides = [1, 1]} : vector<2x8xf32> to vector<2x1xf32>
    %146 = arith.mulf %144, %144 : vector<2x1xf32>
    %cst_15 = arith.constant 0.000000e+00 : f32
    %147 = vector.broadcast %cst_15 : f32 to vector<2x1xf32>
    %148 = arith.mulf %145, %145 : vector<2x1xf32>
    %149 = vector.extract_strided_slice %141 {offsets = [0, 4], sizes = [2, 1], strides = [1, 1]} : vector<2x8xf32> to vector<2x1xf32>
    %150 = vector.extract_strided_slice %141 {offsets = [0, 5], sizes = [2, 1], strides = [1, 1]} : vector<2x8xf32> to vector<2x1xf32>
    %151 = vector.extract_strided_slice %141 {offsets = [0, 6], sizes = [2, 1], strides = [1, 1]} : vector<2x8xf32> to vector<2x1xf32>
    %152 = vector.extract_strided_slice %134 {offsets = [0, 7], sizes = [2, 1], strides = [1, 1]} : vector<2x8xf32> to vector<2x1xf32>
    %153 = arith.addf %142, %143 : vector<2x1xf32>
    %154 = arith.addf %153, %152 : vector<2x1xf32>
    %155 = arith.subf %54, %154 : vector<2x1xf32>
    %156 = arith.addf %146, %147 : vector<2x1xf32>
    %157 = arith.addf %147, %148 : vector<2x1xf32>
    %158 = arith.addf %156, %157 : vector<2x1xf32>
    %159 = arith.mulf %151, %151 : vector<2x1xf32>
    %160 = arith.addf %158, %159 : vector<2x1xf32>
    %161 = tpu.reciprocal %160 {approx = true} : vector<2x1xf32> -> vector<2x1xf32>
    %162 = arith.mulf %156, %161 : vector<2x1xf32>
    %163 = arith.mulf %157, %161 : vector<2x1xf32>
    %164 = arith.mulf %162, %155 : vector<2x1xf32>
    %165 = arith.addf %142, %164 : vector<2x1xf32>
    %166 = arith.mulf %163, %155 : vector<2x1xf32>
    %167 = arith.addf %143, %166 : vector<2x1xf32>
    %168 = arith.mulf %162, %156 : vector<2x1xf32>
    %169 = arith.subf %146, %168 : vector<2x1xf32>
    %170 = arith.mulf %162, %157 : vector<2x1xf32>
    %171 = arith.subf %147, %170 : vector<2x1xf32>
    %172 = arith.mulf %163, %157 : vector<2x1xf32>
    %173 = arith.subf %148, %172 : vector<2x1xf32>
    %174 = arith.addf %171, %173 : vector<2x1xf32>
    %175 = arith.addf %165, %167 : vector<2x1xf32>
    %176 = arith.addf %169, %171 : vector<2x1xf32>
    %177 = arith.addf %176, %174 : vector<2x1xf32>
    %178 = arith.mulf %149, %149 : vector<2x1xf32>
    %179 = arith.addf %177, %178 : vector<2x1xf32>
    %180 = arith.mulf %149, %150 : vector<2x1xf32>
    %181 = arith.addf %174, %180 : vector<2x1xf32>
    %182 = arith.mulf %150, %150 : vector<2x1xf32>
    %183 = arith.addf %173, %182 : vector<2x1xf32>
    %c1 = arith.constant 1 : index
    %c0_16 = arith.constant 0 : index
    %c0_17 = arith.constant 0 : index
    %184 = vector.load %arg0[%c1, %c0_16, %c0_17] : memref<12x2x5xf32, #tpu.memory_space<vmem>>, vector<1x2x5xf32>
    %185 = vector.shape_cast %184 : vector<1x2x5xf32> to vector<2x5xf32>
    %186 = vector.extract_strided_slice %185 {offsets = [0, 0], sizes = [2, 4], strides = [1, 1]} : vector<2x5xf32> to vector<2x4xf32>
    %187 = vector.extract_strided_slice %185 {offsets = [0, 4], sizes = [2, 1], strides = [1, 1]} : vector<2x5xf32> to vector<2x1xf32>
    %188 = vector.extract_strided_slice %186 {offsets = [0, 0], sizes = [2, 1], strides = [1, 1]} : vector<2x4xf32> to vector<2x1xf32>
    %189 = vector.broadcast %188 : vector<2x1xf32> to vector<2x8xf32>
    %190 = arith.mulf %189, %3 : vector<2x8xf32>
    %191 = vector.extract_strided_slice %186 {offsets = [0, 1], sizes = [2, 1], strides = [1, 1]} : vector<2x4xf32> to vector<2x1xf32>
    %192 = vector.broadcast %191 : vector<2x1xf32> to vector<2x8xf32>
    %193 = arith.mulf %192, %6 : vector<2x8xf32>
    %194 = arith.addf %190, %193 : vector<2x8xf32>
    %195 = vector.extract_strided_slice %186 {offsets = [0, 2], sizes = [2, 1], strides = [1, 1]} : vector<2x4xf32> to vector<2x1xf32>
    %196 = vector.broadcast %195 : vector<2x1xf32> to vector<2x8xf32>
    %197 = arith.mulf %196, %9 : vector<2x8xf32>
    %198 = arith.addf %194, %197 : vector<2x8xf32>
    %199 = vector.extract_strided_slice %186 {offsets = [0, 3], sizes = [2, 1], strides = [1, 1]} : vector<2x4xf32> to vector<2x1xf32>
    %200 = vector.broadcast %199 : vector<2x1xf32> to vector<2x8xf32>
    %201 = arith.mulf %200, %12 : vector<2x8xf32>
    %202 = arith.addf %198, %201 : vector<2x8xf32>
    %203 = vector.extract_strided_slice %94 {offsets = [0, 0], sizes = [2, 1], strides = [1, 1]} : vector<2x2xf32> to vector<2x1xf32>
    %204 = vector.broadcast %203 : vector<2x1xf32> to vector<2x8xf32>
    %205 = arith.mulf %204, %16 : vector<2x8xf32>
    %206 = vector.extract_strided_slice %94 {offsets = [0, 1], sizes = [2, 1], strides = [1, 1]} : vector<2x2xf32> to vector<2x1xf32>
    %207 = vector.broadcast %206 : vector<2x1xf32> to vector<2x8xf32>
    %208 = arith.mulf %207, %19 : vector<2x8xf32>
    %209 = arith.addf %205, %208 : vector<2x8xf32>
    %210 = arith.addf %202, %209 : vector<2x8xf32>
    %211 = arith.addf %210, %22 : vector<2x8xf32>
    %212 = vector.extract_strided_slice %211 {offsets = [0, 0], sizes = [2, 6], strides = [1, 1]} : vector<2x8xf32> to vector<2x6xf32>
    %213 = arith.negf %212 : vector<2x6xf32>
    %214 = math.exp %213 : vector<2x6xf32>
    %cst_18 = arith.constant 1.000000e+00 : f32
    %215 = vector.broadcast %cst_18 : f32 to vector<2x6xf32>
    %216 = arith.addf %215, %214 : vector<2x6xf32>
    %217 = arith.divf %215, %216 : vector<2x6xf32>
    %218 = vector.extract_strided_slice %211 {offsets = [0, 6], sizes = [2, 2], strides = [1, 1]} : vector<2x8xf32> to vector<2x2xf32>
    %219 = math.tanh %218 : vector<2x2xf32>
    %220 = vector.extract_strided_slice %217 {offsets = [0, 0], sizes = [2, 2], strides = [1, 1]} : vector<2x6xf32> to vector<2x2xf32>
    %221 = vector.extract_strided_slice %217 {offsets = [0, 2], sizes = [2, 2], strides = [1, 1]} : vector<2x6xf32> to vector<2x2xf32>
    %222 = vector.extract_strided_slice %217 {offsets = [0, 4], sizes = [2, 2], strides = [1, 1]} : vector<2x6xf32> to vector<2x2xf32>
    %223 = arith.mulf %221, %92 : vector<2x2xf32>
    %224 = arith.mulf %220, %219 : vector<2x2xf32>
    %225 = arith.addf %223, %224 : vector<2x2xf32>
    %226 = math.tanh %225 : vector<2x2xf32>
    %227 = arith.mulf %222, %226 : vector<2x2xf32>
    %228 = vector.extract_strided_slice %227 {offsets = [0, 0], sizes = [2, 1], strides = [1, 1]} : vector<2x2xf32> to vector<2x1xf32>
    %229 = vector.broadcast %228 : vector<2x1xf32> to vector<2x8xf32>
    %230 = arith.mulf %229, %26 : vector<2x8xf32>
    %231 = vector.extract_strided_slice %227 {offsets = [0, 1], sizes = [2, 1], strides = [1, 1]} : vector<2x2xf32> to vector<2x1xf32>
    %232 = vector.broadcast %231 : vector<2x1xf32> to vector<2x8xf32>
    %233 = arith.mulf %232, %29 : vector<2x8xf32>
    %234 = arith.addf %230, %233 : vector<2x8xf32>
    %235 = vector.extract_strided_slice %126 {offsets = [0, 0], sizes = [2, 1], strides = [1, 1]} : vector<2x2xf32> to vector<2x1xf32>
    %236 = vector.broadcast %235 : vector<2x1xf32> to vector<2x8xf32>
    %237 = arith.mulf %236, %33 : vector<2x8xf32>
    %238 = vector.extract_strided_slice %126 {offsets = [0, 1], sizes = [2, 1], strides = [1, 1]} : vector<2x2xf32> to vector<2x1xf32>
    %239 = vector.broadcast %238 : vector<2x1xf32> to vector<2x8xf32>
    %240 = arith.mulf %239, %36 : vector<2x8xf32>
    %241 = arith.addf %237, %240 : vector<2x8xf32>
    %242 = arith.addf %234, %241 : vector<2x8xf32>
    %243 = arith.addf %242, %39 : vector<2x8xf32>
    %244 = vector.extract_strided_slice %243 {offsets = [0, 0], sizes = [2, 6], strides = [1, 1]} : vector<2x8xf32> to vector<2x6xf32>
    %245 = arith.negf %244 : vector<2x6xf32>
    %246 = math.exp %245 : vector<2x6xf32>
    %cst_19 = arith.constant 1.000000e+00 : f32
    %247 = vector.broadcast %cst_19 : f32 to vector<2x6xf32>
    %248 = arith.addf %247, %246 : vector<2x6xf32>
    %249 = arith.divf %247, %248 : vector<2x6xf32>
    %250 = vector.extract_strided_slice %243 {offsets = [0, 6], sizes = [2, 2], strides = [1, 1]} : vector<2x8xf32> to vector<2x2xf32>
    %251 = math.tanh %250 : vector<2x2xf32>
    %252 = vector.extract_strided_slice %249 {offsets = [0, 0], sizes = [2, 2], strides = [1, 1]} : vector<2x6xf32> to vector<2x2xf32>
    %253 = vector.extract_strided_slice %249 {offsets = [0, 2], sizes = [2, 2], strides = [1, 1]} : vector<2x6xf32> to vector<2x2xf32>
    %254 = vector.extract_strided_slice %249 {offsets = [0, 4], sizes = [2, 2], strides = [1, 1]} : vector<2x6xf32> to vector<2x2xf32>
    %255 = arith.mulf %253, %124 : vector<2x2xf32>
    %256 = arith.mulf %252, %251 : vector<2x2xf32>
    %257 = arith.addf %255, %256 : vector<2x2xf32>
    %258 = math.tanh %257 : vector<2x2xf32>
    %259 = arith.mulf %254, %258 : vector<2x2xf32>
    %260 = vector.extract_strided_slice %259 {offsets = [0, 0], sizes = [2, 1], strides = [1, 1]} : vector<2x2xf32> to vector<2x1xf32>
    %261 = vector.broadcast %260 : vector<2x1xf32> to vector<2x8xf32>
    %262 = arith.mulf %261, %43 : vector<2x8xf32>
    %263 = vector.extract_strided_slice %259 {offsets = [0, 1], sizes = [2, 1], strides = [1, 1]} : vector<2x2xf32> to vector<2x1xf32>
    %264 = vector.broadcast %263 : vector<2x1xf32> to vector<2x8xf32>
    %265 = arith.mulf %264, %46 : vector<2x8xf32>
    %266 = arith.addf %262, %265 : vector<2x8xf32>
    %267 = arith.addf %266, %49 : vector<2x8xf32>
    %cst_20 = arith.constant 2.000000e+01 : f32
    %268 = vector.broadcast %cst_20 : f32 to vector<2x8xf32>
    %269 = arith.cmpf ogt, %267, %268 : vector<2x8xf32>
    %cst_21 = arith.constant 2.000000e+01 : f32
    %270 = vector.broadcast %cst_21 : f32 to vector<2x8xf32>
    %271 = arith.minimumf %267, %270 : vector<2x8xf32>
    %272 = math.exp %271 : vector<2x8xf32>
    %273 = math.log1p %272 : vector<2x8xf32>
    %274 = arith.select %269, %267, %273 : vector<2x8xi1>, vector<2x8xf32>
    %275 = vector.extract_strided_slice %274 {offsets = [0, 4], sizes = [2, 1], strides = [1, 1]} : vector<2x8xf32> to vector<2x1xf32>
    %276 = vector.extract_strided_slice %274 {offsets = [0, 5], sizes = [2, 1], strides = [1, 1]} : vector<2x8xf32> to vector<2x1xf32>
    %277 = vector.extract_strided_slice %274 {offsets = [0, 6], sizes = [2, 1], strides = [1, 1]} : vector<2x8xf32> to vector<2x1xf32>
    %278 = vector.extract_strided_slice %267 {offsets = [0, 7], sizes = [2, 1], strides = [1, 1]} : vector<2x8xf32> to vector<2x1xf32>
    %279 = arith.addf %175, %167 : vector<2x1xf32>
    %280 = arith.addf %279, %278 : vector<2x1xf32>
    %281 = arith.subf %187, %280 : vector<2x1xf32>
    %282 = arith.addf %179, %181 : vector<2x1xf32>
    %283 = arith.addf %181, %183 : vector<2x1xf32>
    %284 = arith.addf %282, %283 : vector<2x1xf32>
    %285 = arith.mulf %277, %277 : vector<2x1xf32>
    %286 = arith.addf %284, %285 : vector<2x1xf32>
    %287 = tpu.reciprocal %286 {approx = true} : vector<2x1xf32> -> vector<2x1xf32>
    %288 = arith.mulf %282, %287 : vector<2x1xf32>
    %289 = arith.mulf %283, %287 : vector<2x1xf32>
    %290 = arith.mulf %288, %281 : vector<2x1xf32>
    %291 = arith.addf %175, %290 : vector<2x1xf32>
    %292 = arith.mulf %289, %281 : vector<2x1xf32>
    %293 = arith.addf %167, %292 : vector<2x1xf32>
    %294 = arith.mulf %288, %282 : vector<2x1xf32>
    %295 = arith.subf %179, %294 : vector<2x1xf32>
    %296 = arith.mulf %288, %283 : vector<2x1xf32>
    %297 = arith.subf %181, %296 : vector<2x1xf32>
    %298 = arith.mulf %289, %283 : vector<2x1xf32>
    %299 = arith.subf %183, %298 : vector<2x1xf32>
    %300 = arith.addf %297, %299 : vector<2x1xf32>
    %301 = arith.addf %291, %293 : vector<2x1xf32>
    %302 = arith.addf %295, %297 : vector<2x1xf32>
    %303 = arith.addf %302, %300 : vector<2x1xf32>
    %304 = arith.mulf %275, %275 : vector<2x1xf32>
    %305 = arith.addf %303, %304 : vector<2x1xf32>
    %306 = arith.mulf %275, %276 : vector<2x1xf32>
    %307 = arith.addf %300, %306 : vector<2x1xf32>
    %308 = arith.mulf %276, %276 : vector<2x1xf32>
    %309 = arith.addf %299, %308 : vector<2x1xf32>
    %c2 = arith.constant 2 : index
    %c0_22 = arith.constant 0 : index
    %c0_23 = arith.constant 0 : index
    %310 = vector.load %arg0[%c2, %c0_22, %c0_23] : memref<12x2x5xf32, #tpu.memory_space<vmem>>, vector<1x2x5xf32>
    %311 = vector.shape_cast %310 : vector<1x2x5xf32> to vector<2x5xf32>
    %312 = vector.extract_strided_slice %311 {offsets = [0, 0], sizes = [2, 4], strides = [1, 1]} : vector<2x5xf32> to vector<2x4xf32>
    %313 = vector.extract_strided_slice %311 {offsets = [0, 4], sizes = [2, 1], strides = [1, 1]} : vector<2x5xf32> to vector<2x1xf32>
    %314 = vector.extract_strided_slice %312 {offsets = [0, 0], sizes = [2, 1], strides = [1, 1]} : vector<2x4xf32> to vector<2x1xf32>
    %315 = vector.broadcast %314 : vector<2x1xf32> to vector<2x8xf32>
    %316 = arith.mulf %315, %3 : vector<2x8xf32>
    %317 = vector.extract_strided_slice %312 {offsets = [0, 1], sizes = [2, 1], strides = [1, 1]} : vector<2x4xf32> to vector<2x1xf32>
    %318 = vector.broadcast %317 : vector<2x1xf32> to vector<2x8xf32>
    %319 = arith.mulf %318, %6 : vector<2x8xf32>
    %320 = arith.addf %316, %319 : vector<2x8xf32>
    %321 = vector.extract_strided_slice %312 {offsets = [0, 2], sizes = [2, 1], strides = [1, 1]} : vector<2x4xf32> to vector<2x1xf32>
    %322 = vector.broadcast %321 : vector<2x1xf32> to vector<2x8xf32>
    %323 = arith.mulf %322, %9 : vector<2x8xf32>
    %324 = arith.addf %320, %323 : vector<2x8xf32>
    %325 = vector.extract_strided_slice %312 {offsets = [0, 3], sizes = [2, 1], strides = [1, 1]} : vector<2x4xf32> to vector<2x1xf32>
    %326 = vector.broadcast %325 : vector<2x1xf32> to vector<2x8xf32>
    %327 = arith.mulf %326, %12 : vector<2x8xf32>
    %328 = arith.addf %324, %327 : vector<2x8xf32>
    %329 = vector.extract_strided_slice %227 {offsets = [0, 0], sizes = [2, 1], strides = [1, 1]} : vector<2x2xf32> to vector<2x1xf32>
    %330 = vector.broadcast %329 : vector<2x1xf32> to vector<2x8xf32>
    %331 = arith.mulf %330, %16 : vector<2x8xf32>
    %332 = vector.extract_strided_slice %227 {offsets = [0, 1], sizes = [2, 1], strides = [1, 1]} : vector<2x2xf32> to vector<2x1xf32>
    %333 = vector.broadcast %332 : vector<2x1xf32> to vector<2x8xf32>
    %334 = arith.mulf %333, %19 : vector<2x8xf32>
    %335 = arith.addf %331, %334 : vector<2x8xf32>
    %336 = arith.addf %328, %335 : vector<2x8xf32>
    %337 = arith.addf %336, %22 : vector<2x8xf32>
    %338 = vector.extract_strided_slice %337 {offsets = [0, 0], sizes = [2, 6], strides = [1, 1]} : vector<2x8xf32> to vector<2x6xf32>
    %339 = arith.negf %338 : vector<2x6xf32>
    %340 = math.exp %339 : vector<2x6xf32>
    %cst_24 = arith.constant 1.000000e+00 : f32
    %341 = vector.broadcast %cst_24 : f32 to vector<2x6xf32>
    %342 = arith.addf %341, %340 : vector<2x6xf32>
    %343 = arith.divf %341, %342 : vector<2x6xf32>
    %344 = vector.extract_strided_slice %337 {offsets = [0, 6], sizes = [2, 2], strides = [1, 1]} : vector<2x8xf32> to vector<2x2xf32>
    %345 = math.tanh %344 : vector<2x2xf32>
    %346 = vector.extract_strided_slice %343 {offsets = [0, 0], sizes = [2, 2], strides = [1, 1]} : vector<2x6xf32> to vector<2x2xf32>
    %347 = vector.extract_strided_slice %343 {offsets = [0, 2], sizes = [2, 2], strides = [1, 1]} : vector<2x6xf32> to vector<2x2xf32>
    %348 = vector.extract_strided_slice %343 {offsets = [0, 4], sizes = [2, 2], strides = [1, 1]} : vector<2x6xf32> to vector<2x2xf32>
    %349 = arith.mulf %347, %225 : vector<2x2xf32>
    %350 = arith.mulf %346, %345 : vector<2x2xf32>
    %351 = arith.addf %349, %350 : vector<2x2xf32>
    %352 = math.tanh %351 : vector<2x2xf32>
    %353 = arith.mulf %348, %352 : vector<2x2xf32>
    %354 = vector.extract_strided_slice %353 {offsets = [0, 0], sizes = [2, 1], strides = [1, 1]} : vector<2x2xf32> to vector<2x1xf32>
    %355 = vector.broadcast %354 : vector<2x1xf32> to vector<2x8xf32>
    %356 = arith.mulf %355, %26 : vector<2x8xf32>
    %357 = vector.extract_strided_slice %353 {offsets = [0, 1], sizes = [2, 1], strides = [1, 1]} : vector<2x2xf32> to vector<2x1xf32>
    %358 = vector.broadcast %357 : vector<2x1xf32> to vector<2x8xf32>
    %359 = arith.mulf %358, %29 : vector<2x8xf32>
    %360 = arith.addf %356, %359 : vector<2x8xf32>
    %361 = vector.extract_strided_slice %259 {offsets = [0, 0], sizes = [2, 1], strides = [1, 1]} : vector<2x2xf32> to vector<2x1xf32>
    %362 = vector.broadcast %361 : vector<2x1xf32> to vector<2x8xf32>
    %363 = arith.mulf %362, %33 : vector<2x8xf32>
    %364 = vector.extract_strided_slice %259 {offsets = [0, 1], sizes = [2, 1], strides = [1, 1]} : vector<2x2xf32> to vector<2x1xf32>
    %365 = vector.broadcast %364 : vector<2x1xf32> to vector<2x8xf32>
    %366 = arith.mulf %365, %36 : vector<2x8xf32>
    %367 = arith.addf %363, %366 : vector<2x8xf32>
    %368 = arith.addf %360, %367 : vector<2x8xf32>
    %369 = arith.addf %368, %39 : vector<2x8xf32>
    %370 = vector.extract_strided_slice %369 {offsets = [0, 0], sizes = [2, 6], strides = [1, 1]} : vector<2x8xf32> to vector<2x6xf32>
    %371 = arith.negf %370 : vector<2x6xf32>
    %372 = math.exp %371 : vector<2x6xf32>
    %cst_25 = arith.constant 1.000000e+00 : f32
    %373 = vector.broadcast %cst_25 : f32 to vector<2x6xf32>
    %374 = arith.addf %373, %372 : vector<2x6xf32>
    %375 = arith.divf %373, %374 : vector<2x6xf32>
    %376 = vector.extract_strided_slice %369 {offsets = [0, 6], sizes = [2, 2], strides = [1, 1]} : vector<2x8xf32> to vector<2x2xf32>
    %377 = math.tanh %376 : vector<2x2xf32>
    %378 = vector.extract_strided_slice %375 {offsets = [0, 0], sizes = [2, 2], strides = [1, 1]} : vector<2x6xf32> to vector<2x2xf32>
    %379 = vector.extract_strided_slice %375 {offsets = [0, 2], sizes = [2, 2], strides = [1, 1]} : vector<2x6xf32> to vector<2x2xf32>
    %380 = vector.extract_strided_slice %375 {offsets = [0, 4], sizes = [2, 2], strides = [1, 1]} : vector<2x6xf32> to vector<2x2xf32>
    %381 = arith.mulf %379, %257 : vector<2x2xf32>
    %382 = arith.mulf %378, %377 : vector<2x2xf32>
    %383 = arith.addf %381, %382 : vector<2x2xf32>
    %384 = math.tanh %383 : vector<2x2xf32>
    %385 = arith.mulf %380, %384 : vector<2x2xf32>
    %386 = vector.extract_strided_slice %385 {offsets = [0, 0], sizes = [2, 1], strides = [1, 1]} : vector<2x2xf32> to vector<2x1xf32>
    %387 = vector.broadcast %386 : vector<2x1xf32> to vector<2x8xf32>
    %388 = arith.mulf %387, %43 : vector<2x8xf32>
    %389 = vector.extract_strided_slice %385 {offsets = [0, 1], sizes = [2, 1], strides = [1, 1]} : vector<2x2xf32> to vector<2x1xf32>
    %390 = vector.broadcast %389 : vector<2x1xf32> to vector<2x8xf32>
    %391 = arith.mulf %390, %46 : vector<2x8xf32>
    %392 = arith.addf %388, %391 : vector<2x8xf32>
    %393 = arith.addf %392, %49 : vector<2x8xf32>
    %cst_26 = arith.constant 2.000000e+01 : f32
    %394 = vector.broadcast %cst_26 : f32 to vector<2x8xf32>
    %395 = arith.cmpf ogt, %393, %394 : vector<2x8xf32>
    %cst_27 = arith.constant 2.000000e+01 : f32
    %396 = vector.broadcast %cst_27 : f32 to vector<2x8xf32>
    %397 = arith.minimumf %393, %396 : vector<2x8xf32>
    %398 = math.exp %397 : vector<2x8xf32>
    %399 = math.log1p %398 : vector<2x8xf32>
    %400 = arith.select %395, %393, %399 : vector<2x8xi1>, vector<2x8xf32>
    %401 = vector.extract_strided_slice %400 {offsets = [0, 4], sizes = [2, 1], strides = [1, 1]} : vector<2x8xf32> to vector<2x1xf32>
    %402 = vector.extract_strided_slice %400 {offsets = [0, 5], sizes = [2, 1], strides = [1, 1]} : vector<2x8xf32> to vector<2x1xf32>
    %403 = vector.extract_strided_slice %400 {offsets = [0, 6], sizes = [2, 1], strides = [1, 1]} : vector<2x8xf32> to vector<2x1xf32>
    %404 = vector.extract_strided_slice %393 {offsets = [0, 7], sizes = [2, 1], strides = [1, 1]} : vector<2x8xf32> to vector<2x1xf32>
    %405 = arith.addf %301, %293 : vector<2x1xf32>
    %406 = arith.addf %405, %404 : vector<2x1xf32>
    %407 = arith.subf %313, %406 : vector<2x1xf32>
    %408 = arith.addf %305, %307 : vector<2x1xf32>
    %409 = arith.addf %307, %309 : vector<2x1xf32>
    %410 = arith.addf %408, %409 : vector<2x1xf32>
    %411 = arith.mulf %403, %403 : vector<2x1xf32>
    %412 = arith.addf %410, %411 : vector<2x1xf32>
    %413 = tpu.reciprocal %412 {approx = true} : vector<2x1xf32> -> vector<2x1xf32>
    %414 = arith.mulf %408, %413 : vector<2x1xf32>
    %415 = arith.mulf %409, %413 : vector<2x1xf32>
    %416 = arith.mulf %414, %407 : vector<2x1xf32>
    %417 = arith.addf %301, %416 : vector<2x1xf32>
    %418 = arith.mulf %415, %407 : vector<2x1xf32>
    %419 = arith.addf %293, %418 : vector<2x1xf32>
    %420 = arith.mulf %414, %408 : vector<2x1xf32>
    %421 = arith.subf %305, %420 : vector<2x1xf32>
    %422 = arith.mulf %414, %409 : vector<2x1xf32>
    %423 = arith.subf %307, %422 : vector<2x1xf32>
    %424 = arith.mulf %415, %409 : vector<2x1xf32>
    %425 = arith.subf %309, %424 : vector<2x1xf32>
    %426 = arith.addf %423, %425 : vector<2x1xf32>
    %427 = arith.addf %417, %419 : vector<2x1xf32>
    %428 = arith.addf %421, %423 : vector<2x1xf32>
    %429 = arith.addf %428, %426 : vector<2x1xf32>
    %430 = arith.mulf %401, %401 : vector<2x1xf32>
    %431 = arith.addf %429, %430 : vector<2x1xf32>
    %432 = arith.mulf %401, %402 : vector<2x1xf32>
    %433 = arith.addf %426, %432 : vector<2x1xf32>
    %434 = arith.mulf %402, %402 : vector<2x1xf32>
    %435 = arith.addf %425, %434 : vector<2x1xf32>
    %c3 = arith.constant 3 : index
    %c0_28 = arith.constant 0 : index
    %c0_29 = arith.constant 0 : index
    %436 = vector.load %arg0[%c3, %c0_28, %c0_29] : memref<12x2x5xf32, #tpu.memory_space<vmem>>, vector<1x2x5xf32>
    %437 = vector.shape_cast %436 : vector<1x2x5xf32> to vector<2x5xf32>
    %438 = vector.extract_strided_slice %437 {offsets = [0, 0], sizes = [2, 4], strides = [1, 1]} : vector<2x5xf32> to vector<2x4xf32>
    %439 = vector.extract_strided_slice %437 {offsets = [0, 4], sizes = [2, 1], strides = [1, 1]} : vector<2x5xf32> to vector<2x1xf32>
    %440 = vector.extract_strided_slice %438 {offsets = [0, 0], sizes = [2, 1], strides = [1, 1]} : vector<2x4xf32> to vector<2x1xf32>
    %441 = vector.broadcast %440 : vector<2x1xf32> to vector<2x8xf32>
    %442 = arith.mulf %441, %3 : vector<2x8xf32>
    %443 = vector.extract_strided_slice %438 {offsets = [0, 1], sizes = [2, 1], strides = [1, 1]} : vector<2x4xf32> to vector<2x1xf32>
    %444 = vector.broadcast %443 : vector<2x1xf32> to vector<2x8xf32>
    %445 = arith.mulf %444, %6 : vector<2x8xf32>
    %446 = arith.addf %442, %445 : vector<2x8xf32>
    %447 = vector.extract_strided_slice %438 {offsets = [0, 2], sizes = [2, 1], strides = [1, 1]} : vector<2x4xf32> to vector<2x1xf32>
    %448 = vector.broadcast %447 : vector<2x1xf32> to vector<2x8xf32>
    %449 = arith.mulf %448, %9 : vector<2x8xf32>
    %450 = arith.addf %446, %449 : vector<2x8xf32>
    %451 = vector.extract_strided_slice %438 {offsets = [0, 3], sizes = [2, 1], strides = [1, 1]} : vector<2x4xf32> to vector<2x1xf32>
    %452 = vector.broadcast %451 : vector<2x1xf32> to vector<2x8xf32>
    %453 = arith.mulf %452, %12 : vector<2x8xf32>
    %454 = arith.addf %450, %453 : vector<2x8xf32>
    %455 = vector.extract_strided_slice %353 {offsets = [0, 0], sizes = [2, 1], strides = [1, 1]} : vector<2x2xf32> to vector<2x1xf32>
    %456 = vector.broadcast %455 : vector<2x1xf32> to vector<2x8xf32>
    %457 = arith.mulf %456, %16 : vector<2x8xf32>
    %458 = vector.extract_strided_slice %353 {offsets = [0, 1], sizes = [2, 1], strides = [1, 1]} : vector<2x2xf32> to vector<2x1xf32>
    %459 = vector.broadcast %458 : vector<2x1xf32> to vector<2x8xf32>
    %460 = arith.mulf %459, %19 : vector<2x8xf32>
    %461 = arith.addf %457, %460 : vector<2x8xf32>
    %462 = arith.addf %454, %461 : vector<2x8xf32>
    %463 = arith.addf %462, %22 : vector<2x8xf32>
    %464 = vector.extract_strided_slice %463 {offsets = [0, 0], sizes = [2, 6], strides = [1, 1]} : vector<2x8xf32> to vector<2x6xf32>
    %465 = arith.negf %464 : vector<2x6xf32>
    %466 = math.exp %465 : vector<2x6xf32>
    %cst_30 = arith.constant 1.000000e+00 : f32
    %467 = vector.broadcast %cst_30 : f32 to vector<2x6xf32>
    %468 = arith.addf %467, %466 : vector<2x6xf32>
    %469 = arith.divf %467, %468 : vector<2x6xf32>
    %470 = vector.extract_strided_slice %463 {offsets = [0, 6], sizes = [2, 2], strides = [1, 1]} : vector<2x8xf32> to vector<2x2xf32>
    %471 = math.tanh %470 : vector<2x2xf32>
    %472 = vector.extract_strided_slice %469 {offsets = [0, 0], sizes = [2, 2], strides = [1, 1]} : vector<2x6xf32> to vector<2x2xf32>
    %473 = vector.extract_strided_slice %469 {offsets = [0, 2], sizes = [2, 2], strides = [1, 1]} : vector<2x6xf32> to vector<2x2xf32>
    %474 = vector.extract_strided_slice %469 {offsets = [0, 4], sizes = [2, 2], strides = [1, 1]} : vector<2x6xf32> to vector<2x2xf32>
    %475 = arith.mulf %473, %351 : vector<2x2xf32>
    %476 = arith.mulf %472, %471 : vector<2x2xf32>
    %477 = arith.addf %475, %476 : vector<2x2xf32>
    %478 = math.tanh %477 : vector<2x2xf32>
    %479 = arith.mulf %474, %478 : vector<2x2xf32>
    %480 = vector.extract_strided_slice %479 {offsets = [0, 0], sizes = [2, 1], strides = [1, 1]} : vector<2x2xf32> to vector<2x1xf32>
    %481 = vector.broadcast %480 : vector<2x1xf32> to vector<2x8xf32>
    %482 = arith.mulf %481, %26 : vector<2x8xf32>
    %483 = vector.extract_strided_slice %479 {offsets = [0, 1], sizes = [2, 1], strides = [1, 1]} : vector<2x2xf32> to vector<2x1xf32>
    %484 = vector.broadcast %483 : vector<2x1xf32> to vector<2x8xf32>
    %485 = arith.mulf %484, %29 : vector<2x8xf32>
    %486 = arith.addf %482, %485 : vector<2x8xf32>
    %487 = vector.extract_strided_slice %385 {offsets = [0, 0], sizes = [2, 1], strides = [1, 1]} : vector<2x2xf32> to vector<2x1xf32>
    %488 = vector.broadcast %487 : vector<2x1xf32> to vector<2x8xf32>
    %489 = arith.mulf %488, %33 : vector<2x8xf32>
    %490 = vector.extract_strided_slice %385 {offsets = [0, 1], sizes = [2, 1], strides = [1, 1]} : vector<2x2xf32> to vector<2x1xf32>
    %491 = vector.broadcast %490 : vector<2x1xf32> to vector<2x8xf32>
    %492 = arith.mulf %491, %36 : vector<2x8xf32>
    %493 = arith.addf %489, %492 : vector<2x8xf32>
    %494 = arith.addf %486, %493 : vector<2x8xf32>
    %495 = arith.addf %494, %39 : vector<2x8xf32>
    %496 = vector.extract_strided_slice %495 {offsets = [0, 0], sizes = [2, 6], strides = [1, 1]} : vector<2x8xf32> to vector<2x6xf32>
    %497 = arith.negf %496 : vector<2x6xf32>
    %498 = math.exp %497 : vector<2x6xf32>
    %cst_31 = arith.constant 1.000000e+00 : f32
    %499 = vector.broadcast %cst_31 : f32 to vector<2x6xf32>
    %500 = arith.addf %499, %498 : vector<2x6xf32>
    %501 = arith.divf %499, %500 : vector<2x6xf32>
    %502 = vector.extract_strided_slice %495 {offsets = [0, 6], sizes = [2, 2], strides = [1, 1]} : vector<2x8xf32> to vector<2x2xf32>
    %503 = math.tanh %502 : vector<2x2xf32>
    %504 = vector.extract_strided_slice %501 {offsets = [0, 0], sizes = [2, 2], strides = [1, 1]} : vector<2x6xf32> to vector<2x2xf32>
    %505 = vector.extract_strided_slice %501 {offsets = [0, 2], sizes = [2, 2], strides = [1, 1]} : vector<2x6xf32> to vector<2x2xf32>
    %506 = vector.extract_strided_slice %501 {offsets = [0, 4], sizes = [2, 2], strides = [1, 1]} : vector<2x6xf32> to vector<2x2xf32>
    %507 = arith.mulf %505, %383 : vector<2x2xf32>
    %508 = arith.mulf %504, %503 : vector<2x2xf32>
    %509 = arith.addf %507, %508 : vector<2x2xf32>
    %510 = math.tanh %509 : vector<2x2xf32>
    %511 = arith.mulf %506, %510 : vector<2x2xf32>
    %512 = vector.extract_strided_slice %511 {offsets = [0, 0], sizes = [2, 1], strides = [1, 1]} : vector<2x2xf32> to vector<2x1xf32>
    %513 = vector.broadcast %512 : vector<2x1xf32> to vector<2x8xf32>
    %514 = arith.mulf %513, %43 : vector<2x8xf32>
    %515 = vector.extract_strided_slice %511 {offsets = [0, 1], sizes = [2, 1], strides = [1, 1]} : vector<2x2xf32> to vector<2x1xf32>
    %516 = vector.broadcast %515 : vector<2x1xf32> to vector<2x8xf32>
    %517 = arith.mulf %516, %46 : vector<2x8xf32>
    %518 = arith.addf %514, %517 : vector<2x8xf32>
    %519 = arith.addf %518, %49 : vector<2x8xf32>
    %cst_32 = arith.constant 2.000000e+01 : f32
    %520 = vector.broadcast %cst_32 : f32 to vector<2x8xf32>
    %521 = arith.cmpf ogt, %519, %520 : vector<2x8xf32>
    %cst_33 = arith.constant 2.000000e+01 : f32
    %522 = vector.broadcast %cst_33 : f32 to vector<2x8xf32>
    %523 = arith.minimumf %519, %522 : vector<2x8xf32>
    %524 = math.exp %523 : vector<2x8xf32>
    %525 = math.log1p %524 : vector<2x8xf32>
    %526 = arith.select %521, %519, %525 : vector<2x8xi1>, vector<2x8xf32>
    %527 = vector.extract_strided_slice %526 {offsets = [0, 4], sizes = [2, 1], strides = [1, 1]} : vector<2x8xf32> to vector<2x1xf32>
    %528 = vector.extract_strided_slice %526 {offsets = [0, 5], sizes = [2, 1], strides = [1, 1]} : vector<2x8xf32> to vector<2x1xf32>
    %529 = vector.extract_strided_slice %526 {offsets = [0, 6], sizes = [2, 1], strides = [1, 1]} : vector<2x8xf32> to vector<2x1xf32>
    %530 = vector.extract_strided_slice %519 {offsets = [0, 7], sizes = [2, 1], strides = [1, 1]} : vector<2x8xf32> to vector<2x1xf32>
    %531 = arith.addf %427, %419 : vector<2x1xf32>
    %532 = arith.addf %531, %530 : vector<2x1xf32>
    %533 = arith.subf %439, %532 : vector<2x1xf32>
    %534 = arith.addf %431, %433 : vector<2x1xf32>
    %535 = arith.addf %433, %435 : vector<2x1xf32>
    %536 = arith.addf %534, %535 : vector<2x1xf32>
    %537 = arith.mulf %529, %529 : vector<2x1xf32>
    %538 = arith.addf %536, %537 : vector<2x1xf32>
    %539 = tpu.reciprocal %538 {approx = true} : vector<2x1xf32> -> vector<2x1xf32>
    %540 = arith.mulf %534, %539 : vector<2x1xf32>
    %541 = arith.mulf %535, %539 : vector<2x1xf32>
    %542 = arith.mulf %540, %533 : vector<2x1xf32>
    %543 = arith.addf %427, %542 : vector<2x1xf32>
    %544 = arith.mulf %541, %533 : vector<2x1xf32>
    %545 = arith.addf %419, %544 : vector<2x1xf32>
    %546 = arith.mulf %540, %534 : vector<2x1xf32>
    %547 = arith.subf %431, %546 : vector<2x1xf32>
    %548 = arith.mulf %540, %535 : vector<2x1xf32>
    %549 = arith.subf %433, %548 : vector<2x1xf32>
    %550 = arith.mulf %541, %535 : vector<2x1xf32>
    %551 = arith.subf %435, %550 : vector<2x1xf32>
    %552 = arith.addf %549, %551 : vector<2x1xf32>
    %553 = arith.addf %543, %545 : vector<2x1xf32>
    %554 = arith.addf %547, %549 : vector<2x1xf32>
    %555 = arith.addf %554, %552 : vector<2x1xf32>
    %556 = arith.mulf %527, %527 : vector<2x1xf32>
    %557 = arith.addf %555, %556 : vector<2x1xf32>
    %558 = arith.mulf %527, %528 : vector<2x1xf32>
    %559 = arith.addf %552, %558 : vector<2x1xf32>
    %560 = arith.mulf %528, %528 : vector<2x1xf32>
    %561 = arith.addf %551, %560 : vector<2x1xf32>
    %c4 = arith.constant 4 : index
    %c0_34 = arith.constant 0 : index
    %c0_35 = arith.constant 0 : index
    %562 = vector.load %arg0[%c4, %c0_34, %c0_35] : memref<12x2x5xf32, #tpu.memory_space<vmem>>, vector<1x2x5xf32>
    %563 = vector.shape_cast %562 : vector<1x2x5xf32> to vector<2x5xf32>
    %564 = vector.extract_strided_slice %563 {offsets = [0, 0], sizes = [2, 4], strides = [1, 1]} : vector<2x5xf32> to vector<2x4xf32>
    %565 = vector.extract_strided_slice %563 {offsets = [0, 4], sizes = [2, 1], strides = [1, 1]} : vector<2x5xf32> to vector<2x1xf32>
    %566 = vector.extract_strided_slice %564 {offsets = [0, 0], sizes = [2, 1], strides = [1, 1]} : vector<2x4xf32> to vector<2x1xf32>
    %567 = vector.broadcast %566 : vector<2x1xf32> to vector<2x8xf32>
    %568 = arith.mulf %567, %3 : vector<2x8xf32>
    %569 = vector.extract_strided_slice %564 {offsets = [0, 1], sizes = [2, 1], strides = [1, 1]} : vector<2x4xf32> to vector<2x1xf32>
    %570 = vector.broadcast %569 : vector<2x1xf32> to vector<2x8xf32>
    %571 = arith.mulf %570, %6 : vector<2x8xf32>
    %572 = arith.addf %568, %571 : vector<2x8xf32>
    %573 = vector.extract_strided_slice %564 {offsets = [0, 2], sizes = [2, 1], strides = [1, 1]} : vector<2x4xf32> to vector<2x1xf32>
    %574 = vector.broadcast %573 : vector<2x1xf32> to vector<2x8xf32>
    %575 = arith.mulf %574, %9 : vector<2x8xf32>
    %576 = arith.addf %572, %575 : vector<2x8xf32>
    %577 = vector.extract_strided_slice %564 {offsets = [0, 3], sizes = [2, 1], strides = [1, 1]} : vector<2x4xf32> to vector<2x1xf32>
    %578 = vector.broadcast %577 : vector<2x1xf32> to vector<2x8xf32>
    %579 = arith.mulf %578, %12 : vector<2x8xf32>
    %580 = arith.addf %576, %579 : vector<2x8xf32>
    %581 = vector.extract_strided_slice %479 {offsets = [0, 0], sizes = [2, 1], strides = [1, 1]} : vector<2x2xf32> to vector<2x1xf32>
    %582 = vector.broadcast %581 : vector<2x1xf32> to vector<2x8xf32>
    %583 = arith.mulf %582, %16 : vector<2x8xf32>
    %584 = vector.extract_strided_slice %479 {offsets = [0, 1], sizes = [2, 1], strides = [1, 1]} : vector<2x2xf32> to vector<2x1xf32>
    %585 = vector.broadcast %584 : vector<2x1xf32> to vector<2x8xf32>
    %586 = arith.mulf %585, %19 : vector<2x8xf32>
    %587 = arith.addf %583, %586 : vector<2x8xf32>
    %588 = arith.addf %580, %587 : vector<2x8xf32>
    %589 = arith.addf %588, %22 : vector<2x8xf32>
    %590 = vector.extract_strided_slice %589 {offsets = [0, 0], sizes = [2, 6], strides = [1, 1]} : vector<2x8xf32> to vector<2x6xf32>
    %591 = arith.negf %590 : vector<2x6xf32>
    %592 = math.exp %591 : vector<2x6xf32>
    %cst_36 = arith.constant 1.000000e+00 : f32
    %593 = vector.broadcast %cst_36 : f32 to vector<2x6xf32>
    %594 = arith.addf %593, %592 : vector<2x6xf32>
    %595 = arith.divf %593, %594 : vector<2x6xf32>
    %596 = vector.extract_strided_slice %589 {offsets = [0, 6], sizes = [2, 2], strides = [1, 1]} : vector<2x8xf32> to vector<2x2xf32>
    %597 = math.tanh %596 : vector<2x2xf32>
    %598 = vector.extract_strided_slice %595 {offsets = [0, 0], sizes = [2, 2], strides = [1, 1]} : vector<2x6xf32> to vector<2x2xf32>
    %599 = vector.extract_strided_slice %595 {offsets = [0, 2], sizes = [2, 2], strides = [1, 1]} : vector<2x6xf32> to vector<2x2xf32>
    %600 = vector.extract_strided_slice %595 {offsets = [0, 4], sizes = [2, 2], strides = [1, 1]} : vector<2x6xf32> to vector<2x2xf32>
    %601 = arith.mulf %599, %477 : vector<2x2xf32>
    %602 = arith.mulf %598, %597 : vector<2x2xf32>
    %603 = arith.addf %601, %602 : vector<2x2xf32>
    %604 = math.tanh %603 : vector<2x2xf32>
    %605 = arith.mulf %600, %604 : vector<2x2xf32>
    %606 = vector.extract_strided_slice %605 {offsets = [0, 0], sizes = [2, 1], strides = [1, 1]} : vector<2x2xf32> to vector<2x1xf32>
    %607 = vector.broadcast %606 : vector<2x1xf32> to vector<2x8xf32>
    %608 = arith.mulf %607, %26 : vector<2x8xf32>
    %609 = vector.extract_strided_slice %605 {offsets = [0, 1], sizes = [2, 1], strides = [1, 1]} : vector<2x2xf32> to vector<2x1xf32>
    %610 = vector.broadcast %609 : vector<2x1xf32> to vector<2x8xf32>
    %611 = arith.mulf %610, %29 : vector<2x8xf32>
    %612 = arith.addf %608, %611 : vector<2x8xf32>
    %613 = vector.extract_strided_slice %511 {offsets = [0, 0], sizes = [2, 1], strides = [1, 1]} : vector<2x2xf32> to vector<2x1xf32>
    %614 = vector.broadcast %613 : vector<2x1xf32> to vector<2x8xf32>
    %615 = arith.mulf %614, %33 : vector<2x8xf32>
    %616 = vector.extract_strided_slice %511 {offsets = [0, 1], sizes = [2, 1], strides = [1, 1]} : vector<2x2xf32> to vector<2x1xf32>
    %617 = vector.broadcast %616 : vector<2x1xf32> to vector<2x8xf32>
    %618 = arith.mulf %617, %36 : vector<2x8xf32>
    %619 = arith.addf %615, %618 : vector<2x8xf32>
    %620 = arith.addf %612, %619 : vector<2x8xf32>
    %621 = arith.addf %620, %39 : vector<2x8xf32>
    %622 = vector.extract_strided_slice %621 {offsets = [0, 0], sizes = [2, 6], strides = [1, 1]} : vector<2x8xf32> to vector<2x6xf32>
    %623 = arith.negf %622 : vector<2x6xf32>
    %624 = math.exp %623 : vector<2x6xf32>
    %cst_37 = arith.constant 1.000000e+00 : f32
    %625 = vector.broadcast %cst_37 : f32 to vector<2x6xf32>
    %626 = arith.addf %625, %624 : vector<2x6xf32>
    %627 = arith.divf %625, %626 : vector<2x6xf32>
    %628 = vector.extract_strided_slice %621 {offsets = [0, 6], sizes = [2, 2], strides = [1, 1]} : vector<2x8xf32> to vector<2x2xf32>
    %629 = math.tanh %628 : vector<2x2xf32>
    %630 = vector.extract_strided_slice %627 {offsets = [0, 0], sizes = [2, 2], strides = [1, 1]} : vector<2x6xf32> to vector<2x2xf32>
    %631 = vector.extract_strided_slice %627 {offsets = [0, 2], sizes = [2, 2], strides = [1, 1]} : vector<2x6xf32> to vector<2x2xf32>
    %632 = vector.extract_strided_slice %627 {offsets = [0, 4], sizes = [2, 2], strides = [1, 1]} : vector<2x6xf32> to vector<2x2xf32>
    %633 = arith.mulf %631, %509 : vector<2x2xf32>
    %634 = arith.mulf %630, %629 : vector<2x2xf32>
    %635 = arith.addf %633, %634 : vector<2x2xf32>
    %636 = math.tanh %635 : vector<2x2xf32>
    %637 = arith.mulf %632, %636 : vector<2x2xf32>
    %638 = vector.extract_strided_slice %637 {offsets = [0, 0], sizes = [2, 1], strides = [1, 1]} : vector<2x2xf32> to vector<2x1xf32>
    %639 = vector.broadcast %638 : vector<2x1xf32> to vector<2x8xf32>
    %640 = arith.mulf %639, %43 : vector<2x8xf32>
    %641 = vector.extract_strided_slice %637 {offsets = [0, 1], sizes = [2, 1], strides = [1, 1]} : vector<2x2xf32> to vector<2x1xf32>
    %642 = vector.broadcast %641 : vector<2x1xf32> to vector<2x8xf32>
    %643 = arith.mulf %642, %46 : vector<2x8xf32>
    %644 = arith.addf %640, %643 : vector<2x8xf32>
    %645 = arith.addf %644, %49 : vector<2x8xf32>
    %cst_38 = arith.constant 2.000000e+01 : f32
    %646 = vector.broadcast %cst_38 : f32 to vector<2x8xf32>
    %647 = arith.cmpf ogt, %645, %646 : vector<2x8xf32>
    %cst_39 = arith.constant 2.000000e+01 : f32
    %648 = vector.broadcast %cst_39 : f32 to vector<2x8xf32>
    %649 = arith.minimumf %645, %648 : vector<2x8xf32>
    %650 = math.exp %649 : vector<2x8xf32>
    %651 = math.log1p %650 : vector<2x8xf32>
    %652 = arith.select %647, %645, %651 : vector<2x8xi1>, vector<2x8xf32>
    %653 = vector.extract_strided_slice %652 {offsets = [0, 4], sizes = [2, 1], strides = [1, 1]} : vector<2x8xf32> to vector<2x1xf32>
    %654 = vector.extract_strided_slice %652 {offsets = [0, 5], sizes = [2, 1], strides = [1, 1]} : vector<2x8xf32> to vector<2x1xf32>
    %655 = vector.extract_strided_slice %652 {offsets = [0, 6], sizes = [2, 1], strides = [1, 1]} : vector<2x8xf32> to vector<2x1xf32>
    %656 = vector.extract_strided_slice %645 {offsets = [0, 7], sizes = [2, 1], strides = [1, 1]} : vector<2x8xf32> to vector<2x1xf32>
    %657 = arith.addf %553, %545 : vector<2x1xf32>
    %658 = arith.addf %657, %656 : vector<2x1xf32>
    %659 = arith.subf %565, %658 : vector<2x1xf32>
    %660 = arith.addf %557, %559 : vector<2x1xf32>
    %661 = arith.addf %559, %561 : vector<2x1xf32>
    %662 = arith.addf %660, %661 : vector<2x1xf32>
    %663 = arith.mulf %655, %655 : vector<2x1xf32>
    %664 = arith.addf %662, %663 : vector<2x1xf32>
    %665 = tpu.reciprocal %664 {approx = true} : vector<2x1xf32> -> vector<2x1xf32>
    %666 = arith.mulf %660, %665 : vector<2x1xf32>
    %667 = arith.mulf %661, %665 : vector<2x1xf32>
    %668 = arith.mulf %666, %659 : vector<2x1xf32>
    %669 = arith.addf %553, %668 : vector<2x1xf32>
    %670 = arith.mulf %667, %659 : vector<2x1xf32>
    %671 = arith.addf %545, %670 : vector<2x1xf32>
    %672 = arith.mulf %666, %660 : vector<2x1xf32>
    %673 = arith.subf %557, %672 : vector<2x1xf32>
    %674 = arith.mulf %666, %661 : vector<2x1xf32>
    %675 = arith.subf %559, %674 : vector<2x1xf32>
    %676 = arith.mulf %667, %661 : vector<2x1xf32>
    %677 = arith.subf %561, %676 : vector<2x1xf32>
    %678 = arith.addf %675, %677 : vector<2x1xf32>
    %679 = arith.addf %669, %671 : vector<2x1xf32>
    %680 = arith.addf %673, %675 : vector<2x1xf32>
    %681 = arith.addf %680, %678 : vector<2x1xf32>
    %682 = arith.mulf %653, %653 : vector<2x1xf32>
    %683 = arith.addf %681, %682 : vector<2x1xf32>
    %684 = arith.mulf %653, %654 : vector<2x1xf32>
    %685 = arith.addf %678, %684 : vector<2x1xf32>
    %686 = arith.mulf %654, %654 : vector<2x1xf32>
    %687 = arith.addf %677, %686 : vector<2x1xf32>
    %c5 = arith.constant 5 : index
    %c0_40 = arith.constant 0 : index
    %c0_41 = arith.constant 0 : index
    %688 = vector.load %arg0[%c5, %c0_40, %c0_41] : memref<12x2x5xf32, #tpu.memory_space<vmem>>, vector<1x2x5xf32>
    %689 = vector.shape_cast %688 : vector<1x2x5xf32> to vector<2x5xf32>
    %690 = vector.extract_strided_slice %689 {offsets = [0, 0], sizes = [2, 4], strides = [1, 1]} : vector<2x5xf32> to vector<2x4xf32>
    %691 = vector.extract_strided_slice %689 {offsets = [0, 4], sizes = [2, 1], strides = [1, 1]} : vector<2x5xf32> to vector<2x1xf32>
    %692 = vector.extract_strided_slice %690 {offsets = [0, 0], sizes = [2, 1], strides = [1, 1]} : vector<2x4xf32> to vector<2x1xf32>
    %693 = vector.broadcast %692 : vector<2x1xf32> to vector<2x8xf32>
    %694 = arith.mulf %693, %3 : vector<2x8xf32>
    %695 = vector.extract_strided_slice %690 {offsets = [0, 1], sizes = [2, 1], strides = [1, 1]} : vector<2x4xf32> to vector<2x1xf32>
    %696 = vector.broadcast %695 : vector<2x1xf32> to vector<2x8xf32>
    %697 = arith.mulf %696, %6 : vector<2x8xf32>
    %698 = arith.addf %694, %697 : vector<2x8xf32>
    %699 = vector.extract_strided_slice %690 {offsets = [0, 2], sizes = [2, 1], strides = [1, 1]} : vector<2x4xf32> to vector<2x1xf32>
    %700 = vector.broadcast %699 : vector<2x1xf32> to vector<2x8xf32>
    %701 = arith.mulf %700, %9 : vector<2x8xf32>
    %702 = arith.addf %698, %701 : vector<2x8xf32>
    %703 = vector.extract_strided_slice %690 {offsets = [0, 3], sizes = [2, 1], strides = [1, 1]} : vector<2x4xf32> to vector<2x1xf32>
    %704 = vector.broadcast %703 : vector<2x1xf32> to vector<2x8xf32>
    %705 = arith.mulf %704, %12 : vector<2x8xf32>
    %706 = arith.addf %702, %705 : vector<2x8xf32>
    %707 = vector.extract_strided_slice %605 {offsets = [0, 0], sizes = [2, 1], strides = [1, 1]} : vector<2x2xf32> to vector<2x1xf32>
    %708 = vector.broadcast %707 : vector<2x1xf32> to vector<2x8xf32>
    %709 = arith.mulf %708, %16 : vector<2x8xf32>
    %710 = vector.extract_strided_slice %605 {offsets = [0, 1], sizes = [2, 1], strides = [1, 1]} : vector<2x2xf32> to vector<2x1xf32>
    %711 = vector.broadcast %710 : vector<2x1xf32> to vector<2x8xf32>
    %712 = arith.mulf %711, %19 : vector<2x8xf32>
    %713 = arith.addf %709, %712 : vector<2x8xf32>
    %714 = arith.addf %706, %713 : vector<2x8xf32>
    %715 = arith.addf %714, %22 : vector<2x8xf32>
    %716 = vector.extract_strided_slice %715 {offsets = [0, 0], sizes = [2, 6], strides = [1, 1]} : vector<2x8xf32> to vector<2x6xf32>
    %717 = arith.negf %716 : vector<2x6xf32>
    %718 = math.exp %717 : vector<2x6xf32>
    %cst_42 = arith.constant 1.000000e+00 : f32
    %719 = vector.broadcast %cst_42 : f32 to vector<2x6xf32>
    %720 = arith.addf %719, %718 : vector<2x6xf32>
    %721 = arith.divf %719, %720 : vector<2x6xf32>
    %722 = vector.extract_strided_slice %715 {offsets = [0, 6], sizes = [2, 2], strides = [1, 1]} : vector<2x8xf32> to vector<2x2xf32>
    %723 = math.tanh %722 : vector<2x2xf32>
    %724 = vector.extract_strided_slice %721 {offsets = [0, 0], sizes = [2, 2], strides = [1, 1]} : vector<2x6xf32> to vector<2x2xf32>
    %725 = vector.extract_strided_slice %721 {offsets = [0, 2], sizes = [2, 2], strides = [1, 1]} : vector<2x6xf32> to vector<2x2xf32>
    %726 = vector.extract_strided_slice %721 {offsets = [0, 4], sizes = [2, 2], strides = [1, 1]} : vector<2x6xf32> to vector<2x2xf32>
    %727 = arith.mulf %725, %603 : vector<2x2xf32>
    %728 = arith.mulf %724, %723 : vector<2x2xf32>
    %729 = arith.addf %727, %728 : vector<2x2xf32>
    %730 = math.tanh %729 : vector<2x2xf32>
    %731 = arith.mulf %726, %730 : vector<2x2xf32>
    %732 = vector.extract_strided_slice %731 {offsets = [0, 0], sizes = [2, 1], strides = [1, 1]} : vector<2x2xf32> to vector<2x1xf32>
    %733 = vector.broadcast %732 : vector<2x1xf32> to vector<2x8xf32>
    %734 = arith.mulf %733, %26 : vector<2x8xf32>
    %735 = vector.extract_strided_slice %731 {offsets = [0, 1], sizes = [2, 1], strides = [1, 1]} : vector<2x2xf32> to vector<2x1xf32>
    %736 = vector.broadcast %735 : vector<2x1xf32> to vector<2x8xf32>
    %737 = arith.mulf %736, %29 : vector<2x8xf32>
    %738 = arith.addf %734, %737 : vector<2x8xf32>
    %739 = vector.extract_strided_slice %637 {offsets = [0, 0], sizes = [2, 1], strides = [1, 1]} : vector<2x2xf32> to vector<2x1xf32>
    %740 = vector.broadcast %739 : vector<2x1xf32> to vector<2x8xf32>
    %741 = arith.mulf %740, %33 : vector<2x8xf32>
    %742 = vector.extract_strided_slice %637 {offsets = [0, 1], sizes = [2, 1], strides = [1, 1]} : vector<2x2xf32> to vector<2x1xf32>
    %743 = vector.broadcast %742 : vector<2x1xf32> to vector<2x8xf32>
    %744 = arith.mulf %743, %36 : vector<2x8xf32>
    %745 = arith.addf %741, %744 : vector<2x8xf32>
    %746 = arith.addf %738, %745 : vector<2x8xf32>
    %747 = arith.addf %746, %39 : vector<2x8xf32>
    %748 = vector.extract_strided_slice %747 {offsets = [0, 0], sizes = [2, 6], strides = [1, 1]} : vector<2x8xf32> to vector<2x6xf32>
    %749 = arith.negf %748 : vector<2x6xf32>
    %750 = math.exp %749 : vector<2x6xf32>
    %cst_43 = arith.constant 1.000000e+00 : f32
    %751 = vector.broadcast %cst_43 : f32 to vector<2x6xf32>
    %752 = arith.addf %751, %750 : vector<2x6xf32>
    %753 = arith.divf %751, %752 : vector<2x6xf32>
    %754 = vector.extract_strided_slice %747 {offsets = [0, 6], sizes = [2, 2], strides = [1, 1]} : vector<2x8xf32> to vector<2x2xf32>
    %755 = math.tanh %754 : vector<2x2xf32>
    %756 = vector.extract_strided_slice %753 {offsets = [0, 0], sizes = [2, 2], strides = [1, 1]} : vector<2x6xf32> to vector<2x2xf32>
    %757 = vector.extract_strided_slice %753 {offsets = [0, 2], sizes = [2, 2], strides = [1, 1]} : vector<2x6xf32> to vector<2x2xf32>
    %758 = vector.extract_strided_slice %753 {offsets = [0, 4], sizes = [2, 2], strides = [1, 1]} : vector<2x6xf32> to vector<2x2xf32>
    %759 = arith.mulf %757, %635 : vector<2x2xf32>
    %760 = arith.mulf %756, %755 : vector<2x2xf32>
    %761 = arith.addf %759, %760 : vector<2x2xf32>
    %762 = math.tanh %761 : vector<2x2xf32>
    %763 = arith.mulf %758, %762 : vector<2x2xf32>
    %764 = vector.extract_strided_slice %763 {offsets = [0, 0], sizes = [2, 1], strides = [1, 1]} : vector<2x2xf32> to vector<2x1xf32>
    %765 = vector.broadcast %764 : vector<2x1xf32> to vector<2x8xf32>
    %766 = arith.mulf %765, %43 : vector<2x8xf32>
    %767 = vector.extract_strided_slice %763 {offsets = [0, 1], sizes = [2, 1], strides = [1, 1]} : vector<2x2xf32> to vector<2x1xf32>
    %768 = vector.broadcast %767 : vector<2x1xf32> to vector<2x8xf32>
    %769 = arith.mulf %768, %46 : vector<2x8xf32>
    %770 = arith.addf %766, %769 : vector<2x8xf32>
    %771 = arith.addf %770, %49 : vector<2x8xf32>
    %cst_44 = arith.constant 2.000000e+01 : f32
    %772 = vector.broadcast %cst_44 : f32 to vector<2x8xf32>
    %773 = arith.cmpf ogt, %771, %772 : vector<2x8xf32>
    %cst_45 = arith.constant 2.000000e+01 : f32
    %774 = vector.broadcast %cst_45 : f32 to vector<2x8xf32>
    %775 = arith.minimumf %771, %774 : vector<2x8xf32>
    %776 = math.exp %775 : vector<2x8xf32>
    %777 = math.log1p %776 : vector<2x8xf32>
    %778 = arith.select %773, %771, %777 : vector<2x8xi1>, vector<2x8xf32>
    %779 = vector.extract_strided_slice %778 {offsets = [0, 4], sizes = [2, 1], strides = [1, 1]} : vector<2x8xf32> to vector<2x1xf32>
    %780 = vector.extract_strided_slice %778 {offsets = [0, 5], sizes = [2, 1], strides = [1, 1]} : vector<2x8xf32> to vector<2x1xf32>
    %781 = vector.extract_strided_slice %778 {offsets = [0, 6], sizes = [2, 1], strides = [1, 1]} : vector<2x8xf32> to vector<2x1xf32>
    %782 = vector.extract_strided_slice %771 {offsets = [0, 7], sizes = [2, 1], strides = [1, 1]} : vector<2x8xf32> to vector<2x1xf32>
    %783 = arith.addf %679, %671 : vector<2x1xf32>
    %784 = arith.addf %783, %782 : vector<2x1xf32>
    %785 = arith.subf %691, %784 : vector<2x1xf32>
    %786 = arith.addf %683, %685 : vector<2x1xf32>
    %787 = arith.addf %685, %687 : vector<2x1xf32>
    %788 = arith.addf %786, %787 : vector<2x1xf32>
    %789 = arith.mulf %781, %781 : vector<2x1xf32>
    %790 = arith.addf %788, %789 : vector<2x1xf32>
    %791 = tpu.reciprocal %790 {approx = true} : vector<2x1xf32> -> vector<2x1xf32>
    %792 = arith.mulf %786, %791 : vector<2x1xf32>
    %793 = arith.mulf %787, %791 : vector<2x1xf32>
    %794 = arith.mulf %792, %785 : vector<2x1xf32>
    %795 = arith.addf %679, %794 : vector<2x1xf32>
    %796 = arith.mulf %793, %785 : vector<2x1xf32>
    %797 = arith.addf %671, %796 : vector<2x1xf32>
    %798 = arith.mulf %792, %786 : vector<2x1xf32>
    %799 = arith.subf %683, %798 : vector<2x1xf32>
    %800 = arith.mulf %792, %787 : vector<2x1xf32>
    %801 = arith.subf %685, %800 : vector<2x1xf32>
    %802 = arith.mulf %793, %787 : vector<2x1xf32>
    %803 = arith.subf %687, %802 : vector<2x1xf32>
    %804 = arith.addf %801, %803 : vector<2x1xf32>
    %805 = arith.addf %795, %797 : vector<2x1xf32>
    %806 = arith.addf %799, %801 : vector<2x1xf32>
    %807 = arith.addf %806, %804 : vector<2x1xf32>
    %808 = arith.mulf %779, %779 : vector<2x1xf32>
    %809 = arith.addf %807, %808 : vector<2x1xf32>
    %810 = arith.mulf %779, %780 : vector<2x1xf32>
    %811 = arith.addf %804, %810 : vector<2x1xf32>
    %812 = arith.mulf %780, %780 : vector<2x1xf32>
    %813 = arith.addf %803, %812 : vector<2x1xf32>
    %c6 = arith.constant 6 : index
    %c0_46 = arith.constant 0 : index
    %c0_47 = arith.constant 0 : index
    %814 = vector.load %arg0[%c6, %c0_46, %c0_47] : memref<12x2x5xf32, #tpu.memory_space<vmem>>, vector<1x2x5xf32>
    %815 = vector.shape_cast %814 : vector<1x2x5xf32> to vector<2x5xf32>
    %816 = vector.extract_strided_slice %815 {offsets = [0, 0], sizes = [2, 4], strides = [1, 1]} : vector<2x5xf32> to vector<2x4xf32>
    %817 = vector.extract_strided_slice %815 {offsets = [0, 4], sizes = [2, 1], strides = [1, 1]} : vector<2x5xf32> to vector<2x1xf32>
    %818 = vector.extract_strided_slice %816 {offsets = [0, 0], sizes = [2, 1], strides = [1, 1]} : vector<2x4xf32> to vector<2x1xf32>
    %819 = vector.broadcast %818 : vector<2x1xf32> to vector<2x8xf32>
    %820 = arith.mulf %819, %3 : vector<2x8xf32>
    %821 = vector.extract_strided_slice %816 {offsets = [0, 1], sizes = [2, 1], strides = [1, 1]} : vector<2x4xf32> to vector<2x1xf32>
    %822 = vector.broadcast %821 : vector<2x1xf32> to vector<2x8xf32>
    %823 = arith.mulf %822, %6 : vector<2x8xf32>
    %824 = arith.addf %820, %823 : vector<2x8xf32>
    %825 = vector.extract_strided_slice %816 {offsets = [0, 2], sizes = [2, 1], strides = [1, 1]} : vector<2x4xf32> to vector<2x1xf32>
    %826 = vector.broadcast %825 : vector<2x1xf32> to vector<2x8xf32>
    %827 = arith.mulf %826, %9 : vector<2x8xf32>
    %828 = arith.addf %824, %827 : vector<2x8xf32>
    %829 = vector.extract_strided_slice %816 {offsets = [0, 3], sizes = [2, 1], strides = [1, 1]} : vector<2x4xf32> to vector<2x1xf32>
    %830 = vector.broadcast %829 : vector<2x1xf32> to vector<2x8xf32>
    %831 = arith.mulf %830, %12 : vector<2x8xf32>
    %832 = arith.addf %828, %831 : vector<2x8xf32>
    %833 = vector.extract_strided_slice %731 {offsets = [0, 0], sizes = [2, 1], strides = [1, 1]} : vector<2x2xf32> to vector<2x1xf32>
    %834 = vector.broadcast %833 : vector<2x1xf32> to vector<2x8xf32>
    %835 = arith.mulf %834, %16 : vector<2x8xf32>
    %836 = vector.extract_strided_slice %731 {offsets = [0, 1], sizes = [2, 1], strides = [1, 1]} : vector<2x2xf32> to vector<2x1xf32>
    %837 = vector.broadcast %836 : vector<2x1xf32> to vector<2x8xf32>
    %838 = arith.mulf %837, %19 : vector<2x8xf32>
    %839 = arith.addf %835, %838 : vector<2x8xf32>
    %840 = arith.addf %832, %839 : vector<2x8xf32>
    %841 = arith.addf %840, %22 : vector<2x8xf32>
    %842 = vector.extract_strided_slice %841 {offsets = [0, 0], sizes = [2, 6], strides = [1, 1]} : vector<2x8xf32> to vector<2x6xf32>
    %843 = arith.negf %842 : vector<2x6xf32>
    %844 = math.exp %843 : vector<2x6xf32>
    %cst_48 = arith.constant 1.000000e+00 : f32
    %845 = vector.broadcast %cst_48 : f32 to vector<2x6xf32>
    %846 = arith.addf %845, %844 : vector<2x6xf32>
    %847 = arith.divf %845, %846 : vector<2x6xf32>
    %848 = vector.extract_strided_slice %841 {offsets = [0, 6], sizes = [2, 2], strides = [1, 1]} : vector<2x8xf32> to vector<2x2xf32>
    %849 = math.tanh %848 : vector<2x2xf32>
    %850 = vector.extract_strided_slice %847 {offsets = [0, 0], sizes = [2, 2], strides = [1, 1]} : vector<2x6xf32> to vector<2x2xf32>
    %851 = vector.extract_strided_slice %847 {offsets = [0, 2], sizes = [2, 2], strides = [1, 1]} : vector<2x6xf32> to vector<2x2xf32>
    %852 = vector.extract_strided_slice %847 {offsets = [0, 4], sizes = [2, 2], strides = [1, 1]} : vector<2x6xf32> to vector<2x2xf32>
    %853 = arith.mulf %851, %729 : vector<2x2xf32>
    %854 = arith.mulf %850, %849 : vector<2x2xf32>
    %855 = arith.addf %853, %854 : vector<2x2xf32>
    %856 = math.tanh %855 : vector<2x2xf32>
    %857 = arith.mulf %852, %856 : vector<2x2xf32>
    %858 = vector.extract_strided_slice %857 {offsets = [0, 0], sizes = [2, 1], strides = [1, 1]} : vector<2x2xf32> to vector<2x1xf32>
    %859 = vector.broadcast %858 : vector<2x1xf32> to vector<2x8xf32>
    %860 = arith.mulf %859, %26 : vector<2x8xf32>
    %861 = vector.extract_strided_slice %857 {offsets = [0, 1], sizes = [2, 1], strides = [1, 1]} : vector<2x2xf32> to vector<2x1xf32>
    %862 = vector.broadcast %861 : vector<2x1xf32> to vector<2x8xf32>
    %863 = arith.mulf %862, %29 : vector<2x8xf32>
    %864 = arith.addf %860, %863 : vector<2x8xf32>
    %865 = vector.extract_strided_slice %763 {offsets = [0, 0], sizes = [2, 1], strides = [1, 1]} : vector<2x2xf32> to vector<2x1xf32>
    %866 = vector.broadcast %865 : vector<2x1xf32> to vector<2x8xf32>
    %867 = arith.mulf %866, %33 : vector<2x8xf32>
    %868 = vector.extract_strided_slice %763 {offsets = [0, 1], sizes = [2, 1], strides = [1, 1]} : vector<2x2xf32> to vector<2x1xf32>
    %869 = vector.broadcast %868 : vector<2x1xf32> to vector<2x8xf32>
    %870 = arith.mulf %869, %36 : vector<2x8xf32>
    %871 = arith.addf %867, %870 : vector<2x8xf32>
    %872 = arith.addf %864, %871 : vector<2x8xf32>
    %873 = arith.addf %872, %39 : vector<2x8xf32>
    %874 = vector.extract_strided_slice %873 {offsets = [0, 0], sizes = [2, 6], strides = [1, 1]} : vector<2x8xf32> to vector<2x6xf32>
    %875 = arith.negf %874 : vector<2x6xf32>
    %876 = math.exp %875 : vector<2x6xf32>
    %cst_49 = arith.constant 1.000000e+00 : f32
    %877 = vector.broadcast %cst_49 : f32 to vector<2x6xf32>
    %878 = arith.addf %877, %876 : vector<2x6xf32>
    %879 = arith.divf %877, %878 : vector<2x6xf32>
    %880 = vector.extract_strided_slice %873 {offsets = [0, 6], sizes = [2, 2], strides = [1, 1]} : vector<2x8xf32> to vector<2x2xf32>
    %881 = math.tanh %880 : vector<2x2xf32>
    %882 = vector.extract_strided_slice %879 {offsets = [0, 0], sizes = [2, 2], strides = [1, 1]} : vector<2x6xf32> to vector<2x2xf32>
    %883 = vector.extract_strided_slice %879 {offsets = [0, 2], sizes = [2, 2], strides = [1, 1]} : vector<2x6xf32> to vector<2x2xf32>
    %884 = vector.extract_strided_slice %879 {offsets = [0, 4], sizes = [2, 2], strides = [1, 1]} : vector<2x6xf32> to vector<2x2xf32>
    %885 = arith.mulf %883, %761 : vector<2x2xf32>
    %886 = arith.mulf %882, %881 : vector<2x2xf32>
    %887 = arith.addf %885, %886 : vector<2x2xf32>
    %888 = math.tanh %887 : vector<2x2xf32>
    %889 = arith.mulf %884, %888 : vector<2x2xf32>
    %890 = vector.extract_strided_slice %889 {offsets = [0, 0], sizes = [2, 1], strides = [1, 1]} : vector<2x2xf32> to vector<2x1xf32>
    %891 = vector.broadcast %890 : vector<2x1xf32> to vector<2x8xf32>
    %892 = arith.mulf %891, %43 : vector<2x8xf32>
    %893 = vector.extract_strided_slice %889 {offsets = [0, 1], sizes = [2, 1], strides = [1, 1]} : vector<2x2xf32> to vector<2x1xf32>
    %894 = vector.broadcast %893 : vector<2x1xf32> to vector<2x8xf32>
    %895 = arith.mulf %894, %46 : vector<2x8xf32>
    %896 = arith.addf %892, %895 : vector<2x8xf32>
    %897 = arith.addf %896, %49 : vector<2x8xf32>
    %cst_50 = arith.constant 2.000000e+01 : f32
    %898 = vector.broadcast %cst_50 : f32 to vector<2x8xf32>
    %899 = arith.cmpf ogt, %897, %898 : vector<2x8xf32>
    %cst_51 = arith.constant 2.000000e+01 : f32
    %900 = vector.broadcast %cst_51 : f32 to vector<2x8xf32>
    %901 = arith.minimumf %897, %900 : vector<2x8xf32>
    %902 = math.exp %901 : vector<2x8xf32>
    %903 = math.log1p %902 : vector<2x8xf32>
    %904 = arith.select %899, %897, %903 : vector<2x8xi1>, vector<2x8xf32>
    %905 = vector.extract_strided_slice %904 {offsets = [0, 4], sizes = [2, 1], strides = [1, 1]} : vector<2x8xf32> to vector<2x1xf32>
    %906 = vector.extract_strided_slice %904 {offsets = [0, 5], sizes = [2, 1], strides = [1, 1]} : vector<2x8xf32> to vector<2x1xf32>
    %907 = vector.extract_strided_slice %904 {offsets = [0, 6], sizes = [2, 1], strides = [1, 1]} : vector<2x8xf32> to vector<2x1xf32>
    %908 = vector.extract_strided_slice %897 {offsets = [0, 7], sizes = [2, 1], strides = [1, 1]} : vector<2x8xf32> to vector<2x1xf32>
    %909 = arith.addf %805, %797 : vector<2x1xf32>
    %910 = arith.addf %909, %908 : vector<2x1xf32>
    %911 = arith.subf %817, %910 : vector<2x1xf32>
    %912 = arith.addf %809, %811 : vector<2x1xf32>
    %913 = arith.addf %811, %813 : vector<2x1xf32>
    %914 = arith.addf %912, %913 : vector<2x1xf32>
    %915 = arith.mulf %907, %907 : vector<2x1xf32>
    %916 = arith.addf %914, %915 : vector<2x1xf32>
    %917 = tpu.reciprocal %916 {approx = true} : vector<2x1xf32> -> vector<2x1xf32>
    %918 = arith.mulf %912, %917 : vector<2x1xf32>
    %919 = arith.mulf %913, %917 : vector<2x1xf32>
    %920 = arith.mulf %918, %911 : vector<2x1xf32>
    %921 = arith.addf %805, %920 : vector<2x1xf32>
    %922 = arith.mulf %919, %911 : vector<2x1xf32>
    %923 = arith.addf %797, %922 : vector<2x1xf32>
    %924 = arith.mulf %918, %912 : vector<2x1xf32>
    %925 = arith.subf %809, %924 : vector<2x1xf32>
    %926 = arith.mulf %918, %913 : vector<2x1xf32>
    %927 = arith.subf %811, %926 : vector<2x1xf32>
    %928 = arith.mulf %919, %913 : vector<2x1xf32>
    %929 = arith.subf %813, %928 : vector<2x1xf32>
    %930 = arith.addf %927, %929 : vector<2x1xf32>
    %931 = arith.addf %921, %923 : vector<2x1xf32>
    %932 = arith.addf %925, %927 : vector<2x1xf32>
    %933 = arith.addf %932, %930 : vector<2x1xf32>
    %934 = arith.mulf %905, %905 : vector<2x1xf32>
    %935 = arith.addf %933, %934 : vector<2x1xf32>
    %936 = arith.mulf %905, %906 : vector<2x1xf32>
    %937 = arith.addf %930, %936 : vector<2x1xf32>
    %938 = arith.mulf %906, %906 : vector<2x1xf32>
    %939 = arith.addf %929, %938 : vector<2x1xf32>
    %c7 = arith.constant 7 : index
    %c0_52 = arith.constant 0 : index
    %c0_53 = arith.constant 0 : index
    %940 = vector.load %arg0[%c7, %c0_52, %c0_53] : memref<12x2x5xf32, #tpu.memory_space<vmem>>, vector<1x2x5xf32>
    %941 = vector.shape_cast %940 : vector<1x2x5xf32> to vector<2x5xf32>
    %942 = vector.extract_strided_slice %941 {offsets = [0, 0], sizes = [2, 4], strides = [1, 1]} : vector<2x5xf32> to vector<2x4xf32>
    %943 = vector.extract_strided_slice %941 {offsets = [0, 4], sizes = [2, 1], strides = [1, 1]} : vector<2x5xf32> to vector<2x1xf32>
    %944 = vector.extract_strided_slice %942 {offsets = [0, 0], sizes = [2, 1], strides = [1, 1]} : vector<2x4xf32> to vector<2x1xf32>
    %945 = vector.broadcast %944 : vector<2x1xf32> to vector<2x8xf32>
    %946 = arith.mulf %945, %3 : vector<2x8xf32>
    %947 = vector.extract_strided_slice %942 {offsets = [0, 1], sizes = [2, 1], strides = [1, 1]} : vector<2x4xf32> to vector<2x1xf32>
    %948 = vector.broadcast %947 : vector<2x1xf32> to vector<2x8xf32>
    %949 = arith.mulf %948, %6 : vector<2x8xf32>
    %950 = arith.addf %946, %949 : vector<2x8xf32>
    %951 = vector.extract_strided_slice %942 {offsets = [0, 2], sizes = [2, 1], strides = [1, 1]} : vector<2x4xf32> to vector<2x1xf32>
    %952 = vector.broadcast %951 : vector<2x1xf32> to vector<2x8xf32>
    %953 = arith.mulf %952, %9 : vector<2x8xf32>
    %954 = arith.addf %950, %953 : vector<2x8xf32>
    %955 = vector.extract_strided_slice %942 {offsets = [0, 3], sizes = [2, 1], strides = [1, 1]} : vector<2x4xf32> to vector<2x1xf32>
    %956 = vector.broadcast %955 : vector<2x1xf32> to vector<2x8xf32>
    %957 = arith.mulf %956, %12 : vector<2x8xf32>
    %958 = arith.addf %954, %957 : vector<2x8xf32>
    %959 = vector.extract_strided_slice %857 {offsets = [0, 0], sizes = [2, 1], strides = [1, 1]} : vector<2x2xf32> to vector<2x1xf32>
    %960 = vector.broadcast %959 : vector<2x1xf32> to vector<2x8xf32>
    %961 = arith.mulf %960, %16 : vector<2x8xf32>
    %962 = vector.extract_strided_slice %857 {offsets = [0, 1], sizes = [2, 1], strides = [1, 1]} : vector<2x2xf32> to vector<2x1xf32>
    %963 = vector.broadcast %962 : vector<2x1xf32> to vector<2x8xf32>
    %964 = arith.mulf %963, %19 : vector<2x8xf32>
    %965 = arith.addf %961, %964 : vector<2x8xf32>
    %966 = arith.addf %958, %965 : vector<2x8xf32>
    %967 = arith.addf %966, %22 : vector<2x8xf32>
    %968 = vector.extract_strided_slice %967 {offsets = [0, 0], sizes = [2, 6], strides = [1, 1]} : vector<2x8xf32> to vector<2x6xf32>
    %969 = arith.negf %968 : vector<2x6xf32>
    %970 = math.exp %969 : vector<2x6xf32>
    %cst_54 = arith.constant 1.000000e+00 : f32
    %971 = vector.broadcast %cst_54 : f32 to vector<2x6xf32>
    %972 = arith.addf %971, %970 : vector<2x6xf32>
    %973 = arith.divf %971, %972 : vector<2x6xf32>
    %974 = vector.extract_strided_slice %967 {offsets = [0, 6], sizes = [2, 2], strides = [1, 1]} : vector<2x8xf32> to vector<2x2xf32>
    %975 = math.tanh %974 : vector<2x2xf32>
    %976 = vector.extract_strided_slice %973 {offsets = [0, 0], sizes = [2, 2], strides = [1, 1]} : vector<2x6xf32> to vector<2x2xf32>
    %977 = vector.extract_strided_slice %973 {offsets = [0, 2], sizes = [2, 2], strides = [1, 1]} : vector<2x6xf32> to vector<2x2xf32>
    %978 = vector.extract_strided_slice %973 {offsets = [0, 4], sizes = [2, 2], strides = [1, 1]} : vector<2x6xf32> to vector<2x2xf32>
    %979 = arith.mulf %977, %855 : vector<2x2xf32>
    %980 = arith.mulf %976, %975 : vector<2x2xf32>
    %981 = arith.addf %979, %980 : vector<2x2xf32>
    %982 = math.tanh %981 : vector<2x2xf32>
    %983 = arith.mulf %978, %982 : vector<2x2xf32>
    %984 = vector.extract_strided_slice %983 {offsets = [0, 0], sizes = [2, 1], strides = [1, 1]} : vector<2x2xf32> to vector<2x1xf32>
    %985 = vector.broadcast %984 : vector<2x1xf32> to vector<2x8xf32>
    %986 = arith.mulf %985, %26 : vector<2x8xf32>
    %987 = vector.extract_strided_slice %983 {offsets = [0, 1], sizes = [2, 1], strides = [1, 1]} : vector<2x2xf32> to vector<2x1xf32>
    %988 = vector.broadcast %987 : vector<2x1xf32> to vector<2x8xf32>
    %989 = arith.mulf %988, %29 : vector<2x8xf32>
    %990 = arith.addf %986, %989 : vector<2x8xf32>
    %991 = vector.extract_strided_slice %889 {offsets = [0, 0], sizes = [2, 1], strides = [1, 1]} : vector<2x2xf32> to vector<2x1xf32>
    %992 = vector.broadcast %991 : vector<2x1xf32> to vector<2x8xf32>
    %993 = arith.mulf %992, %33 : vector<2x8xf32>
    %994 = vector.extract_strided_slice %889 {offsets = [0, 1], sizes = [2, 1], strides = [1, 1]} : vector<2x2xf32> to vector<2x1xf32>
    %995 = vector.broadcast %994 : vector<2x1xf32> to vector<2x8xf32>
    %996 = arith.mulf %995, %36 : vector<2x8xf32>
    %997 = arith.addf %993, %996 : vector<2x8xf32>
    %998 = arith.addf %990, %997 : vector<2x8xf32>
    %999 = arith.addf %998, %39 : vector<2x8xf32>
    %1000 = vector.extract_strided_slice %999 {offsets = [0, 0], sizes = [2, 6], strides = [1, 1]} : vector<2x8xf32> to vector<2x6xf32>
    %1001 = arith.negf %1000 : vector<2x6xf32>
    %1002 = math.exp %1001 : vector<2x6xf32>
    %cst_55 = arith.constant 1.000000e+00 : f32
    %1003 = vector.broadcast %cst_55 : f32 to vector<2x6xf32>
    %1004 = arith.addf %1003, %1002 : vector<2x6xf32>
    %1005 = arith.divf %1003, %1004 : vector<2x6xf32>
    %1006 = vector.extract_strided_slice %999 {offsets = [0, 6], sizes = [2, 2], strides = [1, 1]} : vector<2x8xf32> to vector<2x2xf32>
    %1007 = math.tanh %1006 : vector<2x2xf32>
    %1008 = vector.extract_strided_slice %1005 {offsets = [0, 0], sizes = [2, 2], strides = [1, 1]} : vector<2x6xf32> to vector<2x2xf32>
    %1009 = vector.extract_strided_slice %1005 {offsets = [0, 2], sizes = [2, 2], strides = [1, 1]} : vector<2x6xf32> to vector<2x2xf32>
    %1010 = vector.extract_strided_slice %1005 {offsets = [0, 4], sizes = [2, 2], strides = [1, 1]} : vector<2x6xf32> to vector<2x2xf32>
    %1011 = arith.mulf %1009, %887 : vector<2x2xf32>
    %1012 = arith.mulf %1008, %1007 : vector<2x2xf32>
    %1013 = arith.addf %1011, %1012 : vector<2x2xf32>
    %1014 = math.tanh %1013 : vector<2x2xf32>
    %1015 = arith.mulf %1010, %1014 : vector<2x2xf32>
    %1016 = vector.extract_strided_slice %1015 {offsets = [0, 0], sizes = [2, 1], strides = [1, 1]} : vector<2x2xf32> to vector<2x1xf32>
    %1017 = vector.broadcast %1016 : vector<2x1xf32> to vector<2x8xf32>
    %1018 = arith.mulf %1017, %43 : vector<2x8xf32>
    %1019 = vector.extract_strided_slice %1015 {offsets = [0, 1], sizes = [2, 1], strides = [1, 1]} : vector<2x2xf32> to vector<2x1xf32>
    %1020 = vector.broadcast %1019 : vector<2x1xf32> to vector<2x8xf32>
    %1021 = arith.mulf %1020, %46 : vector<2x8xf32>
    %1022 = arith.addf %1018, %1021 : vector<2x8xf32>
    %1023 = arith.addf %1022, %49 : vector<2x8xf32>
    %cst_56 = arith.constant 2.000000e+01 : f32
    %1024 = vector.broadcast %cst_56 : f32 to vector<2x8xf32>
    %1025 = arith.cmpf ogt, %1023, %1024 : vector<2x8xf32>
    %cst_57 = arith.constant 2.000000e+01 : f32
    %1026 = vector.broadcast %cst_57 : f32 to vector<2x8xf32>
    %1027 = arith.minimumf %1023, %1026 : vector<2x8xf32>
    %1028 = math.exp %1027 : vector<2x8xf32>
    %1029 = math.log1p %1028 : vector<2x8xf32>
    %1030 = arith.select %1025, %1023, %1029 : vector<2x8xi1>, vector<2x8xf32>
    %1031 = vector.extract_strided_slice %1030 {offsets = [0, 4], sizes = [2, 1], strides = [1, 1]} : vector<2x8xf32> to vector<2x1xf32>
    %1032 = vector.extract_strided_slice %1030 {offsets = [0, 5], sizes = [2, 1], strides = [1, 1]} : vector<2x8xf32> to vector<2x1xf32>
    %1033 = vector.extract_strided_slice %1030 {offsets = [0, 6], sizes = [2, 1], strides = [1, 1]} : vector<2x8xf32> to vector<2x1xf32>
    %1034 = vector.extract_strided_slice %1023 {offsets = [0, 7], sizes = [2, 1], strides = [1, 1]} : vector<2x8xf32> to vector<2x1xf32>
    %1035 = arith.addf %931, %923 : vector<2x1xf32>
    %1036 = arith.addf %1035, %1034 : vector<2x1xf32>
    %1037 = arith.subf %943, %1036 : vector<2x1xf32>
    %1038 = arith.addf %935, %937 : vector<2x1xf32>
    %1039 = arith.addf %937, %939 : vector<2x1xf32>
    %1040 = arith.addf %1038, %1039 : vector<2x1xf32>
    %1041 = arith.mulf %1033, %1033 : vector<2x1xf32>
    %1042 = arith.addf %1040, %1041 : vector<2x1xf32>
    %1043 = tpu.reciprocal %1042 {approx = true} : vector<2x1xf32> -> vector<2x1xf32>
    %1044 = arith.mulf %1038, %1043 : vector<2x1xf32>
    %1045 = arith.mulf %1039, %1043 : vector<2x1xf32>
    %1046 = arith.mulf %1044, %1037 : vector<2x1xf32>
    %1047 = arith.addf %931, %1046 : vector<2x1xf32>
    %1048 = arith.mulf %1045, %1037 : vector<2x1xf32>
    %1049 = arith.addf %923, %1048 : vector<2x1xf32>
    %1050 = arith.mulf %1044, %1038 : vector<2x1xf32>
    %1051 = arith.subf %935, %1050 : vector<2x1xf32>
    %1052 = arith.mulf %1044, %1039 : vector<2x1xf32>
    %1053 = arith.subf %937, %1052 : vector<2x1xf32>
    %1054 = arith.mulf %1045, %1039 : vector<2x1xf32>
    %1055 = arith.subf %939, %1054 : vector<2x1xf32>
    %1056 = arith.addf %1053, %1055 : vector<2x1xf32>
    %1057 = arith.addf %1047, %1049 : vector<2x1xf32>
    %1058 = arith.addf %1051, %1053 : vector<2x1xf32>
    %1059 = arith.addf %1058, %1056 : vector<2x1xf32>
    %1060 = arith.mulf %1031, %1031 : vector<2x1xf32>
    %1061 = arith.addf %1059, %1060 : vector<2x1xf32>
    %1062 = arith.mulf %1031, %1032 : vector<2x1xf32>
    %1063 = arith.addf %1056, %1062 : vector<2x1xf32>
    %1064 = arith.mulf %1032, %1032 : vector<2x1xf32>
    %1065 = arith.addf %1055, %1064 : vector<2x1xf32>
    %cst_58 = arith.constant 9.99999996E-13 : f32
    %1066 = vector.broadcast %cst_58 : f32 to vector<2x1xf32>
    %1067 = arith.maximumf %1061, %1066 : vector<2x1xf32>
    %1068 = math.sqrt %1067 : vector<2x1xf32>
    %1069 = arith.divf %1063, %1068 : vector<2x1xf32>
    %1070 = arith.mulf %1069, %1069 : vector<2x1xf32>
    %1071 = arith.subf %1065, %1070 : vector<2x1xf32>
    %cst_59 = arith.constant 0.000000e+00 : f32
    %1072 = vector.broadcast %cst_59 : f32 to vector<2x1xf32>
    %1073 = arith.maximumf %1071, %1072 : vector<2x1xf32>
    %1074 = math.sqrt %1073 : vector<2x1xf32>
    %c0_60 = arith.constant 0 : index
    %c0_61 = arith.constant 0 : index
    %c0_62 = arith.constant 0 : index
    %1075 = vector.load %arg2[%c0_60, %c0_61, %c0_62] : memref<10x2x8xf32, #tpu.memory_space<vmem>>, vector<1x2x8xf32>
    %1076 = vector.shape_cast %1075 : vector<1x2x8xf32> to vector<2x8xf32>
    %c1_63 = arith.constant 1 : index
    %c0_64 = arith.constant 0 : index
    %c0_65 = arith.constant 0 : index
    %1077 = vector.load %arg2[%c1_63, %c0_64, %c0_65] : memref<10x2x8xf32, #tpu.memory_space<vmem>>, vector<1x2x8xf32>
    %1078 = vector.shape_cast %1077 : vector<1x2x8xf32> to vector<2x8xf32>
    %1079 = vector.broadcast %1068 : vector<2x1xf32> to vector<2x8xf32>
    %1080 = arith.mulf %1079, %1076 : vector<2x8xf32>
    %1081 = vector.broadcast %1057 : vector<2x1xf32> to vector<2x8xf32>
    %1082 = arith.addf %1081, %1080 : vector<2x8xf32>
    %1083 = vector.broadcast %1069 : vector<2x1xf32> to vector<2x8xf32>
    %1084 = arith.mulf %1083, %1076 : vector<2x8xf32>
    %1085 = vector.broadcast %1049 : vector<2x1xf32> to vector<2x8xf32>
    %1086 = arith.addf %1085, %1084 : vector<2x8xf32>
    %1087 = vector.broadcast %1074 : vector<2x1xf32> to vector<2x8xf32>
    %1088 = arith.mulf %1087, %1078 : vector<2x8xf32>
    %1089 = arith.addf %1086, %1088 : vector<2x8xf32>
    %c8_66 = arith.constant 8 : index
    %c0_67 = arith.constant 0 : index
    %c0_68 = arith.constant 0 : index
    %1090 = vector.load %arg0[%c8_66, %c0_67, %c0_68] : memref<12x2x5xf32, #tpu.memory_space<vmem>>, vector<1x2x5xf32>
    %1091 = vector.shape_cast %1090 : vector<1x2x5xf32> to vector<2x5xf32>
    %1092 = vector.extract_strided_slice %1091 {offsets = [0, 0], sizes = [2, 4], strides = [1, 1]} : vector<2x5xf32> to vector<2x4xf32>
    %1093 = vector.extract_strided_slice %1092 {offsets = [0, 0], sizes = [2, 1], strides = [1, 1]} : vector<2x4xf32> to vector<2x1xf32>
    %1094 = vector.broadcast %1093 : vector<2x1xf32> to vector<2x8xf32>
    %1095 = arith.mulf %1094, %3 : vector<2x8xf32>
    %1096 = vector.extract_strided_slice %1092 {offsets = [0, 1], sizes = [2, 1], strides = [1, 1]} : vector<2x4xf32> to vector<2x1xf32>
    %1097 = vector.broadcast %1096 : vector<2x1xf32> to vector<2x8xf32>
    %1098 = arith.mulf %1097, %6 : vector<2x8xf32>
    %1099 = arith.addf %1095, %1098 : vector<2x8xf32>
    %1100 = vector.extract_strided_slice %1092 {offsets = [0, 2], sizes = [2, 1], strides = [1, 1]} : vector<2x4xf32> to vector<2x1xf32>
    %1101 = vector.broadcast %1100 : vector<2x1xf32> to vector<2x8xf32>
    %1102 = arith.mulf %1101, %9 : vector<2x8xf32>
    %1103 = arith.addf %1099, %1102 : vector<2x8xf32>
    %1104 = vector.extract_strided_slice %1092 {offsets = [0, 3], sizes = [2, 1], strides = [1, 1]} : vector<2x4xf32> to vector<2x1xf32>
    %1105 = vector.broadcast %1104 : vector<2x1xf32> to vector<2x8xf32>
    %1106 = arith.mulf %1105, %12 : vector<2x8xf32>
    %1107 = arith.addf %1103, %1106 : vector<2x8xf32>
    %1108 = vector.extract_strided_slice %983 {offsets = [0, 0], sizes = [2, 1], strides = [1, 1]} : vector<2x2xf32> to vector<2x1xf32>
    %1109 = vector.broadcast %1108 : vector<2x1xf32> to vector<2x8xf32>
    %1110 = arith.mulf %1109, %16 : vector<2x8xf32>
    %1111 = vector.extract_strided_slice %983 {offsets = [0, 1], sizes = [2, 1], strides = [1, 1]} : vector<2x2xf32> to vector<2x1xf32>
    %1112 = vector.broadcast %1111 : vector<2x1xf32> to vector<2x8xf32>
    %1113 = arith.mulf %1112, %19 : vector<2x8xf32>
    %1114 = arith.addf %1110, %1113 : vector<2x8xf32>
    %1115 = arith.addf %1107, %1114 : vector<2x8xf32>
    %1116 = arith.addf %1115, %22 : vector<2x8xf32>
    %1117 = vector.extract_strided_slice %1116 {offsets = [0, 0], sizes = [2, 6], strides = [1, 1]} : vector<2x8xf32> to vector<2x6xf32>
    %1118 = arith.negf %1117 : vector<2x6xf32>
    %1119 = math.exp %1118 : vector<2x6xf32>
    %cst_69 = arith.constant 1.000000e+00 : f32
    %1120 = vector.broadcast %cst_69 : f32 to vector<2x6xf32>
    %1121 = arith.addf %1120, %1119 : vector<2x6xf32>
    %1122 = arith.divf %1120, %1121 : vector<2x6xf32>
    %1123 = vector.extract_strided_slice %1116 {offsets = [0, 6], sizes = [2, 2], strides = [1, 1]} : vector<2x8xf32> to vector<2x2xf32>
    %1124 = math.tanh %1123 : vector<2x2xf32>
    %1125 = vector.extract_strided_slice %1122 {offsets = [0, 0], sizes = [2, 2], strides = [1, 1]} : vector<2x6xf32> to vector<2x2xf32>
    %1126 = vector.extract_strided_slice %1122 {offsets = [0, 2], sizes = [2, 2], strides = [1, 1]} : vector<2x6xf32> to vector<2x2xf32>
    %1127 = vector.extract_strided_slice %1122 {offsets = [0, 4], sizes = [2, 2], strides = [1, 1]} : vector<2x6xf32> to vector<2x2xf32>
    %1128 = arith.mulf %1126, %981 : vector<2x2xf32>
    %1129 = arith.mulf %1125, %1124 : vector<2x2xf32>
    %1130 = arith.addf %1128, %1129 : vector<2x2xf32>
    %1131 = math.tanh %1130 : vector<2x2xf32>
    %1132 = arith.mulf %1127, %1131 : vector<2x2xf32>
    %1133 = vector.extract_strided_slice %1132 {offsets = [0, 0], sizes = [2, 1], strides = [1, 1]} : vector<2x2xf32> to vector<2x1xf32>
    %1134 = vector.broadcast %1133 : vector<2x1xf32> to vector<2x8xf32>
    %1135 = arith.mulf %1134, %26 : vector<2x8xf32>
    %1136 = vector.extract_strided_slice %1132 {offsets = [0, 1], sizes = [2, 1], strides = [1, 1]} : vector<2x2xf32> to vector<2x1xf32>
    %1137 = vector.broadcast %1136 : vector<2x1xf32> to vector<2x8xf32>
    %1138 = arith.mulf %1137, %29 : vector<2x8xf32>
    %1139 = arith.addf %1135, %1138 : vector<2x8xf32>
    %1140 = vector.extract_strided_slice %1015 {offsets = [0, 0], sizes = [2, 1], strides = [1, 1]} : vector<2x2xf32> to vector<2x1xf32>
    %1141 = vector.broadcast %1140 : vector<2x1xf32> to vector<2x8xf32>
    %1142 = arith.mulf %1141, %33 : vector<2x8xf32>
    %1143 = vector.extract_strided_slice %1015 {offsets = [0, 1], sizes = [2, 1], strides = [1, 1]} : vector<2x2xf32> to vector<2x1xf32>
    %1144 = vector.broadcast %1143 : vector<2x1xf32> to vector<2x8xf32>
    %1145 = arith.mulf %1144, %36 : vector<2x8xf32>
    %1146 = arith.addf %1142, %1145 : vector<2x8xf32>
    %1147 = arith.addf %1139, %1146 : vector<2x8xf32>
    %1148 = arith.addf %1147, %39 : vector<2x8xf32>
    %1149 = vector.extract_strided_slice %1148 {offsets = [0, 0], sizes = [2, 6], strides = [1, 1]} : vector<2x8xf32> to vector<2x6xf32>
    %1150 = arith.negf %1149 : vector<2x6xf32>
    %1151 = math.exp %1150 : vector<2x6xf32>
    %cst_70 = arith.constant 1.000000e+00 : f32
    %1152 = vector.broadcast %cst_70 : f32 to vector<2x6xf32>
    %1153 = arith.addf %1152, %1151 : vector<2x6xf32>
    %1154 = arith.divf %1152, %1153 : vector<2x6xf32>
    %1155 = vector.extract_strided_slice %1148 {offsets = [0, 6], sizes = [2, 2], strides = [1, 1]} : vector<2x8xf32> to vector<2x2xf32>
    %1156 = math.tanh %1155 : vector<2x2xf32>
    %1157 = vector.extract_strided_slice %1154 {offsets = [0, 0], sizes = [2, 2], strides = [1, 1]} : vector<2x6xf32> to vector<2x2xf32>
    %1158 = vector.extract_strided_slice %1154 {offsets = [0, 2], sizes = [2, 2], strides = [1, 1]} : vector<2x6xf32> to vector<2x2xf32>
    %1159 = vector.extract_strided_slice %1154 {offsets = [0, 4], sizes = [2, 2], strides = [1, 1]} : vector<2x6xf32> to vector<2x2xf32>
    %1160 = arith.mulf %1158, %1013 : vector<2x2xf32>
    %1161 = arith.mulf %1157, %1156 : vector<2x2xf32>
    %1162 = arith.addf %1160, %1161 : vector<2x2xf32>
    %1163 = math.tanh %1162 : vector<2x2xf32>
    %1164 = arith.mulf %1159, %1163 : vector<2x2xf32>
    %1165 = vector.extract_strided_slice %1164 {offsets = [0, 0], sizes = [2, 1], strides = [1, 1]} : vector<2x2xf32> to vector<2x1xf32>
    %1166 = vector.broadcast %1165 : vector<2x1xf32> to vector<2x8xf32>
    %1167 = arith.mulf %1166, %43 : vector<2x8xf32>
    %1168 = vector.extract_strided_slice %1164 {offsets = [0, 1], sizes = [2, 1], strides = [1, 1]} : vector<2x2xf32> to vector<2x1xf32>
    %1169 = vector.broadcast %1168 : vector<2x1xf32> to vector<2x8xf32>
    %1170 = arith.mulf %1169, %46 : vector<2x8xf32>
    %1171 = arith.addf %1167, %1170 : vector<2x8xf32>
    %1172 = arith.addf %1171, %49 : vector<2x8xf32>
    %cst_71 = arith.constant 2.000000e+01 : f32
    %1173 = vector.broadcast %cst_71 : f32 to vector<2x8xf32>
    %1174 = arith.cmpf ogt, %1172, %1173 : vector<2x8xf32>
    %cst_72 = arith.constant 2.000000e+01 : f32
    %1175 = vector.broadcast %cst_72 : f32 to vector<2x8xf32>
    %1176 = arith.minimumf %1172, %1175 : vector<2x8xf32>
    %1177 = math.exp %1176 : vector<2x8xf32>
    %1178 = math.log1p %1177 : vector<2x8xf32>
    %1179 = arith.select %1174, %1172, %1178 : vector<2x8xi1>, vector<2x8xf32>
    %1180 = vector.extract_strided_slice %1179 {offsets = [0, 4], sizes = [2, 1], strides = [1, 1]} : vector<2x8xf32> to vector<2x1xf32>
    %1181 = vector.extract_strided_slice %1179 {offsets = [0, 5], sizes = [2, 1], strides = [1, 1]} : vector<2x8xf32> to vector<2x1xf32>
    %1182 = vector.extract_strided_slice %1179 {offsets = [0, 6], sizes = [2, 1], strides = [1, 1]} : vector<2x8xf32> to vector<2x1xf32>
    %1183 = vector.extract_strided_slice %1172 {offsets = [0, 7], sizes = [2, 1], strides = [1, 1]} : vector<2x8xf32> to vector<2x1xf32>
    %1184 = arith.addf %1082, %1089 : vector<2x8xf32>
    %1185 = vector.broadcast %1183 : vector<2x1xf32> to vector<2x8xf32>
    %1186 = arith.addf %1184, %1185 : vector<2x8xf32>
    %c2_73 = arith.constant 2 : index
    %c0_74 = arith.constant 0 : index
    %c0_75 = arith.constant 0 : index
    %1187 = vector.load %arg2[%c2_73, %c0_74, %c0_75] : memref<10x2x8xf32, #tpu.memory_space<vmem>>, vector<1x2x8xf32>
    %1188 = vector.shape_cast %1187 : vector<1x2x8xf32> to vector<2x8xf32>
    %1189 = vector.broadcast %1182 : vector<2x1xf32> to vector<2x8xf32>
    %1190 = arith.mulf %1189, %1188 : vector<2x8xf32>
    %1191 = arith.addf %1186, %1190 : vector<2x8xf32>
    %cst_76 = arith.constant dense<0.000000e+00> : vector<2xf32>
    %1192 = vector.multi_reduction <add>, %1191, %cst_76 [1] : vector<2x8xf32> to vector<2xf32>
    %1193 = vector.shape_cast %1192 : vector<2xf32> to vector<2x1xf32>
    %c6_77 = arith.constant 6 : index
    %c0_78 = arith.constant 0 : index
    %c0_79 = arith.constant 0 : index
    %1194 = vector.load %arg2[%c6_77, %c0_78, %c0_79] : memref<10x2x8xf32, #tpu.memory_space<vmem>>, vector<1x2x8xf32>
    %1195 = vector.shape_cast %1194 : vector<1x2x8xf32> to vector<2x8xf32>
    %1196 = arith.addf %1082, %1089 : vector<2x8xf32>
    %1197 = vector.broadcast %1180 : vector<2x1xf32> to vector<2x8xf32>
    %1198 = arith.mulf %1197, %1195 : vector<2x8xf32>
    %1199 = arith.addf %1196, %1198 : vector<2x8xf32>
    %1200 = vector.broadcast %1181 : vector<2x1xf32> to vector<2x8xf32>
    %1201 = arith.mulf %1200, %1195 : vector<2x8xf32>
    %1202 = arith.addf %1089, %1201 : vector<2x8xf32>
    %c9 = arith.constant 9 : index
    %c0_80 = arith.constant 0 : index
    %c0_81 = arith.constant 0 : index
    %1203 = vector.load %arg0[%c9, %c0_80, %c0_81] : memref<12x2x5xf32, #tpu.memory_space<vmem>>, vector<1x2x5xf32>
    %1204 = vector.shape_cast %1203 : vector<1x2x5xf32> to vector<2x5xf32>
    %1205 = vector.extract_strided_slice %1204 {offsets = [0, 0], sizes = [2, 4], strides = [1, 1]} : vector<2x5xf32> to vector<2x4xf32>
    %1206 = vector.extract_strided_slice %1205 {offsets = [0, 0], sizes = [2, 1], strides = [1, 1]} : vector<2x4xf32> to vector<2x1xf32>
    %1207 = vector.broadcast %1206 : vector<2x1xf32> to vector<2x8xf32>
    %1208 = arith.mulf %1207, %3 : vector<2x8xf32>
    %1209 = vector.extract_strided_slice %1205 {offsets = [0, 1], sizes = [2, 1], strides = [1, 1]} : vector<2x4xf32> to vector<2x1xf32>
    %1210 = vector.broadcast %1209 : vector<2x1xf32> to vector<2x8xf32>
    %1211 = arith.mulf %1210, %6 : vector<2x8xf32>
    %1212 = arith.addf %1208, %1211 : vector<2x8xf32>
    %1213 = vector.extract_strided_slice %1205 {offsets = [0, 2], sizes = [2, 1], strides = [1, 1]} : vector<2x4xf32> to vector<2x1xf32>
    %1214 = vector.broadcast %1213 : vector<2x1xf32> to vector<2x8xf32>
    %1215 = arith.mulf %1214, %9 : vector<2x8xf32>
    %1216 = arith.addf %1212, %1215 : vector<2x8xf32>
    %1217 = vector.extract_strided_slice %1205 {offsets = [0, 3], sizes = [2, 1], strides = [1, 1]} : vector<2x4xf32> to vector<2x1xf32>
    %1218 = vector.broadcast %1217 : vector<2x1xf32> to vector<2x8xf32>
    %1219 = arith.mulf %1218, %12 : vector<2x8xf32>
    %1220 = arith.addf %1216, %1219 : vector<2x8xf32>
    %1221 = vector.extract_strided_slice %1132 {offsets = [0, 0], sizes = [2, 1], strides = [1, 1]} : vector<2x2xf32> to vector<2x1xf32>
    %1222 = vector.broadcast %1221 : vector<2x1xf32> to vector<2x8xf32>
    %1223 = arith.mulf %1222, %16 : vector<2x8xf32>
    %1224 = vector.extract_strided_slice %1132 {offsets = [0, 1], sizes = [2, 1], strides = [1, 1]} : vector<2x2xf32> to vector<2x1xf32>
    %1225 = vector.broadcast %1224 : vector<2x1xf32> to vector<2x8xf32>
    %1226 = arith.mulf %1225, %19 : vector<2x8xf32>
    %1227 = arith.addf %1223, %1226 : vector<2x8xf32>
    %1228 = arith.addf %1220, %1227 : vector<2x8xf32>
    %1229 = arith.addf %1228, %22 : vector<2x8xf32>
    %1230 = vector.extract_strided_slice %1229 {offsets = [0, 0], sizes = [2, 6], strides = [1, 1]} : vector<2x8xf32> to vector<2x6xf32>
    %1231 = arith.negf %1230 : vector<2x6xf32>
    %1232 = math.exp %1231 : vector<2x6xf32>
    %cst_82 = arith.constant 1.000000e+00 : f32
    %1233 = vector.broadcast %cst_82 : f32 to vector<2x6xf32>
    %1234 = arith.addf %1233, %1232 : vector<2x6xf32>
    %1235 = arith.divf %1233, %1234 : vector<2x6xf32>
    %1236 = vector.extract_strided_slice %1229 {offsets = [0, 6], sizes = [2, 2], strides = [1, 1]} : vector<2x8xf32> to vector<2x2xf32>
    %1237 = math.tanh %1236 : vector<2x2xf32>
    %1238 = vector.extract_strided_slice %1235 {offsets = [0, 0], sizes = [2, 2], strides = [1, 1]} : vector<2x6xf32> to vector<2x2xf32>
    %1239 = vector.extract_strided_slice %1235 {offsets = [0, 2], sizes = [2, 2], strides = [1, 1]} : vector<2x6xf32> to vector<2x2xf32>
    %1240 = vector.extract_strided_slice %1235 {offsets = [0, 4], sizes = [2, 2], strides = [1, 1]} : vector<2x6xf32> to vector<2x2xf32>
    %1241 = arith.mulf %1239, %1130 : vector<2x2xf32>
    %1242 = arith.mulf %1238, %1237 : vector<2x2xf32>
    %1243 = arith.addf %1241, %1242 : vector<2x2xf32>
    %1244 = math.tanh %1243 : vector<2x2xf32>
    %1245 = arith.mulf %1240, %1244 : vector<2x2xf32>
    %1246 = vector.extract_strided_slice %1245 {offsets = [0, 0], sizes = [2, 1], strides = [1, 1]} : vector<2x2xf32> to vector<2x1xf32>
    %1247 = vector.broadcast %1246 : vector<2x1xf32> to vector<2x8xf32>
    %1248 = arith.mulf %1247, %26 : vector<2x8xf32>
    %1249 = vector.extract_strided_slice %1245 {offsets = [0, 1], sizes = [2, 1], strides = [1, 1]} : vector<2x2xf32> to vector<2x1xf32>
    %1250 = vector.broadcast %1249 : vector<2x1xf32> to vector<2x8xf32>
    %1251 = arith.mulf %1250, %29 : vector<2x8xf32>
    %1252 = arith.addf %1248, %1251 : vector<2x8xf32>
    %1253 = vector.extract_strided_slice %1164 {offsets = [0, 0], sizes = [2, 1], strides = [1, 1]} : vector<2x2xf32> to vector<2x1xf32>
    %1254 = vector.broadcast %1253 : vector<2x1xf32> to vector<2x8xf32>
    %1255 = arith.mulf %1254, %33 : vector<2x8xf32>
    %1256 = vector.extract_strided_slice %1164 {offsets = [0, 1], sizes = [2, 1], strides = [1, 1]} : vector<2x2xf32> to vector<2x1xf32>
    %1257 = vector.broadcast %1256 : vector<2x1xf32> to vector<2x8xf32>
    %1258 = arith.mulf %1257, %36 : vector<2x8xf32>
    %1259 = arith.addf %1255, %1258 : vector<2x8xf32>
    %1260 = arith.addf %1252, %1259 : vector<2x8xf32>
    %1261 = arith.addf %1260, %39 : vector<2x8xf32>
    %1262 = vector.extract_strided_slice %1261 {offsets = [0, 0], sizes = [2, 6], strides = [1, 1]} : vector<2x8xf32> to vector<2x6xf32>
    %1263 = arith.negf %1262 : vector<2x6xf32>
    %1264 = math.exp %1263 : vector<2x6xf32>
    %cst_83 = arith.constant 1.000000e+00 : f32
    %1265 = vector.broadcast %cst_83 : f32 to vector<2x6xf32>
    %1266 = arith.addf %1265, %1264 : vector<2x6xf32>
    %1267 = arith.divf %1265, %1266 : vector<2x6xf32>
    %1268 = vector.extract_strided_slice %1261 {offsets = [0, 6], sizes = [2, 2], strides = [1, 1]} : vector<2x8xf32> to vector<2x2xf32>
    %1269 = math.tanh %1268 : vector<2x2xf32>
    %1270 = vector.extract_strided_slice %1267 {offsets = [0, 0], sizes = [2, 2], strides = [1, 1]} : vector<2x6xf32> to vector<2x2xf32>
    %1271 = vector.extract_strided_slice %1267 {offsets = [0, 2], sizes = [2, 2], strides = [1, 1]} : vector<2x6xf32> to vector<2x2xf32>
    %1272 = vector.extract_strided_slice %1267 {offsets = [0, 4], sizes = [2, 2], strides = [1, 1]} : vector<2x6xf32> to vector<2x2xf32>
    %1273 = arith.mulf %1271, %1162 : vector<2x2xf32>
    %1274 = arith.mulf %1270, %1269 : vector<2x2xf32>
    %1275 = arith.addf %1273, %1274 : vector<2x2xf32>
    %1276 = math.tanh %1275 : vector<2x2xf32>
    %1277 = arith.mulf %1272, %1276 : vector<2x2xf32>
    %1278 = vector.extract_strided_slice %1277 {offsets = [0, 0], sizes = [2, 1], strides = [1, 1]} : vector<2x2xf32> to vector<2x1xf32>
    %1279 = vector.broadcast %1278 : vector<2x1xf32> to vector<2x8xf32>
    %1280 = arith.mulf %1279, %43 : vector<2x8xf32>
    %1281 = vector.extract_strided_slice %1277 {offsets = [0, 1], sizes = [2, 1], strides = [1, 1]} : vector<2x2xf32> to vector<2x1xf32>
    %1282 = vector.broadcast %1281 : vector<2x1xf32> to vector<2x8xf32>
    %1283 = arith.mulf %1282, %46 : vector<2x8xf32>
    %1284 = arith.addf %1280, %1283 : vector<2x8xf32>
    %1285 = arith.addf %1284, %49 : vector<2x8xf32>
    %cst_84 = arith.constant 2.000000e+01 : f32
    %1286 = vector.broadcast %cst_84 : f32 to vector<2x8xf32>
    %1287 = arith.cmpf ogt, %1285, %1286 : vector<2x8xf32>
    %cst_85 = arith.constant 2.000000e+01 : f32
    %1288 = vector.broadcast %cst_85 : f32 to vector<2x8xf32>
    %1289 = arith.minimumf %1285, %1288 : vector<2x8xf32>
    %1290 = math.exp %1289 : vector<2x8xf32>
    %1291 = math.log1p %1290 : vector<2x8xf32>
    %1292 = arith.select %1287, %1285, %1291 : vector<2x8xi1>, vector<2x8xf32>
    %1293 = vector.extract_strided_slice %1292 {offsets = [0, 4], sizes = [2, 1], strides = [1, 1]} : vector<2x8xf32> to vector<2x1xf32>
    %1294 = vector.extract_strided_slice %1292 {offsets = [0, 5], sizes = [2, 1], strides = [1, 1]} : vector<2x8xf32> to vector<2x1xf32>
    %1295 = vector.extract_strided_slice %1292 {offsets = [0, 6], sizes = [2, 1], strides = [1, 1]} : vector<2x8xf32> to vector<2x1xf32>
    %1296 = vector.extract_strided_slice %1285 {offsets = [0, 7], sizes = [2, 1], strides = [1, 1]} : vector<2x8xf32> to vector<2x1xf32>
    %1297 = arith.addf %1199, %1202 : vector<2x8xf32>
    %1298 = vector.broadcast %1296 : vector<2x1xf32> to vector<2x8xf32>
    %1299 = arith.addf %1297, %1298 : vector<2x8xf32>
    %c3_86 = arith.constant 3 : index
    %c0_87 = arith.constant 0 : index
    %c0_88 = arith.constant 0 : index
    %1300 = vector.load %arg2[%c3_86, %c0_87, %c0_88] : memref<10x2x8xf32, #tpu.memory_space<vmem>>, vector<1x2x8xf32>
    %1301 = vector.shape_cast %1300 : vector<1x2x8xf32> to vector<2x8xf32>
    %1302 = vector.broadcast %1295 : vector<2x1xf32> to vector<2x8xf32>
    %1303 = arith.mulf %1302, %1301 : vector<2x8xf32>
    %1304 = arith.addf %1299, %1303 : vector<2x8xf32>
    %cst_89 = arith.constant dense<0.000000e+00> : vector<2xf32>
    %1305 = vector.multi_reduction <add>, %1304, %cst_89 [1] : vector<2x8xf32> to vector<2xf32>
    %1306 = vector.shape_cast %1305 : vector<2xf32> to vector<2x1xf32>
    %c7_90 = arith.constant 7 : index
    %c0_91 = arith.constant 0 : index
    %c0_92 = arith.constant 0 : index
    %1307 = vector.load %arg2[%c7_90, %c0_91, %c0_92] : memref<10x2x8xf32, #tpu.memory_space<vmem>>, vector<1x2x8xf32>
    %1308 = vector.shape_cast %1307 : vector<1x2x8xf32> to vector<2x8xf32>
    %1309 = arith.addf %1199, %1202 : vector<2x8xf32>
    %1310 = vector.broadcast %1293 : vector<2x1xf32> to vector<2x8xf32>
    %1311 = arith.mulf %1310, %1308 : vector<2x8xf32>
    %1312 = arith.addf %1309, %1311 : vector<2x8xf32>
    %1313 = vector.broadcast %1294 : vector<2x1xf32> to vector<2x8xf32>
    %1314 = arith.mulf %1313, %1308 : vector<2x8xf32>
    %1315 = arith.addf %1202, %1314 : vector<2x8xf32>
    %c10 = arith.constant 10 : index
    %c0_93 = arith.constant 0 : index
    %c0_94 = arith.constant 0 : index
    %1316 = vector.load %arg0[%c10, %c0_93, %c0_94] : memref<12x2x5xf32, #tpu.memory_space<vmem>>, vector<1x2x5xf32>
    %1317 = vector.shape_cast %1316 : vector<1x2x5xf32> to vector<2x5xf32>
    %1318 = vector.extract_strided_slice %1317 {offsets = [0, 0], sizes = [2, 4], strides = [1, 1]} : vector<2x5xf32> to vector<2x4xf32>
    %1319 = vector.extract_strided_slice %1318 {offsets = [0, 0], sizes = [2, 1], strides = [1, 1]} : vector<2x4xf32> to vector<2x1xf32>
    %1320 = vector.broadcast %1319 : vector<2x1xf32> to vector<2x8xf32>
    %1321 = arith.mulf %1320, %3 : vector<2x8xf32>
    %1322 = vector.extract_strided_slice %1318 {offsets = [0, 1], sizes = [2, 1], strides = [1, 1]} : vector<2x4xf32> to vector<2x1xf32>
    %1323 = vector.broadcast %1322 : vector<2x1xf32> to vector<2x8xf32>
    %1324 = arith.mulf %1323, %6 : vector<2x8xf32>
    %1325 = arith.addf %1321, %1324 : vector<2x8xf32>
    %1326 = vector.extract_strided_slice %1318 {offsets = [0, 2], sizes = [2, 1], strides = [1, 1]} : vector<2x4xf32> to vector<2x1xf32>
    %1327 = vector.broadcast %1326 : vector<2x1xf32> to vector<2x8xf32>
    %1328 = arith.mulf %1327, %9 : vector<2x8xf32>
    %1329 = arith.addf %1325, %1328 : vector<2x8xf32>
    %1330 = vector.extract_strided_slice %1318 {offsets = [0, 3], sizes = [2, 1], strides = [1, 1]} : vector<2x4xf32> to vector<2x1xf32>
    %1331 = vector.broadcast %1330 : vector<2x1xf32> to vector<2x8xf32>
    %1332 = arith.mulf %1331, %12 : vector<2x8xf32>
    %1333 = arith.addf %1329, %1332 : vector<2x8xf32>
    %1334 = vector.extract_strided_slice %1245 {offsets = [0, 0], sizes = [2, 1], strides = [1, 1]} : vector<2x2xf32> to vector<2x1xf32>
    %1335 = vector.broadcast %1334 : vector<2x1xf32> to vector<2x8xf32>
    %1336 = arith.mulf %1335, %16 : vector<2x8xf32>
    %1337 = vector.extract_strided_slice %1245 {offsets = [0, 1], sizes = [2, 1], strides = [1, 1]} : vector<2x2xf32> to vector<2x1xf32>
    %1338 = vector.broadcast %1337 : vector<2x1xf32> to vector<2x8xf32>
    %1339 = arith.mulf %1338, %19 : vector<2x8xf32>
    %1340 = arith.addf %1336, %1339 : vector<2x8xf32>
    %1341 = arith.addf %1333, %1340 : vector<2x8xf32>
    %1342 = arith.addf %1341, %22 : vector<2x8xf32>
    %1343 = vector.extract_strided_slice %1342 {offsets = [0, 0], sizes = [2, 6], strides = [1, 1]} : vector<2x8xf32> to vector<2x6xf32>
    %1344 = arith.negf %1343 : vector<2x6xf32>
    %1345 = math.exp %1344 : vector<2x6xf32>
    %cst_95 = arith.constant 1.000000e+00 : f32
    %1346 = vector.broadcast %cst_95 : f32 to vector<2x6xf32>
    %1347 = arith.addf %1346, %1345 : vector<2x6xf32>
    %1348 = arith.divf %1346, %1347 : vector<2x6xf32>
    %1349 = vector.extract_strided_slice %1342 {offsets = [0, 6], sizes = [2, 2], strides = [1, 1]} : vector<2x8xf32> to vector<2x2xf32>
    %1350 = math.tanh %1349 : vector<2x2xf32>
    %1351 = vector.extract_strided_slice %1348 {offsets = [0, 0], sizes = [2, 2], strides = [1, 1]} : vector<2x6xf32> to vector<2x2xf32>
    %1352 = vector.extract_strided_slice %1348 {offsets = [0, 2], sizes = [2, 2], strides = [1, 1]} : vector<2x6xf32> to vector<2x2xf32>
    %1353 = vector.extract_strided_slice %1348 {offsets = [0, 4], sizes = [2, 2], strides = [1, 1]} : vector<2x6xf32> to vector<2x2xf32>
    %1354 = arith.mulf %1352, %1243 : vector<2x2xf32>
    %1355 = arith.mulf %1351, %1350 : vector<2x2xf32>
    %1356 = arith.addf %1354, %1355 : vector<2x2xf32>
    %1357 = math.tanh %1356 : vector<2x2xf32>
    %1358 = arith.mulf %1353, %1357 : vector<2x2xf32>
    %1359 = vector.extract_strided_slice %1358 {offsets = [0, 0], sizes = [2, 1], strides = [1, 1]} : vector<2x2xf32> to vector<2x1xf32>
    %1360 = vector.broadcast %1359 : vector<2x1xf32> to vector<2x8xf32>
    %1361 = arith.mulf %1360, %26 : vector<2x8xf32>
    %1362 = vector.extract_strided_slice %1358 {offsets = [0, 1], sizes = [2, 1], strides = [1, 1]} : vector<2x2xf32> to vector<2x1xf32>
    %1363 = vector.broadcast %1362 : vector<2x1xf32> to vector<2x8xf32>
    %1364 = arith.mulf %1363, %29 : vector<2x8xf32>
    %1365 = arith.addf %1361, %1364 : vector<2x8xf32>
    %1366 = vector.extract_strided_slice %1277 {offsets = [0, 0], sizes = [2, 1], strides = [1, 1]} : vector<2x2xf32> to vector<2x1xf32>
    %1367 = vector.broadcast %1366 : vector<2x1xf32> to vector<2x8xf32>
    %1368 = arith.mulf %1367, %33 : vector<2x8xf32>
    %1369 = vector.extract_strided_slice %1277 {offsets = [0, 1], sizes = [2, 1], strides = [1, 1]} : vector<2x2xf32> to vector<2x1xf32>
    %1370 = vector.broadcast %1369 : vector<2x1xf32> to vector<2x8xf32>
    %1371 = arith.mulf %1370, %36 : vector<2x8xf32>
    %1372 = arith.addf %1368, %1371 : vector<2x8xf32>
    %1373 = arith.addf %1365, %1372 : vector<2x8xf32>
    %1374 = arith.addf %1373, %39 : vector<2x8xf32>
    %1375 = vector.extract_strided_slice %1374 {offsets = [0, 0], sizes = [2, 6], strides = [1, 1]} : vector<2x8xf32> to vector<2x6xf32>
    %1376 = arith.negf %1375 : vector<2x6xf32>
    %1377 = math.exp %1376 : vector<2x6xf32>
    %cst_96 = arith.constant 1.000000e+00 : f32
    %1378 = vector.broadcast %cst_96 : f32 to vector<2x6xf32>
    %1379 = arith.addf %1378, %1377 : vector<2x6xf32>
    %1380 = arith.divf %1378, %1379 : vector<2x6xf32>
    %1381 = vector.extract_strided_slice %1374 {offsets = [0, 6], sizes = [2, 2], strides = [1, 1]} : vector<2x8xf32> to vector<2x2xf32>
    %1382 = math.tanh %1381 : vector<2x2xf32>
    %1383 = vector.extract_strided_slice %1380 {offsets = [0, 0], sizes = [2, 2], strides = [1, 1]} : vector<2x6xf32> to vector<2x2xf32>
    %1384 = vector.extract_strided_slice %1380 {offsets = [0, 2], sizes = [2, 2], strides = [1, 1]} : vector<2x6xf32> to vector<2x2xf32>
    %1385 = vector.extract_strided_slice %1380 {offsets = [0, 4], sizes = [2, 2], strides = [1, 1]} : vector<2x6xf32> to vector<2x2xf32>
    %1386 = arith.mulf %1384, %1275 : vector<2x2xf32>
    %1387 = arith.mulf %1383, %1382 : vector<2x2xf32>
    %1388 = arith.addf %1386, %1387 : vector<2x2xf32>
    %1389 = math.tanh %1388 : vector<2x2xf32>
    %1390 = arith.mulf %1385, %1389 : vector<2x2xf32>
    %1391 = vector.extract_strided_slice %1390 {offsets = [0, 0], sizes = [2, 1], strides = [1, 1]} : vector<2x2xf32> to vector<2x1xf32>
    %1392 = vector.broadcast %1391 : vector<2x1xf32> to vector<2x8xf32>
    %1393 = arith.mulf %1392, %43 : vector<2x8xf32>
    %1394 = vector.extract_strided_slice %1390 {offsets = [0, 1], sizes = [2, 1], strides = [1, 1]} : vector<2x2xf32> to vector<2x1xf32>
    %1395 = vector.broadcast %1394 : vector<2x1xf32> to vector<2x8xf32>
    %1396 = arith.mulf %1395, %46 : vector<2x8xf32>
    %1397 = arith.addf %1393, %1396 : vector<2x8xf32>
    %1398 = arith.addf %1397, %49 : vector<2x8xf32>
    %cst_97 = arith.constant 2.000000e+01 : f32
    %1399 = vector.broadcast %cst_97 : f32 to vector<2x8xf32>
    %1400 = arith.cmpf ogt, %1398, %1399 : vector<2x8xf32>
    %cst_98 = arith.constant 2.000000e+01 : f32
    %1401 = vector.broadcast %cst_98 : f32 to vector<2x8xf32>
    %1402 = arith.minimumf %1398, %1401 : vector<2x8xf32>
    %1403 = math.exp %1402 : vector<2x8xf32>
    %1404 = math.log1p %1403 : vector<2x8xf32>
    %1405 = arith.select %1400, %1398, %1404 : vector<2x8xi1>, vector<2x8xf32>
    %1406 = vector.extract_strided_slice %1405 {offsets = [0, 4], sizes = [2, 1], strides = [1, 1]} : vector<2x8xf32> to vector<2x1xf32>
    %1407 = vector.extract_strided_slice %1405 {offsets = [0, 5], sizes = [2, 1], strides = [1, 1]} : vector<2x8xf32> to vector<2x1xf32>
    %1408 = vector.extract_strided_slice %1405 {offsets = [0, 6], sizes = [2, 1], strides = [1, 1]} : vector<2x8xf32> to vector<2x1xf32>
    %1409 = vector.extract_strided_slice %1398 {offsets = [0, 7], sizes = [2, 1], strides = [1, 1]} : vector<2x8xf32> to vector<2x1xf32>
    %1410 = arith.addf %1312, %1315 : vector<2x8xf32>
    %1411 = vector.broadcast %1409 : vector<2x1xf32> to vector<2x8xf32>
    %1412 = arith.addf %1410, %1411 : vector<2x8xf32>
    %c4_99 = arith.constant 4 : index
    %c0_100 = arith.constant 0 : index
    %c0_101 = arith.constant 0 : index
    %1413 = vector.load %arg2[%c4_99, %c0_100, %c0_101] : memref<10x2x8xf32, #tpu.memory_space<vmem>>, vector<1x2x8xf32>
    %1414 = vector.shape_cast %1413 : vector<1x2x8xf32> to vector<2x8xf32>
    %1415 = vector.broadcast %1408 : vector<2x1xf32> to vector<2x8xf32>
    %1416 = arith.mulf %1415, %1414 : vector<2x8xf32>
    %1417 = arith.addf %1412, %1416 : vector<2x8xf32>
    %cst_102 = arith.constant dense<0.000000e+00> : vector<2xf32>
    %1418 = vector.multi_reduction <add>, %1417, %cst_102 [1] : vector<2x8xf32> to vector<2xf32>
    %1419 = vector.shape_cast %1418 : vector<2xf32> to vector<2x1xf32>
    %c8_103 = arith.constant 8 : index
    %c0_104 = arith.constant 0 : index
    %c0_105 = arith.constant 0 : index
    %1420 = vector.load %arg2[%c8_103, %c0_104, %c0_105] : memref<10x2x8xf32, #tpu.memory_space<vmem>>, vector<1x2x8xf32>
    %1421 = vector.shape_cast %1420 : vector<1x2x8xf32> to vector<2x8xf32>
    %1422 = arith.addf %1312, %1315 : vector<2x8xf32>
    %1423 = vector.broadcast %1406 : vector<2x1xf32> to vector<2x8xf32>
    %1424 = arith.mulf %1423, %1421 : vector<2x8xf32>
    %1425 = arith.addf %1422, %1424 : vector<2x8xf32>
    %1426 = vector.broadcast %1407 : vector<2x1xf32> to vector<2x8xf32>
    %1427 = arith.mulf %1426, %1421 : vector<2x8xf32>
    %1428 = arith.addf %1315, %1427 : vector<2x8xf32>
    %c11 = arith.constant 11 : index
    %c0_106 = arith.constant 0 : index
    %c0_107 = arith.constant 0 : index
    %1429 = vector.load %arg0[%c11, %c0_106, %c0_107] : memref<12x2x5xf32, #tpu.memory_space<vmem>>, vector<1x2x5xf32>
    %1430 = vector.shape_cast %1429 : vector<1x2x5xf32> to vector<2x5xf32>
    %1431 = vector.extract_strided_slice %1430 {offsets = [0, 0], sizes = [2, 4], strides = [1, 1]} : vector<2x5xf32> to vector<2x4xf32>
    %1432 = vector.extract_strided_slice %1431 {offsets = [0, 0], sizes = [2, 1], strides = [1, 1]} : vector<2x4xf32> to vector<2x1xf32>
    %1433 = vector.broadcast %1432 : vector<2x1xf32> to vector<2x8xf32>
    %1434 = arith.mulf %1433, %3 : vector<2x8xf32>
    %1435 = vector.extract_strided_slice %1431 {offsets = [0, 1], sizes = [2, 1], strides = [1, 1]} : vector<2x4xf32> to vector<2x1xf32>
    %1436 = vector.broadcast %1435 : vector<2x1xf32> to vector<2x8xf32>
    %1437 = arith.mulf %1436, %6 : vector<2x8xf32>
    %1438 = arith.addf %1434, %1437 : vector<2x8xf32>
    %1439 = vector.extract_strided_slice %1431 {offsets = [0, 2], sizes = [2, 1], strides = [1, 1]} : vector<2x4xf32> to vector<2x1xf32>
    %1440 = vector.broadcast %1439 : vector<2x1xf32> to vector<2x8xf32>
    %1441 = arith.mulf %1440, %9 : vector<2x8xf32>
    %1442 = arith.addf %1438, %1441 : vector<2x8xf32>
    %1443 = vector.extract_strided_slice %1431 {offsets = [0, 3], sizes = [2, 1], strides = [1, 1]} : vector<2x4xf32> to vector<2x1xf32>
    %1444 = vector.broadcast %1443 : vector<2x1xf32> to vector<2x8xf32>
    %1445 = arith.mulf %1444, %12 : vector<2x8xf32>
    %1446 = arith.addf %1442, %1445 : vector<2x8xf32>
    %1447 = vector.extract_strided_slice %1358 {offsets = [0, 0], sizes = [2, 1], strides = [1, 1]} : vector<2x2xf32> to vector<2x1xf32>
    %1448 = vector.broadcast %1447 : vector<2x1xf32> to vector<2x8xf32>
    %1449 = arith.mulf %1448, %16 : vector<2x8xf32>
    %1450 = vector.extract_strided_slice %1358 {offsets = [0, 1], sizes = [2, 1], strides = [1, 1]} : vector<2x2xf32> to vector<2x1xf32>
    %1451 = vector.broadcast %1450 : vector<2x1xf32> to vector<2x8xf32>
    %1452 = arith.mulf %1451, %19 : vector<2x8xf32>
    %1453 = arith.addf %1449, %1452 : vector<2x8xf32>
    %1454 = arith.addf %1446, %1453 : vector<2x8xf32>
    %1455 = arith.addf %1454, %22 : vector<2x8xf32>
    %1456 = vector.extract_strided_slice %1455 {offsets = [0, 0], sizes = [2, 6], strides = [1, 1]} : vector<2x8xf32> to vector<2x6xf32>
    %1457 = arith.negf %1456 : vector<2x6xf32>
    %1458 = math.exp %1457 : vector<2x6xf32>
    %cst_108 = arith.constant 1.000000e+00 : f32
    %1459 = vector.broadcast %cst_108 : f32 to vector<2x6xf32>
    %1460 = arith.addf %1459, %1458 : vector<2x6xf32>
    %1461 = arith.divf %1459, %1460 : vector<2x6xf32>
    %1462 = vector.extract_strided_slice %1455 {offsets = [0, 6], sizes = [2, 2], strides = [1, 1]} : vector<2x8xf32> to vector<2x2xf32>
    %1463 = math.tanh %1462 : vector<2x2xf32>
    %1464 = vector.extract_strided_slice %1461 {offsets = [0, 0], sizes = [2, 2], strides = [1, 1]} : vector<2x6xf32> to vector<2x2xf32>
    %1465 = vector.extract_strided_slice %1461 {offsets = [0, 2], sizes = [2, 2], strides = [1, 1]} : vector<2x6xf32> to vector<2x2xf32>
    %1466 = vector.extract_strided_slice %1461 {offsets = [0, 4], sizes = [2, 2], strides = [1, 1]} : vector<2x6xf32> to vector<2x2xf32>
    %1467 = arith.mulf %1465, %1356 : vector<2x2xf32>
    %1468 = arith.mulf %1464, %1463 : vector<2x2xf32>
    %1469 = arith.addf %1467, %1468 : vector<2x2xf32>
    %1470 = math.tanh %1469 : vector<2x2xf32>
    %1471 = arith.mulf %1466, %1470 : vector<2x2xf32>
    %1472 = vector.extract_strided_slice %1471 {offsets = [0, 0], sizes = [2, 1], strides = [1, 1]} : vector<2x2xf32> to vector<2x1xf32>
    %1473 = vector.broadcast %1472 : vector<2x1xf32> to vector<2x8xf32>
    %1474 = arith.mulf %1473, %26 : vector<2x8xf32>
    %1475 = vector.extract_strided_slice %1471 {offsets = [0, 1], sizes = [2, 1], strides = [1, 1]} : vector<2x2xf32> to vector<2x1xf32>
    %1476 = vector.broadcast %1475 : vector<2x1xf32> to vector<2x8xf32>
    %1477 = arith.mulf %1476, %29 : vector<2x8xf32>
    %1478 = arith.addf %1474, %1477 : vector<2x8xf32>
    %1479 = vector.extract_strided_slice %1390 {offsets = [0, 0], sizes = [2, 1], strides = [1, 1]} : vector<2x2xf32> to vector<2x1xf32>
    %1480 = vector.broadcast %1479 : vector<2x1xf32> to vector<2x8xf32>
    %1481 = arith.mulf %1480, %33 : vector<2x8xf32>
    %1482 = vector.extract_strided_slice %1390 {offsets = [0, 1], sizes = [2, 1], strides = [1, 1]} : vector<2x2xf32> to vector<2x1xf32>
    %1483 = vector.broadcast %1482 : vector<2x1xf32> to vector<2x8xf32>
    %1484 = arith.mulf %1483, %36 : vector<2x8xf32>
    %1485 = arith.addf %1481, %1484 : vector<2x8xf32>
    %1486 = arith.addf %1478, %1485 : vector<2x8xf32>
    %1487 = arith.addf %1486, %39 : vector<2x8xf32>
    %1488 = vector.extract_strided_slice %1487 {offsets = [0, 0], sizes = [2, 6], strides = [1, 1]} : vector<2x8xf32> to vector<2x6xf32>
    %1489 = arith.negf %1488 : vector<2x6xf32>
    %1490 = math.exp %1489 : vector<2x6xf32>
    %cst_109 = arith.constant 1.000000e+00 : f32
    %1491 = vector.broadcast %cst_109 : f32 to vector<2x6xf32>
    %1492 = arith.addf %1491, %1490 : vector<2x6xf32>
    %1493 = arith.divf %1491, %1492 : vector<2x6xf32>
    %1494 = vector.extract_strided_slice %1487 {offsets = [0, 6], sizes = [2, 2], strides = [1, 1]} : vector<2x8xf32> to vector<2x2xf32>
    %1495 = math.tanh %1494 : vector<2x2xf32>
    %1496 = vector.extract_strided_slice %1493 {offsets = [0, 0], sizes = [2, 2], strides = [1, 1]} : vector<2x6xf32> to vector<2x2xf32>
    %1497 = vector.extract_strided_slice %1493 {offsets = [0, 2], sizes = [2, 2], strides = [1, 1]} : vector<2x6xf32> to vector<2x2xf32>
    %1498 = vector.extract_strided_slice %1493 {offsets = [0, 4], sizes = [2, 2], strides = [1, 1]} : vector<2x6xf32> to vector<2x2xf32>
    %1499 = arith.mulf %1497, %1388 : vector<2x2xf32>
    %1500 = arith.mulf %1496, %1495 : vector<2x2xf32>
    %1501 = arith.addf %1499, %1500 : vector<2x2xf32>
    %1502 = math.tanh %1501 : vector<2x2xf32>
    %1503 = arith.mulf %1498, %1502 : vector<2x2xf32>
    %1504 = vector.extract_strided_slice %1503 {offsets = [0, 0], sizes = [2, 1], strides = [1, 1]} : vector<2x2xf32> to vector<2x1xf32>
    %1505 = vector.broadcast %1504 : vector<2x1xf32> to vector<2x8xf32>
    %1506 = arith.mulf %1505, %43 : vector<2x8xf32>
    %1507 = vector.extract_strided_slice %1503 {offsets = [0, 1], sizes = [2, 1], strides = [1, 1]} : vector<2x2xf32> to vector<2x1xf32>
    %1508 = vector.broadcast %1507 : vector<2x1xf32> to vector<2x8xf32>
    %1509 = arith.mulf %1508, %46 : vector<2x8xf32>
    %1510 = arith.addf %1506, %1509 : vector<2x8xf32>
    %1511 = arith.addf %1510, %49 : vector<2x8xf32>
    %cst_110 = arith.constant 2.000000e+01 : f32
    %1512 = vector.broadcast %cst_110 : f32 to vector<2x8xf32>
    %1513 = arith.cmpf ogt, %1511, %1512 : vector<2x8xf32>
    %cst_111 = arith.constant 2.000000e+01 : f32
    %1514 = vector.broadcast %cst_111 : f32 to vector<2x8xf32>
    %1515 = arith.minimumf %1511, %1514 : vector<2x8xf32>
    %1516 = math.exp %1515 : vector<2x8xf32>
    %1517 = math.log1p %1516 : vector<2x8xf32>
    %1518 = arith.select %1513, %1511, %1517 : vector<2x8xi1>, vector<2x8xf32>
    %1519 = vector.extract_strided_slice %1518 {offsets = [0, 6], sizes = [2, 1], strides = [1, 1]} : vector<2x8xf32> to vector<2x1xf32>
    %1520 = vector.extract_strided_slice %1511 {offsets = [0, 7], sizes = [2, 1], strides = [1, 1]} : vector<2x8xf32> to vector<2x1xf32>
    %1521 = arith.addf %1425, %1428 : vector<2x8xf32>
    %1522 = vector.broadcast %1520 : vector<2x1xf32> to vector<2x8xf32>
    %1523 = arith.addf %1521, %1522 : vector<2x8xf32>
    %c5_112 = arith.constant 5 : index
    %c0_113 = arith.constant 0 : index
    %c0_114 = arith.constant 0 : index
    %1524 = vector.load %arg2[%c5_112, %c0_113, %c0_114] : memref<10x2x8xf32, #tpu.memory_space<vmem>>, vector<1x2x8xf32>
    %1525 = vector.shape_cast %1524 : vector<1x2x8xf32> to vector<2x8xf32>
    %1526 = vector.broadcast %1519 : vector<2x1xf32> to vector<2x8xf32>
    %1527 = arith.mulf %1526, %1525 : vector<2x8xf32>
    %1528 = arith.addf %1523, %1527 : vector<2x8xf32>
    %cst_115 = arith.constant dense<0.000000e+00> : vector<2xf32>
    %1529 = vector.multi_reduction <add>, %1528, %cst_115 [1] : vector<2x8xf32> to vector<2xf32>
    %1530 = vector.shape_cast %1529 : vector<2xf32> to vector<2x1xf32>
    %1531 = tpu.concatenate %1193, %1306, %1419, %1530 in 1 : vector<2x1xf32>, vector<2x1xf32>, vector<2x1xf32>, vector<2x1xf32> -> vector<2x4xf32>
    %cst_116 = arith.constant 1.250000e-01 : f32
    %1532 = vector.broadcast %cst_116 : f32 to vector<2x4xf32>
    %1533 = arith.mulf %1531, %1532 : vector<2x4xf32>
    %c0_117 = arith.constant 0 : index
    %c0_118 = arith.constant 0 : index
    %1534 = vector.load %arg3[%c0_117, %c0_118] : memref<2x4xf32, #tpu.memory_space<vmem>>, vector<2x4xf32>
    tpu.vector_store %arg3[%c0_117, %c0_118], %1533 {strides = array<i32>} : memref<2x4xf32, #tpu.memory_space<vmem>>, vector<2x4xf32>,
    return
  }
}

</mosaic_0001>

<llo_original>
// kernel: deepstate_forward.1
$region0: #{deepstate_forward.1}
  #allocation0 [shape = 'u32[]', space=smem, size = 0x4, offset = 0x4, fixed_abs, tag = 'smem constant byte address 0x4 - core index']
  #allocation1 [shape = 'u32[144,128]{1,0:T(1,128)}', space=vmem, size = 0x12000, scoped, tag = 'internal scratch']
  %s0 = inlined_call_operand.vmem [shape: f32[12,2,5], index: 0, kind: input, shape index: {}]
  %s1 = inlined_call_operand.vmem [shape: f32[64,8], index: 1, kind: input, shape index: {}]
  %s2 = inlined_call_operand.vmem [shape: f32[10,2,8], index: 2, kind: input, shape index: {}]
  %s3 = inlined_call_operand.hbm [shape: f32[2,4], index: 3, kind: output, shape index: {}]
  %s4 = sld [smem:[#allocation0]]
  $region22: #{deepstate_forward.1} parent=0
    _
  %s6 = ssub.s32 1, %s4
  %s7 = scalar_select 0, %s6, %s4
  $region1: #{deepstate_forward.1} parent=0
    #allocation2 [shape = 'u8[1024]{0}', space=vmem, size = 0x400, scoped, tag = 'output window, operand 0, single buffered']
    #allocation3 [shape = 's32[1]{0}', space=sflag, size = 0x4, scoped, tag = 'scoped memory for deepstate_forward.1']
    %8 = vsyncpa [#allocation3], 0
    // Predicated region
    $region2: #{deepstate_forward.1} parent=1 // pred_check
      _
    $region3: #{deepstate_forward.1} parent=1 // pred_check_branch
      %10 = sbr.rel (0) target = $region5
    $region4: #{deepstate_forward.1} parent=1 // pred_region
      _
    $region5: #{deepstate_forward.1} parent=1 // pred_fallthru
      _
    // Predicated region
    $region6: #{deepstate_forward.1} parent=1 // pred_check
      _
    $region7: #{deepstate_forward.1} parent=1 // pred_check_branch
      %12 = sbr.rel (0) target = $region9
    $region8: #{deepstate_forward.1} parent=1 // pred_region
      _
    $region9: #{deepstate_forward.1} parent=1 // pred_fallthru
      _
    // Predicated region
    $region10: #{deepstate_forward.1} parent=1 // pred_check
      _
    $region11: #{deepstate_forward.1} parent=1 // pred_check_branch
      %14 = sbr.rel (0) target = $region13
    $region12: #{deepstate_forward.1} parent=1 // pred_region
      _
    $region13: #{deepstate_forward.1} parent=1 // pred_fallthru
      _
    %v15 = vld [vmem:[%s1] sm:$0xf]
    %v16 = vlaneseq
    %v17 = vshrl.u32 %v16, 7
    %v18 = vsub.s32 0, %v17
    %v19 = vrot.slane %v15, %v18
    %v20 = vlaneseq
    %v21 = vshrl.u32 %v20, 7
    %v22 = vsub.s32 1, %v21
    %v23 = vrot.slane %v15, %v22
    %v24 = vlaneseq
    %v25 = vshrl.u32 %v24, 7
    %v26 = vsub.s32 2, %v25
    %v27 = vrot.slane %v15, %v26
    %v28 = vlaneseq
    %v29 = vshrl.u32 %v28, 7
    %v30 = vsub.s32 3, %v29
    %v31 = vrot.slane %v15, %v30
    %v32 = vld [vmem:[%s1 + $0x8] sm:$0x3]
    %v33 = vlaneseq
    %v34 = vshrl.u32 %v33, 7
    %v35 = vsub.s32 0, %v34
    %v36 = vrot.slane %v32, %v35
    %v37 = vlaneseq
    %v38 = vshrl.u32 %v37, 7
    %v39 = vsub.s32 1, %v38
    %v40 = vrot.slane %v32, %v39
    %v41 = vld [vmem:[%s1 + $0x10] sm:$0x1]
    %v42 = vlaneseq
    %v43 = vshrl.u32 %v42, 7
    %v44 = vsub.s32 0, %v43
    %v45 = vrot.slane %v41, %v44
    %v46 = vld [vmem:[%s1 + $0x18] sm:$0x3]
    %v47 = vlaneseq
    %v48 = vshrl.u32 %v47, 7
    %v49 = vsub.s32 0, %v48
    %v50 = vrot.slane %v46, %v49
    %v51 = vlaneseq
    %v52 = vshrl.u32 %v51, 7
    %v53 = vsub.s32 1, %v52
    %v54 = vrot.slane %v46, %v53
    %v55 = vld [vmem:[%s1 + $0x20] sm:$0x3]
    %v56 = vlaneseq
    %v57 = vshrl.u32 %v56, 7
    %v58 = vsub.s32 0, %v57
    %v59 = vrot.slane %v55, %v58
    %v60 = vlaneseq
    %v61 = vshrl.u32 %v60, 7
    %v62 = vsub.s32 1, %v61
    %v63 = vrot.slane %v55, %v62
    %v64 = vld [vmem:[%s1 + $0x28] sm:$0x1]
    %v65 = vlaneseq
    %v66 = vshrl.u32 %v65, 7
    %v67 = vsub.s32 0, %v66
    %v68 = vrot.slane %v64, %v67
    %v69 = vld [vmem:[%s1 + $0x30] sm:$0x3]
    %v70 = vlaneseq
    %v71 = vshrl.u32 %v70, 7
    %v72 = vsub.s32 0, %v71
    %v73 = vrot.slane %v69, %v72
    %v74 = vlaneseq
    %v75 = vshrl.u32 %v74, 7
    %v76 = vsub.s32 1, %v75
    %v77 = vrot.slane %v69, %v76
    %v78 = vld [vmem:[%s1 + $0x38] sm:$0x1]
    %v79 = vlaneseq
    %v80 = vshrl.u32 %v79, 7
    %v81 = vsub.s32 0, %v80
    %v82 = vrot.slane %v78, %v81
    %v83 = vld [vmem:[%s0] sm:$0x3]
    %85 = vset.pattern.permute.xlu0 0
    %86 = vperm.xlu0 %85, %v83
    %v87 = vpop.permute.xlu0 %86
    %v89 = vmul.f32 %v87, %v19
    %90 = vset.pattern.permute.xlu0 1
    %91 = vperm.xlu0 %90, %v83
    %v92 = vpop.permute.xlu0 %91
    %v94 = vmul.f32 %v92, %v23
    %v95 = vadd.f32 %v89, %v94
    %96 = vset.pattern.permute.xlu0 2
    %97 = vperm.xlu0 %96, %v83
    %v98 = vpop.permute.xlu0 %97
    %v100 = vmul.f32 %v98, %v27
    %v101 = vadd.f32 %v95, %v100
    %102 = vset.pattern.permute.xlu0 3
    %103 = vperm.xlu0 %102, %v83
    %v104 = vpop.permute.xlu0 %103
    %v106 = vmul.f32 %v104, %v31
    %v107 = vadd.f32 %v101, %v106
    %v108 = vmul.f32 %v36, 0.0
    %v109 = vmul.f32 %v40, 0.0
    %v110 = vadd.f32 %v108, %v109
    %v111 = vadd.f32 %v107, %v110
    %v112 = vadd.f32 %v111, %v45
    %v113 = vxor.u32 %v112, 2147483648
    %v114 = vmul.f32 %v113, 1.442695
    %v115 = vpow.pop %v114
    %v116 = vadd.f32 %v115, 1.0
    %v117 = vrcp.pop %v116
    %v118 = vmul.f32 1.0, %v117
    %v119 = vtanh.pop %v112
    %v120 = vmul.f32 %v118, 0.0
    %122 = vrot.lane.b32.xlu0 %v119, 122
    %v123 = vpop.permute.xlu0 %122
    %v125 = vmul.f32 %v118, %v123
    %127 = vrot.lane.b32.xlu0 %v125, 2
    %v128 = vpop.permute.xlu0 %127
    %v130 = vadd.f32 %v120, %v128
    %v131 = vtanh.pop %v130
    %133 = vrot.lane.b32.xlu0 %v131, 2
    %v134 = vpop.permute.xlu0 %133
    %v136 = vmul.f32 %v118, %v134
    %138 = vset.pattern.permute.xlu0 4
    %139 = vperm.xlu0 %138, %v136
    %v140 = vpop.permute.xlu0 %139
    %v142 = vmul.f32 %v140, %v50
    %143 = vset.pattern.permute.xlu0 5
    %144 = vperm.xlu0 %143, %v136
    %v145 = vpop.permute.xlu0 %144
    %v147 = vmul.f32 %v145, %v54
    %v148 = vadd.f32 %v142, %v147
    %v149 = vmul.f32 %v59, 0.0
    %v150 = vmul.f32 %v63, 0.0
    %v151 = vadd.f32 %v149, %v150
    %v152 = vadd.f32 %v148, %v151
    %v153 = vadd.f32 %v152, %v68
    %v154 = vxor.u32 %v153, 2147483648
    %v155 = vmul.f32 %v154, 1.442695
    %v156 = vpow.pop %v155
    %v157 = vadd.f32 %v156, 1.0
    %v158 = vrcp.pop %v157
    %v159 = vmul.f32 1.0, %v158
    %v160 = vtanh.pop %v153
    %v161 = vmul.f32 %v159, 0.0
    %163 = vrot.lane.b32.xlu0 %v160, 122
    %v164 = vpop.permute.xlu0 %163
    %v166 = vmul.f32 %v159, %v164
    %168 = vrot.lane.b32.xlu0 %v166, 2
    %v169 = vpop.permute.xlu0 %168
    %v171 = vadd.f32 %v161, %v169
    %v172 = vtanh.pop %v171
    %174 = vrot.lane.b32.xlu0 %v172, 2
    %v175 = vpop.permute.xlu0 %174
    %v177 = vmul.f32 %v159, %v175
    %179 = vset.pattern.permute.xlu0 4
    %180 = vperm.xlu0 %179, %v177
    %v181 = vpop.permute.xlu0 %180
    %v183 = vmul.f32 %v181, %v73
    %184 = vset.pattern.permute.xlu0 5
    %185 = vperm.xlu0 %184, %v177
    %v186 = vpop.permute.xlu0 %185
    %v188 = vmul.f32 %v186, %v77
    %v189 = vadd.f32 %v183, %v188
    %v190 = vadd.f32 %v189, %v82
    %vm191 = vcmp.gt.f32.partialorder %v190, 20.0
    %v192 = vmin.f32 %v190, 20.0
    %v193 = vmul.f32 %v192, 1.442695
    %v194 = vpow.pop %v193
    %v195 = vadd.f32 %v194, 1.0
    %v196 = vlog2.pop %v195
    %v197 = vmul.f32 %v196, 0.6931472
    %v198 = vmul.f32 -0.5, %v194
    %v199 = vadd.f32 %v198, 1.0
    %v200 = vmul.f32 %v199, %v194
    %v201 = vand.u32 2147483647, %v194
    %vm202 = vcmp.lt.f32.partialorder %v201, 0.0004427343
    %v203 = vsel %vm202, %v200, %v197
    %v204 = vsel %vm191, %v190, %v203
    %v205 = vmul.f32 %v204, %v204
    %207 = vrot.lane.b32.xlu0 %v190, 127
    %v208 = vpop.permute.xlu0 %207
    %v210 = vadd.f32 %v190, %v208
    %211 = vrot.lane.b32.xlu0 %v190, 121
    %v212 = vpop.permute.xlu0 %211
    %v214 = vadd.f32 %v210, %v212
    %216 = vrot.lane.b32.xlu0 %v214, 4
    %v217 = vpop.permute.xlu0 %216
    %v219 = vsub.f32 %v83, %v217
    %v220 = vadd.f32 %v205, 0.0
    %222 = vrot.lane.b32.xlu0 %v220, 127
    %v223 = vpop.permute.xlu0 %222
    %v225 = vadd.f32 %v220, %v223
    %227 = vrot.lane.b32.xlu0 %v205, 124
    %v228 = vpop.permute.xlu0 %227
    %v230 = vadd.f32 %v225, %v228
    %v231 = vrcp.pop %v230
    %v232 = vmul.f32 %v220, %v231
    %234 = vrot.lane.b32.xlu0 %v231, 1
    %v235 = vpop.permute.xlu0 %234
    %v237 = vmul.f32 %v220, %v235
    %239 = vrot.lane.b32.xlu0 %v219, 126
    %v240 = vpop.permute.xlu0 %239
    %v242 = vmul.f32 %v232, %v240
    %244 = vrot.lane.b32.xlu0 %v242, 126
    %v245 = vpop.permute.xlu0 %244
    %v247 = vadd.f32 %v190, %v245
    %248 = vrot.lane.b32.xlu0 %v219, 127
    %v249 = vpop.permute.xlu0 %248
    %v251 = vmul.f32 %v237, %v249
    %253 = vrot.lane.b32.xlu0 %v251, 126
    %v254 = vpop.permute.xlu0 %253
    %v256 = vadd.f32 %v190, %v254
    %v257 = vmul.f32 %v232, %v220
    %v258 = vsub.f32 %v205, %v257
    %v259 = vmul.f32 %v232, %v223
    %v260 = vsub.f32 0.0, %v259
    %v261 = vmul.f32 %v237, %v220
    %v262 = vsub.f32 %v205, %v261
    %264 = vrot.lane.b32.xlu0 %v262, 127
    %v265 = vpop.permute.xlu0 %264
    %v267 = vadd.f32 %v260, %v265
    %269 = vrot.lane.b32.xlu0 %v256, 127
    %v270 = vpop.permute.xlu0 %269
    %v272 = vadd.f32 %v247, %v270
    %v273 = vadd.f32 %v258, %v260
    %v274 = vadd.f32 %v273, %v267
    %275 = vrot.lane.b32.xlu0 %v205, 126
    %v276 = vpop.permute.xlu0 %275
    %v278 = vadd.f32 %v274, %v276
    %280 = vrot.lane.b32.xlu0 %v204, 127
    %v281 = vpop.permute.xlu0 %280
    %v283 = vmul.f32 %v204, %v281
    %285 = vrot.lane.b32.xlu0 %v283, 126
    %v286 = vpop.permute.xlu0 %285
    %v288 = vadd.f32 %v267, %v286
    %v289 = vadd.f32 %v262, %v276
    %s290 = scalar_lea.vmem %s0, 2
    %v291 = vld [vmem:[%s290] sm:$0x3]
    %293 = vset.pattern.permute.xlu0 0
    %294 = vperm.xlu0 %293, %v291
    %v295 = vpop.permute.xlu0 %294
    %v297 = vmul.f32 %v295, %v19
    %298 = vset.pattern.permute.xlu0 1
    %299 = vperm.xlu0 %298, %v291
    %v300 = vpop.permute.xlu0 %299
    %v302 = vmul.f32 %v300, %v23
    %v303 = vadd.f32 %v297, %v302
    %304 = vset.pattern.permute.xlu0 2
    %305 = vperm.xlu0 %304, %v291
    %v306 = vpop.permute.xlu0 %305
    %v308 = vmul.f32 %v306, %v27
    %v309 = vadd.f32 %v303, %v308
    %310 = vset.pattern.permute.xlu0 3
    %311 = vperm.xlu0 %310, %v291
    %v312 = vpop.permute.xlu0 %311
    %v314 = vmul.f32 %v312, %v31
    %v315 = vadd.f32 %v309, %v314
    %v316 = vmul.f32 %v140, %v36
    %v317 = vmul.f32 %v145, %v40
    %v318 = vadd.f32 %v316, %v317
    %v319 = vadd.f32 %v315, %v318
    %v320 = vadd.f32 %v319, %v45
    %v321 = vxor.u32 %v320, 2147483648
    %v322 = vmul.f32 %v321, 1.442695
    %v323 = vpow.pop %v322
    %v324 = vadd.f32 %v323, 1.0
    %v325 = vrcp.pop %v324
    %v326 = vmul.f32 1.0, %v325
    %v327 = vtanh.pop %v320
    %v328 = vmul.f32 %v326, %v130
    %330 = vrot.lane.b32.xlu0 %v327, 122
    %v331 = vpop.permute.xlu0 %330
    %v333 = vmul.f32 %v326, %v331
    %335 = vrot.lane.b32.xlu0 %v333, 2
    %v336 = vpop.permute.xlu0 %335
    %v338 = vadd.f32 %v328, %v336
    %v339 = vtanh.pop %v338
    %341 = vrot.lane.b32.xlu0 %v339, 2
    %v342 = vpop.permute.xlu0 %341
    %v344 = vmul.f32 %v326, %v342
    %346 = vset.pattern.permute.xlu0 4
    %347 = vperm.xlu0 %346, %v344
    %v348 = vpop.permute.xlu0 %347
    %v350 = vmul.f32 %v348, %v50
    %351 = vset.pattern.permute.xlu0 5
    %352 = vperm.xlu0 %351, %v344
    %v353 = vpop.permute.xlu0 %352
    %v355 = vmul.f32 %v353, %v54
    %v356 = vadd.f32 %v350, %v355
    %v357 = vmul.f32 %v181, %v59
    %v358 = vmul.f32 %v186, %v63
    %v359 = vadd.f32 %v357, %v358
    %v360 = vadd.f32 %v356, %v359
    %v361 = vadd.f32 %v360, %v68
    %v362 = vxor.u32 %v361, 2147483648
    %v363 = vmul.f32 %v362, 1.442695
    %v364 = vpow.pop %v363
    %v365 = vadd.f32 %v364, 1.0
    %v366 = vrcp.pop %v365
    %v367 = vmul.f32 1.0, %v366
    %v368 = vtanh.pop %v361
    %v369 = vmul.f32 %v367, %v171
    %371 = vrot.lane.b32.xlu0 %v368, 122
    %v372 = vpop.permute.xlu0 %371
    %v374 = vmul.f32 %v367, %v372
    %376 = vrot.lane.b32.xlu0 %v374, 2
    %v377 = vpop.permute.xlu0 %376
    %v379 = vadd.f32 %v369, %v377
    %v380 = vtanh.pop %v379
    %382 = vrot.lane.b32.xlu0 %v380, 2
    %v383 = vpop.permute.xlu0 %382
    %v385 = vmul.f32 %v367, %v383
    %387 = vset.pattern.permute.xlu0 4
    %388 = vperm.xlu0 %387, %v385
    %v389 = vpop.permute.xlu0 %388
    %v391 = vmul.f32 %v389, %v73
    %392 = vset.pattern.permute.xlu0 5
    %393 = vperm.xlu0 %392, %v385
    %v394 = vpop.permute.xlu0 %393
    %v396 = vmul.f32 %v394, %v77
    %v397 = vadd.f32 %v391, %v396
    %v398 = vadd.f32 %v397, %v82
    %vm399 = vcmp.gt.f32.partialorder %v398, 20.0
    %v400 = vmin.f32 %v398, 20.0
    %v401 = vmul.f32 %v400, 1.442695
    %v402 = vpow.pop %v401
    %v403 = vadd.f32 %v402, 1.0
    %v404 = vlog2.pop %v403
    %v405 = vmul.f32 %v404, 0.6931472
    %v406 = vmul.f32 -0.5, %v402
    %v407 = vadd.f32 %v406, 1.0
    %v408 = vmul.f32 %v407, %v402
    %v409 = vand.u32 2147483647, %v402
    %vm410 = vcmp.lt.f32.partialorder %v409, 0.0004427343
    %v411 = vsel %vm410, %v408, %v405
    %v412 = vsel %vm399, %v398, %v411
    %v413 = vadd.f32 %v272, %v270
    %415 = vrot.lane.b32.xlu0 %v398, 121
    %v416 = vpop.permute.xlu0 %415
    %v418 = vadd.f32 %v413, %v416
    %420 = vrot.lane.b32.xlu0 %v418, 4
    %v421 = vpop.permute.xlu0 %420
    %v423 = vsub.f32 %v291, %v421
    %v424 = vadd.f32 %v278, %v288
    %426 = vrot.lane.b32.xlu0 %v289, 127
    %v427 = vpop.permute.xlu0 %426
    %v429 = vadd.f32 %v288, %v427
    %v430 = vadd.f32 %v424, %v429
    %v431 = vmul.f32 %v412, %v412
    %433 = vrot.lane.b32.xlu0 %v431, 124
    %v434 = vpop.permute.xlu0 %433
    %v436 = vadd.f32 %v430, %v434
    %v437 = vrcp.pop %v436
    %v438 = vmul.f32 %v424, %v437
    %v439 = vmul.f32 %v429, %v437
    %441 = vrot.lane.b32.xlu0 %v423, 126
    %v442 = vpop.permute.xlu0 %441
    %v444 = vmul.f32 %v438, %v442
    %446 = vrot.lane.b32.xlu0 %v444, 126
    %v447 = vpop.permute.xlu0 %446
    %v449 = vadd.f32 %v272, %v447
    %v450 = vmul.f32 %v439, %v442
    %452 = vrot.lane.b32.xlu0 %v450, 127
    %v453 = vpop.permute.xlu0 %452
    %v455 = vadd.f32 %v256, %v453
    %v456 = vmul.f32 %v438, %v424
    %v457 = vsub.f32 %v278, %v456
    %v458 = vmul.f32 %v438, %v429
    %v459 = vsub.f32 %v288, %v458
    %v460 = vmul.f32 %v439, %v429
    %462 = vrot.lane.b32.xlu0 %v460, 1
    %v463 = vpop.permute.xlu0 %462
    %v465 = vsub.f32 %v289, %v463
    %467 = vrot.lane.b32.xlu0 %v465, 127
    %v468 = vpop.permute.xlu0 %467
    %v470 = vadd.f32 %v459, %v468
    %472 = vrot.lane.b32.xlu0 %v455, 127
    %v473 = vpop.permute.xlu0 %472
    %v475 = vadd.f32 %v449, %v473
    %v476 = vadd.f32 %v457, %v459
    %v477 = vadd.f32 %v476, %v470
    %478 = vrot.lane.b32.xlu0 %v431, 126
    %v479 = vpop.permute.xlu0 %478
    %v481 = vadd.f32 %v477, %v479
    %483 = vrot.lane.b32.xlu0 %v412, 127
    %v484 = vpop.permute.xlu0 %483
    %v486 = vmul.f32 %v412, %v484
    %488 = vrot.lane.b32.xlu0 %v486, 126
    %v489 = vpop.permute.xlu0 %488
    %v491 = vadd.f32 %v470, %v489
    %v492 = vadd.f32 %v465, %v479
    %s493 = scalar_lea.vmem %s0, 4
    %v494 = vld [vmem:[%s493] sm:$0x3]
    %496 = vset.pattern.permute.xlu0 0
    %497 = vperm.xlu0 %496, %v494
    %v498 = vpop.permute.xlu0 %497
    %v500 = vmul.f32 %v498, %v19
    %501 = vset.pattern.permute.xlu0 1
    %502 = vperm.xlu0 %501, %v494
    %v503 = vpop.permute.xlu0 %502
    %v505 = vmul.f32 %v503, %v23
    %v506 = vadd.f32 %v500, %v505
    %507 = vset.pattern.permute.xlu0 2
    %508 = vperm.xlu0 %507, %v494
    %v509 = vpop.permute.xlu0 %508
    %v511 = vmul.f32 %v509, %v27
    %v512 = vadd.f32 %v506, %v511
    %513 = vset.pattern.permute.xlu0 3
    %514 = vperm.xlu0 %513, %v494
    %v515 = vpop.permute.xlu0 %514
    %v517 = vmul.f32 %v515, %v31
    %v518 = vadd.f32 %v512, %v517
    %v519 = vmul.f32 %v348, %v36
    %v520 = vmul.f32 %v353, %v40
    %v521 = vadd.f32 %v519, %v520
    %v522 = vadd.f32 %v518, %v521
    %v523 = vadd.f32 %v522, %v45
    %v524 = vxor.u32 %v523, 2147483648
    %v525 = vmul.f32 %v524, 1.442695
    %v526 = vpow.pop %v525
    %v527 = vadd.f32 %v526, 1.0
    %v528 = vrcp.pop %v527
    %v529 = vmul.f32 1.0, %v528
    %v530 = vtanh.pop %v523
    %v531 = vmul.f32 %v529, %v338
    %533 = vrot.lane.b32.xlu0 %v530, 122
    %v534 = vpop.permute.xlu0 %533
    %v536 = vmul.f32 %v529, %v534
    %538 = vrot.lane.b32.xlu0 %v536, 2
    %v539 = vpop.permute.xlu0 %538
    %v541 = vadd.f32 %v531, %v539
    %v542 = vtanh.pop %v541
    %544 = vrot.lane.b32.xlu0 %v542, 2
    %v545 = vpop.permute.xlu0 %544
    %v547 = vmul.f32 %v529, %v545
    %549 = vset.pattern.permute.xlu0 4
    %550 = vperm.xlu0 %549, %v547
    %v551 = vpop.permute.xlu0 %550
    %v553 = vmul.f32 %v551, %v50
    %554 = vset.pattern.permute.xlu0 5
    %555 = vperm.xlu0 %554, %v547
    %v556 = vpop.permute.xlu0 %555
    %v558 = vmul.f32 %v556, %v54
    %v559 = vadd.f32 %v553, %v558
    %v560 = vmul.f32 %v389, %v59
    %v561 = vmul.f32 %v394, %v63
    %v562 = vadd.f32 %v560, %v561
    %v563 = vadd.f32 %v559, %v562
    %v564 = vadd.f32 %v563, %v68
    %v565 = vxor.u32 %v564, 2147483648
    %v566 = vmul.f32 %v565, 1.442695
    %v567 = vpow.pop %v566
    %v568 = vadd.f32 %v567, 1.0
    %v569 = vrcp.pop %v568
    %v570 = vmul.f32 1.0, %v569
    %v571 = vtanh.pop %v564
    %v572 = vmul.f32 %v570, %v379
    %574 = vrot.lane.b32.xlu0 %v571, 122
    %v575 = vpop.permute.xlu0 %574
    %v577 = vmul.f32 %v570, %v575
    %579 = vrot.lane.b32.xlu0 %v577, 2
    %v580 = vpop.permute.xlu0 %579
    %v582 = vadd.f32 %v572, %v580
    %v583 = vtanh.pop %v582
    %585 = vrot.lane.b32.xlu0 %v583, 2
    %v586 = vpop.permute.xlu0 %585
    %v588 = vmul.f32 %v570, %v586
    %590 = vset.pattern.permute.xlu0 4
    %591 = vperm.xlu0 %590, %v588
    %v592 = vpop.permute.xlu0 %591
    %v594 = vmul.f32 %v592, %v73
    %595 = vset.pattern.permute.xlu0 5
    %596 = vperm.xlu0 %595, %v588
    %v597 = vpop.permute.xlu0 %596
    %v599 = vmul.f32 %v597, %v77
    %v600 = vadd.f32 %v594, %v599
    %v601 = vadd.f32 %v600, %v82
    %vm602 = vcmp.gt.f32.partialorder %v601, 20.0
    %v603 = vmin.f32 %v601, 20.0
    %v604 = vmul.f32 %v603, 1.442695
    %v605 = vpow.pop %v604
    %v606 = vadd.f32 %v605, 1.0
    %v607 = vlog2.pop %v606
    %v608 = vmul.f32 %v607, 0.6931472
    %v609 = vmul.f32 -0.5, %v605
    %v610 = vadd.f32 %v609, 1.0
    %v611 = vmul.f32 %v610, %v605
    %v612 = vand.u32 2147483647, %v605
    %vm613 = vcmp.lt.f32.partialorder %v612, 0.0004427343
    %v614 = vsel %vm613, %v611, %v608
    %v615 = vsel %vm602, %v601, %v614
    %v616 = vadd.f32 %v475, %v473
    %618 = vrot.lane.b32.xlu0 %v601, 121
    %v619 = vpop.permute.xlu0 %618
    %v621 = vadd.f32 %v616, %v619
    %623 = vrot.lane.b32.xlu0 %v621, 4
    %v624 = vpop.permute.xlu0 %623
    %v626 = vsub.f32 %v494, %v624
    %v627 = vadd.f32 %v481, %v491
    %629 = vrot.lane.b32.xlu0 %v492, 127
    %v630 = vpop.permute.xlu0 %629
    %v632 = vadd.f32 %v491, %v630
    %v633 = vadd.f32 %v627, %v632
    %v634 = vmul.f32 %v615, %v615
    %636 = vrot.lane.b32.xlu0 %v634, 124
    %v637 = vpop.permute.xlu0 %636
    %v639 = vadd.f32 %v633, %v637
    %v640 = vrcp.pop %v639
    %v641 = vmul.f32 %v627, %v640
    %v642 = vmul.f32 %v632, %v640
    %644 = vrot.lane.b32.xlu0 %v626, 126
    %v645 = vpop.permute.xlu0 %644
    %v647 = vmul.f32 %v641, %v645
    %649 = vrot.lane.b32.xlu0 %v647, 126
    %v650 = vpop.permute.xlu0 %649
    %v652 = vadd.f32 %v475, %v650
    %v653 = vmul.f32 %v642, %v645
    %655 = vrot.lane.b32.xlu0 %v653, 127
    %v656 = vpop.permute.xlu0 %655
    %v658 = vadd.f32 %v455, %v656
    %v659 = vmul.f32 %v641, %v627
    %v660 = vsub.f32 %v481, %v659
    %v661 = vmul.f32 %v641, %v632
    %v662 = vsub.f32 %v491, %v661
    %v663 = vmul.f32 %v642, %v632
    %665 = vrot.lane.b32.xlu0 %v663, 1
    %v666 = vpop.permute.xlu0 %665
    %v668 = vsub.f32 %v492, %v666
    %670 = vrot.lane.b32.xlu0 %v668, 127
    %v671 = vpop.permute.xlu0 %670
    %v673 = vadd.f32 %v662, %v671
    %675 = vrot.lane.b32.xlu0 %v658, 127
    %v676 = vpop.permute.xlu0 %675
    %v678 = vadd.f32 %v652, %v676
    %v679 = vadd.f32 %v660, %v662
    %v680 = vadd.f32 %v679, %v673
    %681 = vrot.lane.b32.xlu0 %v634, 126
    %v682 = vpop.permute.xlu0 %681
    %v684 = vadd.f32 %v680, %v682
    %686 = vrot.lane.b32.xlu0 %v615, 127
    %v687 = vpop.permute.xlu0 %686
    %v689 = vmul.f32 %v615, %v687
    %691 = vrot.lane.b32.xlu0 %v689, 126
    %v692 = vpop.permute.xlu0 %691
    %v694 = vadd.f32 %v673, %v692
    %v695 = vadd.f32 %v668, %v682
    %s696 = scalar_lea.vmem %s0, 6
    %v697 = vld [vmem:[%s696] sm:$0x3]
    %699 = vset.pattern.permute.xlu0 0
    %700 = vperm.xlu0 %699, %v697
    %v701 = vpop.permute.xlu0 %700
    %v703 = vmul.f32 %v701, %v19
    %704 = vset.pattern.permute.xlu0 1
    %705 = vperm.xlu0 %704, %v697
    %v706 = vpop.permute.xlu0 %705
    %v708 = vmul.f32 %v706, %v23
    %v709 = vadd.f32 %v703, %v708
    %710 = vset.pattern.permute.xlu0 2
    %711 = vperm.xlu0 %710, %v697
    %v712 = vpop.permute.xlu0 %711
    %v714 = vmul.f32 %v712, %v27
    %v715 = vadd.f32 %v709, %v714
    %716 = vset.pattern.permute.xlu0 3
    %717 = vperm.xlu0 %716, %v697
    %v718 = vpop.permute.xlu0 %717
    %v720 = vmul.f32 %v718, %v31
    %v721 = vadd.f32 %v715, %v720
    %v722 = vmul.f32 %v551, %v36
    %v723 = vmul.f32 %v556, %v40
    %v724 = vadd.f32 %v722, %v723
    %v725 = vadd.f32 %v721, %v724
    %v726 = vadd.f32 %v725, %v45
    %v727 = vxor.u32 %v726, 2147483648
    %v728 = vmul.f32 %v727, 1.442695
    %v729 = vpow.pop %v728
    %v730 = vadd.f32 %v729, 1.0
    %v731 = vrcp.pop %v730
    %v732 = vmul.f32 1.0, %v731
    %v733 = vtanh.pop %v726
    %v734 = vmul.f32 %v732, %v541
    %736 = vrot.lane.b32.xlu0 %v733, 122
    %v737 = vpop.permute.xlu0 %736
    %v739 = vmul.f32 %v732, %v737
    %741 = vrot.lane.b32.xlu0 %v739, 2
    %v742 = vpop.permute.xlu0 %741
    %v744 = vadd.f32 %v734, %v742
    %v745 = vtanh.pop %v744
    %747 = vrot.lane.b32.xlu0 %v745, 2
    %v748 = vpop.permute.xlu0 %747
    %v750 = vmul.f32 %v732, %v748
    %752 = vset.pattern.permute.xlu0 4
    %753 = vperm.xlu0 %752, %v750
    %v754 = vpop.permute.xlu0 %753
    %v756 = vmul.f32 %v754, %v50
    %757 = vset.pattern.permute.xlu0 5
    %758 = vperm.xlu0 %757, %v750
    %v759 = vpop.permute.xlu0 %758
    %v761 = vmul.f32 %v759, %v54
    %v762 = vadd.f32 %v756, %v761
    %v763 = vmul.f32 %v592, %v59
    %v764 = vmul.f32 %v597, %v63
    %v765 = vadd.f32 %v763, %v764
    %v766 = vadd.f32 %v762, %v765
    %v767 = vadd.f32 %v766, %v68
    %v768 = vxor.u32 %v767, 2147483648
    %v769 = vmul.f32 %v768, 1.442695
    %v770 = vpow.pop %v769
    %v771 = vadd.f32 %v770, 1.0
    %v772 = vrcp.pop %v771
    %v773 = vmul.f32 1.0, %v772
    %v774 = vtanh.pop %v767
    %v775 = vmul.f32 %v773, %v582
    %777 = vrot.lane.b32.xlu0 %v774, 122
    %v778 = vpop.permute.xlu0 %777
    %v780 = vmul.f32 %v773, %v778
    %782 = vrot.lane.b32.xlu0 %v780, 2
    %v783 = vpop.permute.xlu0 %782
    %v785 = vadd.f32 %v775, %v783
    %v786 = vtanh.pop %v785
    %788 = vrot.lane.b32.xlu0 %v786, 2
    %v789 = vpop.permute.xlu0 %788
    %v791 = vmul.f32 %v773, %v789
    %793 = vset.pattern.permute.xlu0 4
    %794 = vperm.xlu0 %793, %v791
    %v795 = vpop.permute.xlu0 %794
    %v797 = vmul.f32 %v795, %v73
    %798 = vset.pattern.permute.xlu0 5
    %799 = vperm.xlu0 %798, %v791
    %v800 = vpop.permute.xlu0 %799
    %v802 = vmul.f32 %v800, %v77
    %v803 = vadd.f32 %v797, %v802
    %v804 = vadd.f32 %v803, %v82
    %vm805 = vcmp.gt.f32.partialorder %v804, 20.0
    %v806 = vmin.f32 %v804, 20.0
    %v807 = vmul.f32 %v806, 1.442695
    %v808 = vpow.pop %v807
    %v809 = vadd.f32 %v808, 1.0
    %v810 = vlog2.pop %v809
    %v811 = vmul.f32 %v810, 0.6931472
    %v812 = vmul.f32 -0.5, %v808
    %v813 = vadd.f32 %v812, 1.0
    %v814 = vmul.f32 %v813, %v808
    %v815 = vand.u32 2147483647, %v808
    %vm816 = vcmp.lt.f32.partialorder %v815, 0.0004427343
    %v817 = vsel %vm816, %v814, %v811
    %v818 = vsel %vm805, %v804, %v817
    %v819 = vadd.f32 %v678, %v676
    %821 = vrot.lane.b32.xlu0 %v804, 121
    %v822 = vpop.permute.xlu0 %821
    %v824 = vadd.f32 %v819, %v822
    %826 = vrot.lane.b32.xlu0 %v824, 4
    %v827 = vpop.permute.xlu0 %826
    %v829 = vsub.f32 %v697, %v827
    %v830 = vadd.f32 %v684, %v694
    %832 = vrot.lane.b32.xlu0 %v695, 127
    %v833 = vpop.permute.xlu0 %832
    %v835 = vadd.f32 %v694, %v833
    %v836 = vadd.f32 %v830, %v835
    %v837 = vmul.f32 %v818, %v818
    %839 = vrot.lane.b32.xlu0 %v837, 124
    %v840 = vpop.permute.xlu0 %839
    %v842 = vadd.f32 %v836, %v840
    %v843 = vrcp.pop %v842
    %v844 = vmul.f32 %v830, %v843
    %v845 = vmul.f32 %v835, %v843
    %847 = vrot.lane.b32.xlu0 %v829, 126
    %v848 = vpop.permute.xlu0 %847
    %v850 = vmul.f32 %v844, %v848
    %852 = vrot.lane.b32.xlu0 %v850, 126
    %v853 = vpop.permute.xlu0 %852
    %v855 = vadd.f32 %v678, %v853
    %v856 = vmul.f32 %v845, %v848
    %858 = vrot.lane.b32.xlu0 %v856, 127
    %v859 = vpop.permute.xlu0 %858
    %v861 = vadd.f32 %v658, %v859
    %v862 = vmul.f32 %v844, %v830
    %v863 = vsub.f32 %v684, %v862
    %v864 = vmul.f32 %v844, %v835
    %v865 = vsub.f32 %v694, %v864
    %v866 = vmul.f32 %v845, %v835
    %868 = vrot.lane.b32.xlu0 %v866, 1
    %v869 = vpop.permute.xlu0 %868
    %v871 = vsub.f32 %v695, %v869
    %873 = vrot.lane.b32.xlu0 %v871, 127
    %v874 = vpop.permute.xlu0 %873
    %v876 = vadd.f32 %v865, %v874
    %878 = vrot.lane.b32.xlu0 %v861, 127
    %v879 = vpop.permute.xlu0 %878
    %v881 = vadd.f32 %v855, %v879
    %v882 = vadd.f32 %v863, %v865
    %v883 = vadd.f32 %v882, %v876
    %884 = vrot.lane.b32.xlu0 %v837, 126
    %v885 = vpop.permute.xlu0 %884
    %v887 = vadd.f32 %v883, %v885
    %889 = vrot.lane.b32.xlu0 %v818, 127
    %v890 = vpop.permute.xlu0 %889
    %v892 = vmul.f32 %v818, %v890
    %894 = vrot.lane.b32.xlu0 %v892, 126
    %v895 = vpop.permute.xlu0 %894
    %v897 = vadd.f32 %v876, %v895
    %v898 = vadd.f32 %v871, %v885
    %s899 = scalar_lea.vmem %s0, 8
    %v900 = vld [vmem:[%s899] sm:$0x3]
    %902 = vset.pattern.permute.xlu0 0
    %903 = vperm.xlu0 %902, %v900
    %v904 = vpop.permute.xlu0 %903
    %v906 = vmul.f32 %v904, %v19
    %907 = vset.pattern.permute.xlu0 1
    %908 = vperm.xlu0 %907, %v900
    %v909 = vpop.permute.xlu0 %908
    %v911 = vmul.f32 %v909, %v23
    %v912 = vadd.f32 %v906, %v911
    %913 = vset.pattern.permute.xlu0 2
    %914 = vperm.xlu0 %913, %v900
    %v915 = vpop.permute.xlu0 %914
    %v917 = vmul.f32 %v915, %v27
    %v918 = vadd.f32 %v912, %v917
    %919 = vset.pattern.permute.xlu0 3
    %920 = vperm.xlu0 %919, %v900
    %v921 = vpop.permute.xlu0 %920
    %v923 = vmul.f32 %v921, %v31
    %v924 = vadd.f32 %v918, %v923
    %v925 = vmul.f32 %v754, %v36
    %v926 = vmul.f32 %v759, %v40
    %v927 = vadd.f32 %v925, %v926
    %v928 = vadd.f32 %v924, %v927
    %v929 = vadd.f32 %v928, %v45
    %v930 = vxor.u32 %v929, 2147483648
    %v931 = vmul.f32 %v930, 1.442695
    %v932 = vpow.pop %v931
    %v933 = vadd.f32 %v932, 1.0
    %v934 = vrcp.pop %v933
    %v935 = vmul.f32 1.0, %v934
    %v936 = vtanh.pop %v929
    %v937 = vmul.f32 %v935, %v744
    %939 = vrot.lane.b32.xlu0 %v936, 122
    %v940 = vpop.permute.xlu0 %939
    %v942 = vmul.f32 %v935, %v940
    %944 = vrot.lane.b32.xlu0 %v942, 2
    %v945 = vpop.permute.xlu0 %944
    %v947 = vadd.f32 %v937, %v945
    %v948 = vtanh.pop %v947
    %950 = vrot.lane.b32.xlu0 %v948, 2
    %v951 = vpop.permute.xlu0 %950
    %v953 = vmul.f32 %v935, %v951
    %955 = vset.pattern.permute.xlu0 4
    %956 = vperm.xlu0 %955, %v953
    %v957 = vpop.permute.xlu0 %956
    %v959 = vmul.f32 %v957, %v50
    %960 = vset.pattern.permute.xlu0 5
    %961 = vperm.xlu0 %960, %v953
    %v962 = vpop.permute.xlu0 %961
    %v964 = vmul.f32 %v962, %v54
    %v965 = vadd.f32 %v959, %v964
    %v966 = vmul.f32 %v795, %v59
    %v967 = vmul.f32 %v800, %v63
    %v968 = vadd.f32 %v966, %v967
    %v969 = vadd.f32 %v965, %v968
    %v970 = vadd.f32 %v969, %v68
    %v971 = vxor.u32 %v970, 2147483648
    %v972 = vmul.f32 %v971, 1.442695
    %v973 = vpow.pop %v972
    %v974 = vadd.f32 %v973, 1.0
    %v975 = vrcp.pop %v974
    %v976 = vmul.f32 1.0, %v975
    %v977 = vtanh.pop %v970
    %v978 = vmul.f32 %v976, %v785
    %980 = vrot.lane.b32.xlu0 %v977, 122
    %v981 = vpop.permute.xlu0 %980
    %v983 = vmul.f32 %v976, %v981
    %985 = vrot.lane.b32.xlu0 %v983, 2
    %v986 = vpop.permute.xlu0 %985
    %v988 = vadd.f32 %v978, %v986
    %v989 = vtanh.pop %v988
    %991 = vrot.lane.b32.xlu0 %v989, 2
    %v992 = vpop.permute.xlu0 %991
    %v994 = vmul.f32 %v976, %v992
    %996 = vset.pattern.permute.xlu0 4
    %997 = vperm.xlu0 %996, %v994
    %v998 = vpop.permute.xlu0 %997
    %v1000 = vmul.f32 %v998, %v73
    %1001 = vset.pattern.permute.xlu0 5
    %1002 = vperm.xlu0 %1001, %v994
    %v1003 = vpop.permute.xlu0 %1002
    %v1005 = vmul.f32 %v1003, %v77
    %v1006 = vadd.f32 %v1000, %v1005
    %v1007 = vadd.f32 %v1006, %v82
    %vm1008 = vcmp.gt.f32.partialorder %v1007, 20.0
    %v1009 = vmin.f32 %v1007, 20.0
    %v1010 = vmul.f32 %v1009, 1.442695
    %v1011 = vpow.pop %v1010
    %v1012 = vadd.f32 %v1011, 1.0
    %v1013 = vlog2.pop %v1012
    %v1014 = vmul.f32 %v1013, 0.6931472
    %v1015 = vmul.f32 -0.5, %v1011
    %v1016 = vadd.f32 %v1015, 1.0
    %v1017 = vmul.f32 %v1016, %v1011
    %v1018 = vand.u32 2147483647, %v1011
    %vm1019 = vcmp.lt.f32.partialorder %v1018, 0.0004427343
    %v1020 = vsel %vm1019, %v1017, %v1014
    %v1021 = vsel %vm1008, %v1007, %v1020
    %v1022 = vadd.f32 %v881, %v879
    %1024 = vrot.lane.b32.xlu0 %v1007, 121
    %v1025 = vpop.permute.xlu0 %1024
    %v1027 = vadd.f32 %v1022, %v1025
    %1029 = vrot.lane.b32.xlu0 %v1027, 4
    %v1030 = vpop.permute.xlu0 %1029
    %v1032 = vsub.f32 %v900, %v1030
    %v1033 = vadd.f32 %v887, %v897
    %1035 = vrot.lane.b32.xlu0 %v898, 127
    %v1036 = vpop.permute.xlu0 %1035
    %v1038 = vadd.f32 %v897, %v1036
    %v1039 = vadd.f32 %v1033, %v1038
    %v1040 = vmul.f32 %v1021, %v1021
    %1042 = vrot.lane.b32.xlu0 %v1040, 124
    %v1043 = vpop.permute.xlu0 %1042
    %v1045 = vadd.f32 %v1039, %v1043
    %v1046 = vrcp.pop %v1045
    %v1047 = vmul.f32 %v1033, %v1046
    %v1048 = vmul.f32 %v1038, %v1046
    %1050 = vrot.lane.b32.xlu0 %v1032, 126
    %v1051 = vpop.permute.xlu0 %1050
    %v1053 = vmul.f32 %v1047, %v1051
    %1055 = vrot.lane.b32.xlu0 %v1053, 126
    %v1056 = vpop.permute.xlu0 %1055
    %v1058 = vadd.f32 %v881, %v1056
    %v1059 = vmul.f32 %v1048, %v1051
    %1061 = vrot.lane.b32.xlu0 %v1059, 127
    %v1062 = vpop.permute.xlu0 %1061
    %v1064 = vadd.f32 %v861, %v1062
    %v1065 = vmul.f32 %v1047, %v1033
    %v1066 = vsub.f32 %v887, %v1065
    %v1067 = vmul.f32 %v1047, %v1038
    %v1068 = vsub.f32 %v897, %v1067
    %v1069 = vmul.f32 %v1048, %v1038
    %1071 = vrot.lane.b32.xlu0 %v1069, 1
    %v1072 = vpop.permute.xlu0 %1071
    %v1074 = vsub.f32 %v898, %v1072
    %1076 = vrot.lane.b32.xlu0 %v1074, 127
    %v1077 = vpop.permute.xlu0 %1076
    %v1079 = vadd.f32 %v1068, %v1077
    %1081 = vrot.lane.b32.xlu0 %v1064, 127
    %v1082 = vpop.permute.xlu0 %1081
    %v1084 = vadd.f32 %v1058, %v1082
    %v1085 = vadd.f32 %v1066, %v1068
    %v1086 = vadd.f32 %v1085, %v1079
    %1087 = vrot.lane.b32.xlu0 %v1040, 126
    %v1088 = vpop.permute.xlu0 %1087
    %v1090 = vadd.f32 %v1086, %v1088
    %1092 = vrot.lane.b32.xlu0 %v1021, 127
    %v1093 = vpop.permute.xlu0 %1092
    %v1095 = vmul.f32 %v1021, %v1093
    %1097 = vrot.lane.b32.xlu0 %v1095, 126
    %v1098 = vpop.permute.xlu0 %1097
    %v1100 = vadd.f32 %v1079, %v1098
    %v1101 = vadd.f32 %v1074, %v1088
    %s1102 = scalar_lea.vmem %s0, 10
    %v1103 = vld [vmem:[%s1102] sm:$0x3]
    %1105 = vset.pattern.permute.xlu0 0
    %1106 = vperm.xlu0 %1105, %v1103
    %v1107 = vpop.permute.xlu0 %1106
    %v1109 = vmul.f32 %v1107, %v19
    %1110 = vset.pattern.permute.xlu0 1
    %1111 = vperm.xlu0 %1110, %v1103
    %v1112 = vpop.permute.xlu0 %1111
    %v1114 = vmul.f32 %v1112, %v23
    %v1115 = vadd.f32 %v1109, %v1114
    %1116 = vset.pattern.permute.xlu0 2
    %1117 = vperm.xlu0 %1116, %v1103
    %v1118 = vpop.permute.xlu0 %1117
    %v1120 = vmul.f32 %v1118, %v27
    %v1121 = vadd.f32 %v1115, %v1120
    %1122 = vset.pattern.permute.xlu0 3
    %1123 = vperm.xlu0 %1122, %v1103
    %v1124 = vpop.permute.xlu0 %1123
    %v1126 = vmul.f32 %v1124, %v31
    %v1127 = vadd.f32 %v1121, %v1126
    %v1128 = vmul.f32 %v957, %v36
    %v1129 = vmul.f32 %v962, %v40
    %v1130 = vadd.f32 %v1128, %v1129
    %v1131 = vadd.f32 %v1127, %v1130
    %v1132 = vadd.f32 %v1131, %v45
    %v1133 = vxor.u32 %v1132, 2147483648
    %v1134 = vmul.f32 %v1133, 1.442695
    %v1135 = vpow.pop %v1134
    %v1136 = vadd.f32 %v1135, 1.0
    %v1137 = vrcp.pop %v1136
    %v1138 = vmul.f32 1.0, %v1137
    %v1139 = vtanh.pop %v1132
    %v1140 = vmul.f32 %v1138, %v947
    %1142 = vrot.lane.b32.xlu0 %v1139, 122
    %v1143 = vpop.permute.xlu0 %1142
    %v1145 = vmul.f32 %v1138, %v1143
    %1147 = vrot.lane.b32.xlu0 %v1145, 2
    %v1148 = vpop.permute.xlu0 %1147
    %v1150 = vadd.f32 %v1140, %v1148
    %v1151 = vtanh.pop %v1150
    %1153 = vrot.lane.b32.xlu0 %v1151, 2
    %v1154 = vpop.permute.xlu0 %1153
    %v1156 = vmul.f32 %v1138, %v1154
    %1158 = vset.pattern.permute.xlu0 4
    %1159 = vperm.xlu0 %1158, %v1156
    %v1160 = vpop.permute.xlu0 %1159
    %v1162 = vmul.f32 %v1160, %v50
    %1163 = vset.pattern.permute.xlu0 5
    %1164 = vperm.xlu0 %1163, %v1156
    %v1165 = vpop.permute.xlu0 %1164
    %v1167 = vmul.f32 %v1165, %v54
    %v1168 = vadd.f32 %v1162, %v1167
    %v1169 = vmul.f32 %v998, %v59
    %v1170 = vmul.f32 %v1003, %v63
    %v1171 = vadd.f32 %v1169, %v1170
    %v1172 = vadd.f32 %v1168, %v1171
    %v1173 = vadd.f32 %v1172, %v68
    %v1174 = vxor.u32 %v1173, 2147483648
    %v1175 = vmul.f32 %v1174, 1.442695
    %v1176 = vpow.pop %v1175
    %v1177 = vadd.f32 %v1176, 1.0
    %v1178 = vrcp.pop %v1177
    %v1179 = vmul.f32 1.0, %v1178
    %v1180 = vtanh.pop %v1173
    %v1181 = vmul.f32 %v1179, %v988
    %1183 = vrot.lane.b32.xlu0 %v1180, 122
    %v1184 = vpop.permute.xlu0 %1183
    %v1186 = vmul.f32 %v1179, %v1184
    %1188 = vrot.lane.b32.xlu0 %v1186, 2
    %v1189 = vpop.permute.xlu0 %1188
    %v1191 = vadd.f32 %v1181, %v1189
    %v1192 = vtanh.pop %v1191
    %1194 = vrot.lane.b32.xlu0 %v1192, 2
    %v1195 = vpop.permute.xlu0 %1194
    %v1197 = vmul.f32 %v1179, %v1195
    %1199 = vset.pattern.permute.xlu0 4
    %1200 = vperm.xlu0 %1199, %v1197
    %v1201 = vpop.permute.xlu0 %1200
    %v1203 = vmul.f32 %v1201, %v73
    %1204 = vset.pattern.permute.xlu0 5
    %1205 = vperm.xlu0 %1204, %v1197
    %v1206 = vpop.permute.xlu0 %1205
    %v1208 = vmul.f32 %v1206, %v77
    %v1209 = vadd.f32 %v1203, %v1208
    %v1210 = vadd.f32 %v1209, %v82
    %vm1211 = vcmp.gt.f32.partialorder %v1210, 20.0
    %v1212 = vmin.f32 %v1210, 20.0
    %v1213 = vmul.f32 %v1212, 1.442695
    %v1214 = vpow.pop %v1213
    %v1215 = vadd.f32 %v1214, 1.0
    %v1216 = vlog2.pop %v1215
    %v1217 = vmul.f32 %v1216, 0.6931472
    %v1218 = vmul.f32 -0.5, %v1214
    %v1219 = vadd.f32 %v1218, 1.0
    %v1220 = vmul.f32 %v1219, %v1214
    %v1221 = vand.u32 2147483647, %v1214
    %vm1222 = vcmp.lt.f32.partialorder %v1221, 0.0004427343
    %v1223 = vsel %vm1222, %v1220, %v1217
    %v1224 = vsel %vm1211, %v1210, %v1223
    %v1225 = vadd.f32 %v1084, %v1082
    %1227 = vrot.lane.b32.xlu0 %v1210, 121
    %v1228 = vpop.permute.xlu0 %1227
    %v1230 = vadd.f32 %v1225, %v1228
    %1232 = vrot.lane.b32.xlu0 %v1230, 4
    %v1233 = vpop.permute.xlu0 %1232
    %v1235 = vsub.f32 %v1103, %v1233
    %v1236 = vadd.f32 %v1090, %v1100
    %1238 = vrot.lane.b32.xlu0 %v1101, 127
    %v1239 = vpop.permute.xlu0 %1238
    %v1241 = vadd.f32 %v1100, %v1239
    %v1242 = vadd.f32 %v1236, %v1241
    %v1243 = vmul.f32 %v1224, %v1224
    %1245 = vrot.lane.b32.xlu0 %v1243, 124
    %v1246 = vpop.permute.xlu0 %1245
    %v1248 = vadd.f32 %v1242, %v1246
    %v1249 = vrcp.pop %v1248
    %v1250 = vmul.f32 %v1236, %v1249
    %v1251 = vmul.f32 %v1241, %v1249
    %1253 = vrot.lane.b32.xlu0 %v1235, 126
    %v1254 = vpop.permute.xlu0 %1253
    %v1256 = vmul.f32 %v1250, %v1254
    %1258 = vrot.lane.b32.xlu0 %v1256, 126
    %v1259 = vpop.permute.xlu0 %1258
    %v1261 = vadd.f32 %v1084, %v1259
    %v1262 = vmul.f32 %v1251, %v1254
    %1264 = vrot.lane.b32.xlu0 %v1262, 127
    %v1265 = vpop.permute.xlu0 %1264
    %v1267 = vadd.f32 %v1064, %v1265
    %v1268 = vmul.f32 %v1250, %v1236
    %v1269 = vsub.f32 %v1090, %v1268
    %v1270 = vmul.f32 %v1250, %v1241
    %v1271 = vsub.f32 %v1100, %v1270
    %v1272 = vmul.f32 %v1251, %v1241
    %1274 = vrot.lane.b32.xlu0 %v1272, 1
    %v1275 = vpop.permute.xlu0 %1274
    %v1277 = vsub.f32 %v1101, %v1275
    %1279 = vrot.lane.b32.xlu0 %v1277, 127
    %v1280 = vpop.permute.xlu0 %1279
    %v1282 = vadd.f32 %v1271, %v1280
    %1284 = vrot.lane.b32.xlu0 %v1267, 127
    %v1285 = vpop.permute.xlu0 %1284
    %v1287 = vadd.f32 %v1261, %v1285
    %v1288 = vadd.f32 %v1269, %v1271
    %v1289 = vadd.f32 %v1288, %v1282
    %1290 = vrot.lane.b32.xlu0 %v1243, 126
    %v1291 = vpop.permute.xlu0 %1290
    %v1293 = vadd.f32 %v1289, %v1291
    %1295 = vrot.lane.b32.xlu0 %v1224, 127
    %v1296 = vpop.permute.xlu0 %1295
    %v1298 = vmul.f32 %v1224, %v1296
    %1300 = vrot.lane.b32.xlu0 %v1298, 126
    %v1301 = vpop.permute.xlu0 %1300
    %v1303 = vadd.f32 %v1282, %v1301
    %v1304 = vadd.f32 %v1277, %v1291
    %s1305 = scalar_lea.vmem %s0, 12
    %v1306 = vld [vmem:[%s1305] sm:$0x3]
    %1308 = vset.pattern.permute.xlu0 0
    %1309 = vperm.xlu0 %1308, %v1306
    %v1310 = vpop.permute.xlu0 %1309
    %v1312 = vmul.f32 %v1310, %v19
    %1313 = vset.pattern.permute.xlu0 1
    %1314 = vperm.xlu0 %1313, %v1306
    %v1315 = vpop.permute.xlu0 %1314
    %v1317 = vmul.f32 %v1315, %v23
    %v1318 = vadd.f32 %v1312, %v1317
    %1319 = vset.pattern.permute.xlu0 2
    %1320 = vperm.xlu0 %1319, %v1306
    %v1321 = vpop.permute.xlu0 %1320
    %v1323 = vmul.f32 %v1321, %v27
    %v1324 = vadd.f32 %v1318, %v1323
    %1325 = vset.pattern.permute.xlu0 3
    %1326 = vperm.xlu0 %1325, %v1306
    %v1327 = vpop.permute.xlu0 %1326
    %v1329 = vmul.f32 %v1327, %v31
    %v1330 = vadd.f32 %v1324, %v1329
    %v1331 = vmul.f32 %v1160, %v36
    %v1332 = vmul.f32 %v1165, %v40
    %v1333 = vadd.f32 %v1331, %v1332
    %v1334 = vadd.f32 %v1330, %v1333
    %v1335 = vadd.f32 %v1334, %v45
    %v1336 = vxor.u32 %v1335, 2147483648
    %v1337 = vmul.f32 %v1336, 1.442695
    %v1338 = vpow.pop %v1337
    %v1339 = vadd.f32 %v1338, 1.0
    %v1340 = vrcp.pop %v1339
    %v1341 = vmul.f32 1.0, %v1340
    %v1342 = vtanh.pop %v1335
    %v1343 = vmul.f32 %v1341, %v1150
    %1345 = vrot.lane.b32.xlu0 %v1342, 122
    %v1346 = vpop.permute.xlu0 %1345
    %v1348 = vmul.f32 %v1341, %v1346
    %1350 = vrot.lane.b32.xlu0 %v1348, 2
    %v1351 = vpop.permute.xlu0 %1350
    %v1353 = vadd.f32 %v1343, %v1351
    %v1354 = vtanh.pop %v1353
    %1356 = vrot.lane.b32.xlu0 %v1354, 2
    %v1357 = vpop.permute.xlu0 %1356
    %v1359 = vmul.f32 %v1341, %v1357
    %1361 = vset.pattern.permute.xlu0 4
    %1362 = vperm.xlu0 %1361, %v1359
    %v1363 = vpop.permute.xlu0 %1362
    %v1365 = vmul.f32 %v1363, %v50
    %1366 = vset.pattern.permute.xlu0 5
    %1367 = vperm.xlu0 %1366, %v1359
    %v1368 = vpop.permute.xlu0 %1367
    %v1370 = vmul.f32 %v1368, %v54
    %v1371 = vadd.f32 %v1365, %v1370
    %v1372 = vmul.f32 %v1201, %v59
    %v1373 = vmul.f32 %v1206, %v63
    %v1374 = vadd.f32 %v1372, %v1373
    %v1375 = vadd.f32 %v1371, %v1374
    %v1376 = vadd.f32 %v1375, %v68
    %v1377 = vxor.u32 %v1376, 2147483648
    %v1378 = vmul.f32 %v1377, 1.442695
    %v1379 = vpow.pop %v1378
    %v1380 = vadd.f32 %v1379, 1.0
    %v1381 = vrcp.pop %v1380
    %v1382 = vmul.f32 1.0, %v1381
    %v1383 = vtanh.pop %v1376
    %v1384 = vmul.f32 %v1382, %v1191
    %1386 = vrot.lane.b32.xlu0 %v1383, 122
    %v1387 = vpop.permute.xlu0 %1386
    %v1389 = vmul.f32 %v1382, %v1387
    %1391 = vrot.lane.b32.xlu0 %v1389, 2
    %v1392 = vpop.permute.xlu0 %1391
    %v1394 = vadd.f32 %v1384, %v1392
    %v1395 = vtanh.pop %v1394
    %1397 = vrot.lane.b32.xlu0 %v1395, 2
    %v1398 = vpop.permute.xlu0 %1397
    %v1400 = vmul.f32 %v1382, %v1398
    %1402 = vset.pattern.permute.xlu0 4
    %1403 = vperm.xlu0 %1402, %v1400
    %v1404 = vpop.permute.xlu0 %1403
    %v1406 = vmul.f32 %v1404, %v73
    %1407 = vset.pattern.permute.xlu0 5
    %1408 = vperm.xlu0 %1407, %v1400
    %v1409 = vpop.permute.xlu0 %1408
    %v1411 = vmul.f32 %v1409, %v77
    %v1412 = vadd.f32 %v1406, %v1411
    %v1413 = vadd.f32 %v1412, %v82
    %vm1414 = vcmp.gt.f32.partialorder %v1413, 20.0
    %v1415 = vmin.f32 %v1413, 20.0
    %v1416 = vmul.f32 %v1415, 1.442695
    %v1417 = vpow.pop %v1416
    %v1418 = vadd.f32 %v1417, 1.0
    %v1419 = vlog2.pop %v1418
    %v1420 = vmul.f32 %v1419, 0.6931472
    %v1421 = vmul.f32 -0.5, %v1417
    %v1422 = vadd.f32 %v1421, 1.0
    %v1423 = vmul.f32 %v1422, %v1417
    %v1424 = vand.u32 2147483647, %v1417
    %vm1425 = vcmp.lt.f32.partialorder %v1424, 0.0004427343
    %v1426 = vsel %vm1425, %v1423, %v1420
    %v1427 = vsel %vm1414, %v1413, %v1426
    %v1428 = vadd.f32 %v1287, %v1285
    %1430 = vrot.lane.b32.xlu0 %v1413, 121
    %v1431 = vpop.permute.xlu0 %1430
    %v1433 = vadd.f32 %v1428, %v1431
    %1435 = vrot.lane.b32.xlu0 %v1433, 4
    %v1436 = vpop.permute.xlu0 %1435
    %v1438 = vsub.f32 %v1306, %v1436
    %v1439 = vadd.f32 %v1293, %v1303
    %1441 = vrot.lane.b32.xlu0 %v1304, 127
    %v1442 = vpop.permute.xlu0 %1441
    %v1444 = vadd.f32 %v1303, %v1442
    %v1445 = vadd.f32 %v1439, %v1444
    %v1446 = vmul.f32 %v1427, %v1427
    %1448 = vrot.lane.b32.xlu0 %v1446, 124
    %v1449 = vpop.permute.xlu0 %1448
    %v1451 = vadd.f32 %v1445, %v1449
    %v1452 = vrcp.pop %v1451
    %v1453 = vmul.f32 %v1439, %v1452
    %v1454 = vmul.f32 %v1444, %v1452
    %1456 = vrot.lane.b32.xlu0 %v1438, 126
    %v1457 = vpop.permute.xlu0 %1456
    %v1459 = vmul.f32 %v1453, %v1457
    %1461 = vrot.lane.b32.xlu0 %v1459, 126
    %v1462 = vpop.permute.xlu0 %1461
    %v1464 = vadd.f32 %v1287, %v1462
    %v1465 = vmul.f32 %v1454, %v1457
    %1467 = vrot.lane.b32.xlu0 %v1465, 127
    %v1468 = vpop.permute.xlu0 %1467
    %v1470 = vadd.f32 %v1267, %v1468
    %v1471 = vmul.f32 %v1453, %v1439
    %v1472 = vsub.f32 %v1293, %v1471
    %v1473 = vmul.f32 %v1453, %v1444
    %v1474 = vsub.f32 %v1303, %v1473
    %v1475 = vmul.f32 %v1454, %v1444
    %1477 = vrot.lane.b32.xlu0 %v1475, 1
    %v1478 = vpop.permute.xlu0 %1477
    %v1480 = vsub.f32 %v1304, %v1478
    %1482 = vrot.lane.b32.xlu0 %v1480, 127
    %v1483 = vpop.permute.xlu0 %1482
    %v1485 = vadd.f32 %v1474, %v1483
    %1487 = vrot.lane.b32.xlu0 %v1470, 127
    %v1488 = vpop.permute.xlu0 %1487
    %v1490 = vadd.f32 %v1464, %v1488
    %v1491 = vadd.f32 %v1472, %v1474
    %v1492 = vadd.f32 %v1491, %v1485
    %1493 = vrot.lane.b32.xlu0 %v1446, 126
    %v1494 = vpop.permute.xlu0 %1493
    %v1496 = vadd.f32 %v1492, %v1494
    %1498 = vrot.lane.b32.xlu0 %v1427, 127
    %v1499 = vpop.permute.xlu0 %1498
    %v1501 = vmul.f32 %v1427, %v1499
    %1503 = vrot.lane.b32.xlu0 %v1501, 126
    %v1504 = vpop.permute.xlu0 %1503
    %v1506 = vadd.f32 %v1485, %v1504
    %v1507 = vadd.f32 %v1480, %v1494
    %s1508 = scalar_lea.vmem %s0, 14
    %v1509 = vld [vmem:[%s1508] sm:$0x3]
    %1511 = vset.pattern.permute.xlu0 0
    %1512 = vperm.xlu0 %1511, %v1509
    %v1513 = vpop.permute.xlu0 %1512
    %v1515 = vmul.f32 %v1513, %v19
    %1516 = vset.pattern.permute.xlu0 1
    %1517 = vperm.xlu0 %1516, %v1509
    %v1518 = vpop.permute.xlu0 %1517
    %v1520 = vmul.f32 %v1518, %v23
    %v1521 = vadd.f32 %v1515, %v1520
    %1522 = vset.pattern.permute.xlu0 2
    %1523 = vperm.xlu0 %1522, %v1509
    %v1524 = vpop.permute.xlu0 %1523
    %v1526 = vmul.f32 %v1524, %v27
    %v1527 = vadd.f32 %v1521, %v1526
    %1528 = vset.pattern.permute.xlu0 3
    %1529 = vperm.xlu0 %1528, %v1509
    %v1530 = vpop.permute.xlu0 %1529
    %v1532 = vmul.f32 %v1530, %v31
    %v1533 = vadd.f32 %v1527, %v1532
    %v1534 = vmul.f32 %v1363, %v36
    %v1535 = vmul.f32 %v1368, %v40
    %v1536 = vadd.f32 %v1534, %v1535
    %v1537 = vadd.f32 %v1533, %v1536
    %v1538 = vadd.f32 %v1537, %v45
    %v1539 = vxor.u32 %v1538, 2147483648
    %v1540 = vmul.f32 %v1539, 1.442695
    %v1541 = vpow.pop %v1540
    %v1542 = vadd.f32 %v1541, 1.0
    %v1543 = vrcp.pop %v1542
    %v1544 = vmul.f32 1.0, %v1543
    %v1545 = vtanh.pop %v1538
    %v1546 = vmul.f32 %v1544, %v1353
    %1548 = vrot.lane.b32.xlu0 %v1545, 122
    %v1549 = vpop.permute.xlu0 %1548
    %v1551 = vmul.f32 %v1544, %v1549
    %1553 = vrot.lane.b32.xlu0 %v1551, 2
    %v1554 = vpop.permute.xlu0 %1553
    %v1556 = vadd.f32 %v1546, %v1554
    %v1557 = vtanh.pop %v1556
    %1559 = vrot.lane.b32.xlu0 %v1557, 2
    %v1560 = vpop.permute.xlu0 %1559
    %v1562 = vmul.f32 %v1544, %v1560
    %1564 = vset.pattern.permute.xlu0 4
    %1565 = vperm.xlu0 %1564, %v1562
    %v1566 = vpop.permute.xlu0 %1565
    %v1568 = vmul.f32 %v1566, %v50
    %1569 = vset.pattern.permute.xlu0 5
    %1570 = vperm.xlu0 %1569, %v1562
    %v1571 = vpop.permute.xlu0 %1570
    %v1573 = vmul.f32 %v1571, %v54
    %v1574 = vadd.f32 %v1568, %v1573
    %v1575 = vmul.f32 %v1404, %v59
    %v1576 = vmul.f32 %v1409, %v63
    %v1577 = vadd.f32 %v1575, %v1576
    %v1578 = vadd.f32 %v1574, %v1577
    %v1579 = vadd.f32 %v1578, %v68
    %v1580 = vxor.u32 %v1579, 2147483648
    %v1581 = vmul.f32 %v1580, 1.442695
    %v1582 = vpow.pop %v1581
    %v1583 = vadd.f32 %v1582, 1.0
    %v1584 = vrcp.pop %v1583
    %v1585 = vmul.f32 1.0, %v1584
    %v1586 = vtanh.pop %v1579
    %v1587 = vmul.f32 %v1585, %v1394
    %1589 = vrot.lane.b32.xlu0 %v1586, 122
    %v1590 = vpop.permute.xlu0 %1589
    %v1592 = vmul.f32 %v1585, %v1590
    %1594 = vrot.lane.b32.xlu0 %v1592, 2
    %v1595 = vpop.permute.xlu0 %1594
    %v1597 = vadd.f32 %v1587, %v1595
    %v1598 = vtanh.pop %v1597
    %1600 = vrot.lane.b32.xlu0 %v1598, 2
    %v1601 = vpop.permute.xlu0 %1600
    %v1603 = vmul.f32 %v1585, %v1601
    %1605 = vset.pattern.permute.xlu0 4
    %1606 = vperm.xlu0 %1605, %v1603
    %v1607 = vpop.permute.xlu0 %1606
    %v1609 = vmul.f32 %v1607, %v73
    %1610 = vset.pattern.permute.xlu0 5
    %1611 = vperm.xlu0 %1610, %v1603
    %v1612 = vpop.permute.xlu0 %1611
    %v1614 = vmul.f32 %v1612, %v77
    %v1615 = vadd.f32 %v1609, %v1614
    %v1616 = vadd.f32 %v1615, %v82
    %vm1617 = vcmp.gt.f32.partialorder %v1616, 20.0
    %v1618 = vmin.f32 %v1616, 20.0
    %v1619 = vmul.f32 %v1618, 1.442695
    %v1620 = vpow.pop %v1619
    %v1621 = vadd.f32 %v1620, 1.0
    %v1622 = vlog2.pop %v1621
    %v1623 = vmul.f32 %v1622, 0.6931472
    %v1624 = vmul.f32 -0.5, %v1620
    %v1625 = vadd.f32 %v1624, 1.0
    %v1626 = vmul.f32 %v1625, %v1620
    %v1627 = vand.u32 2147483647, %v1620
    %vm1628 = vcmp.lt.f32.partialorder %v1627, 0.0004427343
    %v1629 = vsel %vm1628, %v1626, %v1623
    %v1630 = vsel %vm1617, %v1616, %v1629
    %v1631 = vadd.f32 %v1490, %v1488
    %1633 = vrot.lane.b32.xlu0 %v1616, 121
    %v1634 = vpop.permute.xlu0 %1633
    %v1636 = vadd.f32 %v1631, %v1634
    %1638 = vrot.lane.b32.xlu0 %v1636, 4
    %v1639 = vpop.permute.xlu0 %1638
    %v1641 = vsub.f32 %v1509, %v1639
    %v1642 = vadd.f32 %v1496, %v1506
    %1644 = vrot.lane.b32.xlu0 %v1507, 127
    %v1645 = vpop.permute.xlu0 %1644
    %v1647 = vadd.f32 %v1506, %v1645
    %v1648 = vadd.f32 %v1642, %v1647
    %v1649 = vmul.f32 %v1630, %v1630
    %1651 = vrot.lane.b32.xlu0 %v1649, 124
    %v1652 = vpop.permute.xlu0 %1651
    %v1654 = vadd.f32 %v1648, %v1652
    %v1655 = vrcp.pop %v1654
    %v1656 = vmul.f32 %v1642, %v1655
    %v1657 = vmul.f32 %v1647, %v1655
    %1659 = vrot.lane.b32.xlu0 %v1641, 126
    %v1660 = vpop.permute.xlu0 %1659
    %v1662 = vmul.f32 %v1656, %v1660
    %1664 = vrot.lane.b32.xlu0 %v1662, 126
    %v1665 = vpop.permute.xlu0 %1664
    %v1667 = vadd.f32 %v1490, %v1665
    %v1668 = vmul.f32 %v1657, %v1660
    %1670 = vrot.lane.b32.xlu0 %v1668, 127
    %v1671 = vpop.permute.xlu0 %1670
    %v1673 = vadd.f32 %v1470, %v1671
    %v1674 = vmul.f32 %v1656, %v1642
    %v1675 = vsub.f32 %v1496, %v1674
    %v1676 = vmul.f32 %v1656, %v1647
    %v1677 = vsub.f32 %v1506, %v1676
    %v1678 = vmul.f32 %v1657, %v1647
    %1680 = vrot.lane.b32.xlu0 %v1678, 1
    %v1681 = vpop.permute.xlu0 %1680
    %v1683 = vsub.f32 %v1507, %v1681
    %1685 = vrot.lane.b32.xlu0 %v1683, 127
    %v1686 = vpop.permute.xlu0 %1685
    %v1688 = vadd.f32 %v1677, %v1686
    %1690 = vrot.lane.b32.xlu0 %v1673, 127
    %v1691 = vpop.permute.xlu0 %1690
    %v1693 = vadd.f32 %v1667, %v1691
    %v1694 = vadd.f32 %v1675, %v1677
    %v1695 = vadd.f32 %v1694, %v1688
    %1696 = vrot.lane.b32.xlu0 %v1649, 126
    %v1697 = vpop.permute.xlu0 %1696
    %v1699 = vadd.f32 %v1695, %v1697
    %1701 = vrot.lane.b32.xlu0 %v1630, 127
    %v1702 = vpop.permute.xlu0 %1701
    %v1704 = vmul.f32 %v1630, %v1702
    %1706 = vrot.lane.b32.xlu0 %v1704, 126
    %v1707 = vpop.permute.xlu0 %1706
    %v1709 = vadd.f32 %v1688, %v1707
    %v1710 = vadd.f32 %v1683, %v1697
    %v1711 = vmax.f32 %v1699, 1e-12
    %v1712 = vrsqrt.pop %v1711
    %v1713 = vmul.f32 %v1711, %v1712
    %vm1714 = vcmp.eq.f32.partialorder %v1711, inf
    %v1715 = vsel %vm1714, %v1711, %v1713
    %vm1716 = vcmp.eq.f32.partialorder %v1711, 0.0
    %v1717 = vand.u32 %v1711, 2147483648
    %v1718 = vsel %vm1716, %v1717, %v1715
    %v1719 = vrcp.pop %v1718
    %v1720 = vmul.f32 %v1709, %v1719
    %v1721 = vmul.f32 %v1720, %v1720
    %1723 = vrot.lane.b32.xlu0 %v1721, 1
    %v1724 = vpop.permute.xlu0 %1723
    %v1726 = vsub.f32 %v1710, %v1724
    %v1727 = vmax.f32 %v1726, 0.0
    %v1728 = vrsqrt.pop %v1727
    %v1729 = vmul.f32 %v1727, %v1728
    %vm1730 = vcmp.eq.f32.partialorder %v1727, inf
    %v1731 = vsel %vm1730, %v1727, %v1729
    %vm1732 = vcmp.eq.f32.partialorder %v1727, 0.0
    %v1733 = vand.u32 %v1727, 2147483648
    %v1734 = vsel %vm1732, %v1733, %v1731
    %v1735 = vld [vmem:[%s2] sm:$0x3]
    %s1736 = scalar_lea.vmem %s2, 2
    %v1737 = vld [vmem:[%s1736] sm:$0x3]
    %1739 = vset.pattern.permute.xlu0 2
    %1740 = vperm.xlu0 %1739, %v1718
    %v1741 = vpop.permute.xlu0 %1740
    %v1743 = vmul.f32 %v1741, %v1735
    %1745 = vset.pattern.permute.xlu0 0
    %1746 = vperm.xlu0 %1745, %v1693
    %v1747 = vpop.permute.xlu0 %1746
    %v1749 = vadd.f32 %v1747, %v1743
    %1751 = vset.pattern.permute.xlu0 2
    %1752 = vperm.xlu0 %1751, %v1720
    %v1753 = vpop.permute.xlu0 %1752
    %v1755 = vmul.f32 %v1753, %v1735
    %1756 = vset.pattern.permute.xlu0 1
    %1757 = vperm.xlu0 %1756, %v1673
    %v1758 = vpop.permute.xlu0 %1757
    %v1760 = vadd.f32 %v1758, %v1755
    %1762 = vset.pattern.permute.xlu0 3
    %1763 = vperm.xlu0 %1762, %v1734
    %v1764 = vpop.permute.xlu0 %1763
    %v1766 = vmul.f32 %v1764, %v1737
    %v1767 = vadd.f32 %v1760, %v1766
    %s1768 = scalar_lea.vmem %s0, 16
    %v1769 = vld [vmem:[%s1768] sm:$0x3]
    %1771 = vset.pattern.permute.xlu0 0
    %1772 = vperm.xlu0 %1771, %v1769
    %v1773 = vpop.permute.xlu0 %1772
    %v1775 = vmul.f32 %v1773, %v19
    %1776 = vset.pattern.permute.xlu0 1
    %1777 = vperm.xlu0 %1776, %v1769
    %v1778 = vpop.permute.xlu0 %1777
    %v1780 = vmul.f32 %v1778, %v23
    %v1781 = vadd.f32 %v1775, %v1780
    %1782 = vset.pattern.permute.xlu0 2
    %1783 = vperm.xlu0 %1782, %v1769
    %v1784 = vpop.permute.xlu0 %1783
    %v1786 = vmul.f32 %v1784, %v27
    %v1787 = vadd.f32 %v1781, %v1786
    %1788 = vset.pattern.permute.xlu0 3
    %1789 = vperm.xlu0 %1788, %v1769
    %v1790 = vpop.permute.xlu0 %1789
    %v1792 = vmul.f32 %v1790, %v31
    %v1793 = vadd.f32 %v1787, %v1792
    %v1794 = vmul.f32 %v1566, %v36
    %v1795 = vmul.f32 %v1571, %v40
    %v1796 = vadd.f32 %v1794, %v1795
    %v1797 = vadd.f32 %v1793, %v1796
    %v1798 = vadd.f32 %v1797, %v45
    %v1799 = vxor.u32 %v1798, 2147483648
    %v1800 = vmul.f32 %v1799, 1.442695
    %v1801 = vpow.pop %v1800
    %v1802 = vadd.f32 %v1801, 1.0
    %v1803 = vrcp.pop %v1802
    %v1804 = vmul.f32 1.0, %v1803
    %v1805 = vtanh.pop %v1798
    %v1806 = vmul.f32 %v1804, %v1556
    %1808 = vrot.lane.b32.xlu0 %v1805, 122
    %v1809 = vpop.permute.xlu0 %1808
    %v1811 = vmul.f32 %v1804, %v1809
    %1813 = vrot.lane.b32.xlu0 %v1811, 2
    %v1814 = vpop.permute.xlu0 %1813
    %v1816 = vadd.f32 %v1806, %v1814
    %v1817 = vtanh.pop %v1816
    %1819 = vrot.lane.b32.xlu0 %v1817, 2
    %v1820 = vpop.permute.xlu0 %1819
    %v1822 = vmul.f32 %v1804, %v1820
    %1824 = vset.pattern.permute.xlu0 4
    %1825 = vperm.xlu0 %1824, %v1822
    %v1826 = vpop.permute.xlu0 %1825
    %v1828 = vmul.f32 %v1826, %v50
    %1829 = vset.pattern.permute.xlu0 5
    %1830 = vperm.xlu0 %1829, %v1822
    %v1831 = vpop.permute.xlu0 %1830
    %v1833 = vmul.f32 %v1831, %v54
    %v1834 = vadd.f32 %v1828, %v1833
    %v1835 = vmul.f32 %v1607, %v59
    %v1836 = vmul.f32 %v1612, %v63
    %v1837 = vadd.f32 %v1835, %v1836
    %v1838 = vadd.f32 %v1834, %v1837
    %v1839 = vadd.f32 %v1838, %v68
    %v1840 = vxor.u32 %v1839, 2147483648
    %v1841 = vmul.f32 %v1840, 1.442695
    %v1842 = vpow.pop %v1841
    %v1843 = vadd.f32 %v1842, 1.0
    %v1844 = vrcp.pop %v1843
    %v1845 = vmul.f32 1.0, %v1844
    %v1846 = vtanh.pop %v1839
    %v1847 = vmul.f32 %v1845, %v1597
    %1849 = vrot.lane.b32.xlu0 %v1846, 122
    %v1850 = vpop.permute.xlu0 %1849
    %v1852 = vmul.f32 %v1845, %v1850
    %1854 = vrot.lane.b32.xlu0 %v1852, 2
    %v1855 = vpop.permute.xlu0 %1854
    %v1857 = vadd.f32 %v1847, %v1855
    %v1858 = vtanh.pop %v1857
    %1860 = vrot.lane.b32.xlu0 %v1858, 2
    %v1861 = vpop.permute.xlu0 %1860
    %v1863 = vmul.f32 %v1845, %v1861
    %1865 = vset.pattern.permute.xlu0 4
    %1866 = vperm.xlu0 %1865, %v1863
    %v1867 = vpop.permute.xlu0 %1866
    %v1869 = vmul.f32 %v1867, %v73
    %1870 = vset.pattern.permute.xlu0 5
    %1871 = vperm.xlu0 %1870, %v1863
    %v1872 = vpop.permute.xlu0 %1871
    %v1874 = vmul.f32 %v1872, %v77
    %v1875 = vadd.f32 %v1869, %v1874
    %v1876 = vadd.f32 %v1875, %v82
    %vm1877 = vcmp.gt.f32.partialorder %v1876, 20.0
    %v1878 = vmin.f32 %v1876, 20.0
    %v1879 = vmul.f32 %v1878, 1.442695
    %v1880 = vpow.pop %v1879
    %v1881 = vadd.f32 %v1880, 1.0
    %v1882 = vlog2.pop %v1881
    %v1883 = vmul.f32 %v1882, 0.6931472
    %v1884 = vmul.f32 -0.5, %v1880
    %v1885 = vadd.f32 %v1884, 1.0
    %v1886 = vmul.f32 %v1885, %v1880
    %v1887 = vand.u32 2147483647, %v1880
    %vm1888 = vcmp.lt.f32.partialorder %v1887, 0.0004427343
    %v1889 = vsel %vm1888, %v1886, %v1883
    %v1890 = vsel %vm1877, %v1876, %v1889
    %v1891 = vadd.f32 %v1749, %v1767
    %1893 = vset.pattern.permute.xlu0 7
    %1894 = vperm.xlu0 %1893, %v1876
    %v1895 = vpop.permute.xlu0 %1894
    %v1897 = vadd.f32 %v1891, %v1895
    %s1898 = scalar_lea.vmem %s2, 4
    %v1899 = vld [vmem:[%s1898] sm:$0x3]
    %1901 = vset.pattern.permute.xlu0 6
    %1902 = vperm.xlu0 %1901, %v1890
    %v1903 = vpop.permute.xlu0 %1902
    %v1905 = vmul.f32 %v1903, %v1899
    %v1906 = vadd.f32 %v1897, %v1905
    %vm1907 = vcmask 58368
    %v1908 = vsel %vm1907, %v1906, 0.0
    %1909 = vadd.xlane.f32.xlu0 %v1908
    %v1910 = vpop.xlane.xlu0 %1909
    %s1911 = scalar_lea.vmem %s2, 12
    %v1912 = vld [vmem:[%s1911] sm:$0x3]
    %1913 = vset.pattern.permute.xlu0 4
    %1914 = vperm.xlu0 %1913, %v1890
    %v1915 = vpop.permute.xlu0 %1914
    %v1917 = vmul.f32 %v1915, %v1912
    %v1918 = vadd.f32 %v1891, %v1917
    %1919 = vset.pattern.permute.xlu0 5
    %1920 = vperm.xlu0 %1919, %v1890
    %v1921 = vpop.permute.xlu0 %1920
    %v1923 = vmul.f32 %v1921, %v1912
    %v1924 = vadd.f32 %v1767, %v1923
    %s1925 = scalar_lea.vmem %s0, 18
    %v1926 = vld [vmem:[%s1925] sm:$0x3]
    %1928 = vset.pattern.permute.xlu0 0
    %1929 = vperm.xlu0 %1928, %v1926
    %v1930 = vpop.permute.xlu0 %1929
    %v1932 = vmul.f32 %v1930, %v19
    %1933 = vset.pattern.permute.xlu0 1
    %1934 = vperm.xlu0 %1933, %v1926
    %v1935 = vpop.permute.xlu0 %1934
    %v1937 = vmul.f32 %v1935, %v23
    %v1938 = vadd.f32 %v1932, %v1937
    %1939 = vset.pattern.permute.xlu0 2
    %1940 = vperm.xlu0 %1939, %v1926
    %v1941 = vpop.permute.xlu0 %1940
    %v1943 = vmul.f32 %v1941, %v27
    %v1944 = vadd.f32 %v1938, %v1943
    %1945 = vset.pattern.permute.xlu0 3
    %1946 = vperm.xlu0 %1945, %v1926
    %v1947 = vpop.permute.xlu0 %1946
    %v1949 = vmul.f32 %v1947, %v31
    %v1950 = vadd.f32 %v1944, %v1949
    %v1951 = vmul.f32 %v1826, %v36
    %v1952 = vmul.f32 %v1831, %v40
    %v1953 = vadd.f32 %v1951, %v1952
    %v1954 = vadd.f32 %v1950, %v1953
    %v1955 = vadd.f32 %v1954, %v45
    %v1956 = vxor.u32 %v1955, 2147483648
    %v1957 = vmul.f32 %v1956, 1.442695
    %v1958 = vpow.pop %v1957
    %v1959 = vadd.f32 %v1958, 1.0
    %v1960 = vrcp.pop %v1959
    %v1961 = vmul.f32 1.0, %v1960
    %v1962 = vtanh.pop %v1955
    %v1963 = vmul.f32 %v1961, %v1816
    %1965 = vrot.lane.b32.xlu0 %v1962, 122
    %v1966 = vpop.permute.xlu0 %1965
    %v1968 = vmul.f32 %v1961, %v1966
    %1970 = vrot.lane.b32.xlu0 %v1968, 2
    %v1971 = vpop.permute.xlu0 %1970
    %v1973 = vadd.f32 %v1963, %v1971
    %v1974 = vtanh.pop %v1973
    %1976 = vrot.lane.b32.xlu0 %v1974, 2
    %v1977 = vpop.permute.xlu0 %1976
    %v1979 = vmul.f32 %v1961, %v1977
    %1981 = vset.pattern.permute.xlu0 4
    %1982 = vperm.xlu0 %1981, %v1979
    %v1983 = vpop.permute.xlu0 %1982
    %v1985 = vmul.f32 %v1983, %v50
    %1986 = vset.pattern.permute.xlu0 5
    %1987 = vperm.xlu0 %1986, %v1979
    %v1988 = vpop.permute.xlu0 %1987
    %v1990 = vmul.f32 %v1988, %v54
    %v1991 = vadd.f32 %v1985, %v1990
    %v1992 = vmul.f32 %v1867, %v59
    %v1993 = vmul.f32 %v1872, %v63
    %v1994 = vadd.f32 %v1992, %v1993
    %v1995 = vadd.f32 %v1991, %v1994
    %v1996 = vadd.f32 %v1995, %v68
    %v1997 = vxor.u32 %v1996, 2147483648
    %v1998 = vmul.f32 %v1997, 1.442695
    %v1999 = vpow.pop %v1998
    %v2000 = vadd.f32 %v1999, 1.0
    %v2001 = vrcp.pop %v2000
    %v2002 = vmul.f32 1.0, %v2001
    %v2003 = vtanh.pop %v1996
    %v2004 = vmul.f32 %v2002, %v1857
    %2006 = vrot.lane.b32.xlu0 %v2003, 122
    %v2007 = vpop.permute.xlu0 %2006
    %v2009 = vmul.f32 %v2002, %v2007
    %2011 = vrot.lane.b32.xlu0 %v2009, 2
    %v2012 = vpop.permute.xlu0 %2011
    %v2014 = vadd.f32 %v2004, %v2012
    %v2015 = vtanh.pop %v2014
    %2017 = vrot.lane.b32.xlu0 %v2015, 2
    %v2018 = vpop.permute.xlu0 %2017
    %v2020 = vmul.f32 %v2002, %v2018
    %2022 = vset.pattern.permute.xlu0 4
    %2023 = vperm.xlu0 %2022, %v2020
    %v2024 = vpop.permute.xlu0 %2023
    %v2026 = vmul.f32 %v2024, %v73
    %2027 = vset.pattern.permute.xlu0 5
    %2028 = vperm.xlu0 %2027, %v2020
    %v2029 = vpop.permute.xlu0 %2028
    %v2031 = vmul.f32 %v2029, %v77
    %v2032 = vadd.f32 %v2026, %v2031
    %v2033 = vadd.f32 %v2032, %v82
    %vm2034 = vcmp.gt.f32.partialorder %v2033, 20.0
    %v2035 = vmin.f32 %v2033, 20.0
    %v2036 = vmul.f32 %v2035, 1.442695
    %v2037 = vpow.pop %v2036
    %v2038 = vadd.f32 %v2037, 1.0
    %v2039 = vlog2.pop %v2038
    %v2040 = vmul.f32 %v2039, 0.6931472
    %v2041 = vmul.f32 -0.5, %v2037
    %v2042 = vadd.f32 %v2041, 1.0
    %v2043 = vmul.f32 %v2042, %v2037
    %v2044 = vand.u32 2147483647, %v2037
    %vm2045 = vcmp.lt.f32.partialorder %v2044, 0.0004427343
    %v2046 = vsel %vm2045, %v2043, %v2040
    %v2047 = vsel %vm2034, %v2033, %v2046
    %v2048 = vadd.f32 %v1918, %v1924
    %2050 = vset.pattern.permute.xlu0 7
    %2051 = vperm.xlu0 %2050, %v2033
    %v2052 = vpop.permute.xlu0 %2051
    %v2054 = vadd.f32 %v2048, %v2052
    %s2055 = scalar_lea.vmem %s2, 6
    %v2056 = vld [vmem:[%s2055] sm:$0x3]
    %2058 = vset.pattern.permute.xlu0 6
    %2059 = vperm.xlu0 %2058, %v2047
    %v2060 = vpop.permute.xlu0 %2059
    %v2062 = vmul.f32 %v2060, %v2056
    %v2063 = vadd.f32 %v2054, %v2062
    %v2064 = vsel %vm1907, %v2063, 0.0
    %2065 = vadd.xlane.f32.xlu0 %v2064
    %v2066 = vpop.xlane.xlu0 %2065
    %s2067 = scalar_lea.vmem %s2, 14
    %v2068 = vld [vmem:[%s2067] sm:$0x3]
    %2069 = vset.pattern.permute.xlu0 4
    %2070 = vperm.xlu0 %2069, %v2047
    %v2071 = vpop.permute.xlu0 %2070
    %v2073 = vmul.f32 %v2071, %v2068
    %v2074 = vadd.f32 %v2048, %v2073
    %2075 = vset.pattern.permute.xlu0 5
    %2076 = vperm.xlu0 %2075, %v2047
    %v2077 = vpop.permute.xlu0 %2076
    %v2079 = vmul.f32 %v2077, %v2068
    %v2080 = vadd.f32 %v1924, %v2079
    %s2081 = scalar_lea.vmem %s0, 20
    %v2082 = vld [vmem:[%s2081] sm:$0x3]
    %2084 = vset.pattern.permute.xlu0 0
    %2085 = vperm.xlu0 %2084, %v2082
    %v2086 = vpop.permute.xlu0 %2085
    %v2088 = vmul.f32 %v2086, %v19
    %2089 = vset.pattern.permute.xlu0 1
    %2090 = vperm.xlu0 %2089, %v2082
    %v2091 = vpop.permute.xlu0 %2090
    %v2093 = vmul.f32 %v2091, %v23
    %v2094 = vadd.f32 %v2088, %v2093
    %2095 = vset.pattern.permute.xlu0 2
    %2096 = vperm.xlu0 %2095, %v2082
    %v2097 = vpop.permute.xlu0 %2096
    %v2099 = vmul.f32 %v2097, %v27
    %v2100 = vadd.f32 %v2094, %v2099
    %2101 = vset.pattern.permute.xlu0 3
    %2102 = vperm.xlu0 %2101, %v2082
    %v2103 = vpop.permute.xlu0 %2102
    %v2105 = vmul.f32 %v2103, %v31
    %v2106 = vadd.f32 %v2100, %v2105
    %v2107 = vmul.f32 %v1983, %v36
    %v2108 = vmul.f32 %v1988, %v40
    %v2109 = vadd.f32 %v2107, %v2108
    %v2110 = vadd.f32 %v2106, %v2109
    %v2111 = vadd.f32 %v2110, %v45
    %v2112 = vxor.u32 %v2111, 2147483648
    %v2113 = vmul.f32 %v2112, 1.442695
    %v2114 = vpow.pop %v2113
    %v2115 = vadd.f32 %v2114, 1.0
    %v2116 = vrcp.pop %v2115
    %v2117 = vmul.f32 1.0, %v2116
    %v2118 = vtanh.pop %v2111
    %v2119 = vmul.f32 %v2117, %v1973
    %2121 = vrot.lane.b32.xlu0 %v2118, 122
    %v2122 = vpop.permute.xlu0 %2121
    %v2124 = vmul.f32 %v2117, %v2122
    %2126 = vrot.lane.b32.xlu0 %v2124, 2
    %v2127 = vpop.permute.xlu0 %2126
    %v2129 = vadd.f32 %v2119, %v2127
    %v2130 = vtanh.pop %v2129
    %2132 = vrot.lane.b32.xlu0 %v2130, 2
    %v2133 = vpop.permute.xlu0 %2132
    %v2135 = vmul.f32 %v2117, %v2133
    %2137 = vset.pattern.permute.xlu0 4
    %2138 = vperm.xlu0 %2137, %v2135
    %v2139 = vpop.permute.xlu0 %2138
    %v2141 = vmul.f32 %v2139, %v50
    %2142 = vset.pattern.permute.xlu0 5
    %2143 = vperm.xlu0 %2142, %v2135
    %v2144 = vpop.permute.xlu0 %2143
    %v2146 = vmul.f32 %v2144, %v54
    %v2147 = vadd.f32 %v2141, %v2146
    %v2148 = vmul.f32 %v2024, %v59
    %v2149 = vmul.f32 %v2029, %v63
    %v2150 = vadd.f32 %v2148, %v2149
    %v2151 = vadd.f32 %v2147, %v2150
    %v2152 = vadd.f32 %v2151, %v68
    %v2153 = vxor.u32 %v2152, 2147483648
    %v2154 = vmul.f32 %v2153, 1.442695
    %v2155 = vpow.pop %v2154
    %v2156 = vadd.f32 %v2155, 1.0
    %v2157 = vrcp.pop %v2156
    %v2158 = vmul.f32 1.0, %v2157
    %v2159 = vtanh.pop %v2152
    %v2160 = vmul.f32 %v2158, %v2014
    %2162 = vrot.lane.b32.xlu0 %v2159, 122
    %v2163 = vpop.permute.xlu0 %2162
    %v2165 = vmul.f32 %v2158, %v2163
    %2167 = vrot.lane.b32.xlu0 %v2165, 2
    %v2168 = vpop.permute.xlu0 %2167
    %v2170 = vadd.f32 %v2160, %v2168
    %v2171 = vtanh.pop %v2170
    %2173 = vrot.lane.b32.xlu0 %v2171, 2
    %v2174 = vpop.permute.xlu0 %2173
    %v2176 = vmul.f32 %v2158, %v2174
    %2178 = vset.pattern.permute.xlu0 4
    %2179 = vperm.xlu0 %2178, %v2176
    %v2180 = vpop.permute.xlu0 %2179
    %v2182 = vmul.f32 %v2180, %v73
    %2183 = vset.pattern.permute.xlu0 5
    %2184 = vperm.xlu0 %2183, %v2176
    %v2185 = vpop.permute.xlu0 %2184
    %v2187 = vmul.f32 %v2185, %v77
    %v2188 = vadd.f32 %v2182, %v2187
    %v2189 = vadd.f32 %v2188, %v82
    %vm2190 = vcmp.gt.f32.partialorder %v2189, 20.0
    %v2191 = vmin.f32 %v2189, 20.0
    %v2192 = vmul.f32 %v2191, 1.442695
    %v2193 = vpow.pop %v2192
    %v2194 = vadd.f32 %v2193, 1.0
    %v2195 = vlog2.pop %v2194
    %v2196 = vmul.f32 %v2195, 0.6931472
    %v2197 = vmul.f32 -0.5, %v2193
    %v2198 = vadd.f32 %v2197, 1.0
    %v2199 = vmul.f32 %v2198, %v2193
    %v2200 = vand.u32 2147483647, %v2193
    %vm2201 = vcmp.lt.f32.partialorder %v2200, 0.0004427343
    %v2202 = vsel %vm2201, %v2199, %v2196
    %v2203 = vsel %vm2190, %v2189, %v2202
    %v2204 = vadd.f32 %v2074, %v2080
    %2206 = vset.pattern.permute.xlu0 7
    %2207 = vperm.xlu0 %2206, %v2189
    %v2208 = vpop.permute.xlu0 %2207
    %v2210 = vadd.f32 %v2204, %v2208
    %s2211 = scalar_lea.vmem %s2, 8
    %v2212 = vld [vmem:[%s2211] sm:$0x3]
    %2214 = vset.pattern.permute.xlu0 6
    %2215 = vperm.xlu0 %2214, %v2203
    %v2216 = vpop.permute.xlu0 %2215
    %v2218 = vmul.f32 %v2216, %v2212
    %v2219 = vadd.f32 %v2210, %v2218
    %v2220 = vsel %vm1907, %v2219, 0.0
    %2221 = vadd.xlane.f32.xlu0 %v2220
    %v2222 = vpop.xlane.xlu0 %2221
    %s2223 = scalar_lea.vmem %s2, 16
    %v2224 = vld [vmem:[%s2223] sm:$0x3]
    %2225 = vset.pattern.permute.xlu0 4
    %2226 = vperm.xlu0 %2225, %v2203
    %v2227 = vpop.permute.xlu0 %2226
    %v2229 = vmul.f32 %v2227, %v2224
    %v2230 = vadd.f32 %v2204, %v2229
    %2231 = vset.pattern.permute.xlu0 5
    %2232 = vperm.xlu0 %2231, %v2203
    %v2233 = vpop.permute.xlu0 %2232
    %v2235 = vmul.f32 %v2233, %v2224
    %v2236 = vadd.f32 %v2080, %v2235
    %s2237 = scalar_lea.vmem %s0, 22
    %v2238 = vld [vmem:[%s2237] sm:$0x3]
    %2240 = vset.pattern.permute.xlu0 0
    %2241 = vperm.xlu0 %2240, %v2238
    %v2242 = vpop.permute.xlu0 %2241
    %v2244 = vmul.f32 %v2242, %v19
    %2245 = vset.pattern.permute.xlu0 1
    %2246 = vperm.xlu0 %2245, %v2238
    %v2247 = vpop.permute.xlu0 %2246
    %v2249 = vmul.f32 %v2247, %v23
    %v2250 = vadd.f32 %v2244, %v2249
    %2251 = vset.pattern.permute.xlu0 2
    %2252 = vperm.xlu0 %2251, %v2238
    %v2253 = vpop.permute.xlu0 %2252
    %v2255 = vmul.f32 %v2253, %v27
    %v2256 = vadd.f32 %v2250, %v2255
    %2257 = vset.pattern.permute.xlu0 3
    %2258 = vperm.xlu0 %2257, %v2238
    %v2259 = vpop.permute.xlu0 %2258
    %v2261 = vmul.f32 %v2259, %v31
    %v2262 = vadd.f32 %v2256, %v2261
    %v2263 = vmul.f32 %v2139, %v36
    %v2264 = vmul.f32 %v2144, %v40
    %v2265 = vadd.f32 %v2263, %v2264
    %v2266 = vadd.f32 %v2262, %v2265
    %v2267 = vadd.f32 %v2266, %v45
    %v2268 = vxor.u32 %v2267, 2147483648
    %v2269 = vmul.f32 %v2268, 1.442695
    %v2270 = vpow.pop %v2269
    %v2271 = vadd.f32 %v2270, 1.0
    %v2272 = vrcp.pop %v2271
    %v2273 = vmul.f32 1.0, %v2272
    %v2274 = vtanh.pop %v2267
    %v2275 = vmul.f32 %v2273, %v2129
    %2277 = vrot.lane.b32.xlu0 %v2274, 122
    %v2278 = vpop.permute.xlu0 %2277
    %v2280 = vmul.f32 %v2273, %v2278
    %2282 = vrot.lane.b32.xlu0 %v2280, 2
    %v2283 = vpop.permute.xlu0 %2282
    %v2285 = vadd.f32 %v2275, %v2283
    %v2286 = vtanh.pop %v2285
    %2288 = vrot.lane.b32.xlu0 %v2286, 2
    %v2289 = vpop.permute.xlu0 %2288
    %v2291 = vmul.f32 %v2273, %v2289
    %2293 = vset.pattern.permute.xlu0 4
    %2294 = vperm.xlu0 %2293, %v2291
    %v2295 = vpop.permute.xlu0 %2294
    %v2297 = vmul.f32 %v2295, %v50
    %2298 = vset.pattern.permute.xlu0 5
    %2299 = vperm.xlu0 %2298, %v2291
    %v2300 = vpop.permute.xlu0 %2299
    %v2302 = vmul.f32 %v2300, %v54
    %v2303 = vadd.f32 %v2297, %v2302
    %v2304 = vmul.f32 %v2180, %v59
    %v2305 = vmul.f32 %v2185, %v63
    %v2306 = vadd.f32 %v2304, %v2305
    %v2307 = vadd.f32 %v2303, %v2306
    %v2308 = vadd.f32 %v2307, %v68
    %v2309 = vxor.u32 %v2308, 2147483648
    %v2310 = vmul.f32 %v2309, 1.442695
    %v2311 = vpow.pop %v2310
    %v2312 = vadd.f32 %v2311, 1.0
    %v2313 = vrcp.pop %v2312
    %v2314 = vmul.f32 1.0, %v2313
    %v2315 = vtanh.pop %v2308
    %v2316 = vmul.f32 %v2314, %v2170
    %2318 = vrot.lane.b32.xlu0 %v2315, 122
    %v2319 = vpop.permute.xlu0 %2318
    %v2321 = vmul.f32 %v2314, %v2319
    %2323 = vrot.lane.b32.xlu0 %v2321, 2
    %v2324 = vpop.permute.xlu0 %2323
    %v2326 = vadd.f32 %v2316, %v2324
    %v2327 = vtanh.pop %v2326
    %2329 = vrot.lane.b32.xlu0 %v2327, 2
    %v2330 = vpop.permute.xlu0 %2329
    %v2332 = vmul.f32 %v2314, %v2330
    %2334 = vset.pattern.permute.xlu0 4
    %2335 = vperm.xlu0 %2334, %v2332
    %v2336 = vpop.permute.xlu0 %2335
    %v2338 = vmul.f32 %v2336, %v73
    %2339 = vset.pattern.permute.xlu0 5
    %2340 = vperm.xlu0 %2339, %v2332
    %v2341 = vpop.permute.xlu0 %2340
    %v2343 = vmul.f32 %v2341, %v77
    %v2344 = vadd.f32 %v2338, %v2343
    %v2345 = vadd.f32 %v2344, %v82
    %vm2346 = vcmp.gt.f32.partialorder %v2345, 20.0
    %v2347 = vmin.f32 %v2345, 20.0
    %v2348 = vmul.f32 %v2347, 1.442695
    %v2349 = vpow.pop %v2348
    %v2350 = vadd.f32 %v2349, 1.0
    %v2351 = vlog2.pop %v2350
    %v2352 = vmul.f32 %v2351, 0.6931472
    %v2353 = vmul.f32 -0.5, %v2349
    %v2354 = vadd.f32 %v2353, 1.0
    %v2355 = vmul.f32 %v2354, %v2349
    %v2356 = vand.u32 2147483647, %v2349
    %vm2357 = vcmp.lt.f32.partialorder %v2356, 0.0004427343
    %v2358 = vsel %vm2357, %v2355, %v2352
    %v2359 = vsel %vm2346, %v2345, %v2358
    %v2360 = vadd.f32 %v2230, %v2236
    %2362 = vset.pattern.permute.xlu0 7
    %2363 = vperm.xlu0 %2362, %v2345
    %v2364 = vpop.permute.xlu0 %2363
    %v2366 = vadd.f32 %v2360, %v2364
    %s2367 = scalar_lea.vmem %s2, 10
    %v2368 = vld [vmem:[%s2367] sm:$0x3]
    %2370 = vset.pattern.permute.xlu0 6
    %2371 = vperm.xlu0 %2370, %v2359
    %v2372 = vpop.permute.xlu0 %2371
    %v2374 = vmul.f32 %v2372, %v2368
    %v2375 = vadd.f32 %v2366, %v2374
    %v2376 = vsel %vm1907, %v2375, 0.0
    %2377 = vadd.xlane.f32.xlu0 %v2376
    %v2378 = vpop.xlane.xlu0 %2377
    %vm2379 = vcmask 7168
    %v2380 = vsel %vm2379, %v1910, %v2066
    %vm2381 = vcmask 15360
    %v2382 = vsel %vm2381, %v2380, %v2222
    %vm2383 = vcmask 23552
    %v2384 = vsel %vm2383, %v2382, %v2378
    %v2385 = vmul.f32 %v2384, 0.125
    %vm2386 = vcmask 25600
    %2387 = vst.msk [vmem:[#allocation2] sm:$0x3] %vm2386, %v2385
    // Predicated region
    $region14: #{deepstate_forward.1} parent=1 // pred_check
      _
    $region15: #{deepstate_forward.1} parent=1 // pred_check_branch
      %2389 = sbr.rel (0) target = $region17
    $region16: #{deepstate_forward.1} parent=1 // pred_region
      %s2391 = ssub.s32 32, 32
      %2392 = vsyncadd [#allocation3], %s2391
      %s2394 = sshll.u32 [#allocation2], 4
      %s2395 = int_to_ptr.vmem [resolvable:$true] %s2394
      %2397 = dma.vmem_to_hbm [thread:$0]  %s2395, 32, %s3, [#allocation3]
    $region17: #{deepstate_forward.1} parent=1 // pred_fallthru
      _
    // Predicated region
    $region18: #{deepstate_forward.1} parent=1 // pred_check
      _
    $region19: #{deepstate_forward.1} parent=1 // pred_check_branch
      %2399 = sbr.rel (0) target = $region21
    $region20: #{deepstate_forward.1} parent=1 // pred_region
      %2400 = dma.done [#allocation3], 32
    $region21: #{deepstate_forward.1} parent=1 // pred_fallthru
      _
    %2401 = vsyncpa [#allocation3], 1

</llo_original>
